<compile_context>
chip_gen: v6e
topology: v6e:2x2x1
jax: 0.10.0
libtpu: 0.0.40
codegen_flags: <defaults>
</compile_context>

<pallas_src>
import functools

import jax
import jax.numpy as jnp
from jax.experimental import pallas as pl
from jax.experimental.pallas import tpu as pltpu

LN_EPS = 1e-5
NEG_INF = -1e30


# ---------------------------------------------------------------------------
# Fused kernel: x-encoder + y-encoder + projection FFN for one batch tile.
# ---------------------------------------------------------------------------
def _fused_kernel(x_ref, qa_ref, yv_ref, w_ref, b_ref, o_ref, *, n_heads):
    """Block shapes:
         x_ref, qa_ref, yv_ref : (bt, S, D)   f32  activations for this batch tile
         w_ref                 : (5, D, 2*O)  bf16 packed weights (see _pack_params)
         b_ref                 : (12, O)      f32  packed biases / LayerNorm params
         o_ref                 : (bt, S, O)   f32
    """
    bt, S, D = x_ref.shape
    O = o_ref.shape[-1]
    H = n_heads
    dh = O // H
    M = bt * S

    # ---- packed parameters ------------------------------------------------
    w_qv_x = w_ref[0]             # [Wq_x * dh**-0.25 | Wv_x]          (D, 2O)
    w_qv_y = w_ref[1]             # [Wq_y * dh**-0.25 | Wv_y]          (D, 2O)
    w_o = w_ref[2]                # [Wo_x | Wo_y]                      (O, 2O)
    w_1 = w_ref[3]                # [W1_x | W1_y] (split of proj W1)   (O, 2O)
    w_2 = w_ref[4][:, :O]         # W2                                 (O, O)

    def brow(i):                  # (1, O) f32 row of the bias slab
        return b_ref[i:i + 1, :]

    bq_x, bv_x, bq_y, bv_y = brow(0), brow(1), brow(2), brow(3)
    bo_x, bo_y = brow(4), brow(5)
    g_x, be_x, g_y, be_y = brow(6), brow(7), brow(8), brow(9)
    b1, b2 = brow(10), brow(11)

    # ---- lane-dense Q/V projections (batch tile folded into the M rows) ----
    x2 = x_ref[...].reshape(M, D)
    qa2 = qa_ref[...].reshape(M, D)
    yv2 = yv_ref[...].reshape(M, D)

    qv_x = jnp.dot(x2.astype(jnp.bfloat16), w_qv_x,
                   preferred_element_type=jnp.float32)               # (M, 2O)
    q_x = qv_x[:, :O] + bq_x
    v_x = qv_x[:, O:] + bv_x
    q_y = jnp.dot(qa2.astype(jnp.bfloat16), w_qv_y[:, :O],
                  preferred_element_type=jnp.float32) + bq_y         # (M, O)
    v_y = jnp.dot(yv2.astype(jnp.bfloat16), w_qv_y[:, O:],
                  preferred_element_type=jnp.float32) + bv_y         # (M, O)

    # ---- per-sequence, per-head attention (both encoders in one pass) ------
    def split_heads(t):           # (M, O) -> H arrays of (bt, S, dh)
        return [t[:, hd * dh:(hd + 1) * dh].reshape(bt, S, dh) for hd in range(H)]

    # batch axis order: [x-enc head0..H-1, y-enc head0..H-1], each of bt sequences
    q_all = jnp.concatenate(split_heads(q_x) + split_heads(q_y), axis=0)  # (2H*bt,S,dh)
    v_all = jnp.concatenate(split_heads(v_x) + split_heads(v_y), axis=0)
    q16 = q_all.astype(jnp.bfloat16)
    v16 = v_all.astype(jnp.bfloat16)

    row = jax.lax.broadcasted_iota(jnp.int32, (S, S), 0)
    col = jax.lax.broadcasted_iota(jnp.int32, (S, S), 1)
    causal = (col <= row)[None, :, :]            # attend to self and past only

    # kq_same AND key tensor == query tensor  =>  K == Q (scale already folded).
    s = jnp.einsum('gqd,gkd->gqk', q16, q16,
                   preferred_element_type=jnp.float32)               # (2H*bt,S,S)
    s = jnp.where(causal, s, NEG_INF)
    s = s - jnp.max(s, axis=-1, keepdims=True)
    p = jnp.exp(s)
    l = jnp.sum(p, axis=-1, keepdims=True)                           # (2H*bt,S,1)
    ctx = jnp.einsum('gqk,gkd->gqd', p.astype(jnp.bfloat16), v16,
                     preferred_element_type=jnp.float32)             # (2H*bt,S,dh)
    ctx = ctx * pl.reciprocal(l, approx=True)    # deferred softmax normalization

    def merge_heads(c):           # (H*bt, S, dh) -> (M, O), head-major lanes
        return jnp.concatenate(
            [c[hd * bt:(hd + 1) * bt].reshape(M, dh) for hd in range(H)], axis=-1)

    ctx_x = merge_heads(ctx[:H * bt])
    ctx_y = merge_heads(ctx[H * bt:])

    # ---- output projection + residual + LayerNorm ---------------------------
    def enc_out(ctx_e, w_o_e, bo_e, resid, gamma, beta):
        attn = jnp.dot(ctx_e.astype(jnp.bfloat16), w_o_e,
                       preferred_element_type=jnp.float32) + bo_e
        res = resid + attn                                           # residual = query + attn
        mu = jnp.mean(res, axis=-1, keepdims=True)
        var = jnp.mean((res - mu) ** 2, axis=-1, keepdims=True)
        return (res - mu) * jax.lax.rsqrt(var + LN_EPS) * gamma + beta

    x_out = enc_out(ctx_x, w_o[:, :O], bo_x, x2, g_x, be_x)
    y_out = enc_out(ctx_y, w_o[:, O:], bo_y, qa2, g_y, be_y)

    # ---- projection FFN: concat([x_out, y_out]) @ W1 == x_out@W1_x + y_out@W1_y
    ff = (jnp.dot(x_out.astype(jnp.bfloat16), w_1[:, :O],
                  preferred_element_type=jnp.float32) +
          jnp.dot(y_out.astype(jnp.bfloat16), w_1[:, O:],
                  preferred_element_type=jnp.float32) + b1)
    ff = jnp.maximum(ff, 0.0)                    # ReLU (dropout = identity in eval)
    out = jnp.dot(ff.astype(jnp.bfloat16), w_2,
                  preferred_element_type=jnp.float32) + b2
    o_ref[...] = out.reshape(bt, S, O)


# ---------------------------------------------------------------------------
# Host-side parameter packing (pure XLA, outside the kernel)
# ---------------------------------------------------------------------------
def _pack_params(params, n_heads):
    D = params["q_embed"].shape[1]
    xe, ye, pr = params["x_enc"], params["y_enc"], params["proj"]
    O = xe["wo"].shape[1]
    hidden = pr["w1"].shape[1]
    assert O % n_heads == 0
    assert O == D and hidden == O, \
        "kernel assumes d_model == out_size == proj-hidden (as in ContextEncoderV2)"
    dh = O // n_heads
    # K == Q, so fold sqrt(1/sqrt(dh)) into the shared Q/K projection (applied twice).
    qscale = float(dh) ** -0.25

    w_slab = jnp.stack([
        jnp.concatenate([xe["wqk"] * qscale, xe["wv"]], axis=1),      # (D, 2O)
        jnp.concatenate([ye["wqk"] * qscale, ye["wv"]], axis=1),
        jnp.concatenate([xe["wo"], ye["wo"]], axis=1),
        jnp.concatenate([pr["w1"][:O], pr["w1"][O:]], axis=1),
        jnp.concatenate([pr["w2"], jnp.zeros_like(pr["w2"])], axis=1),
    ], axis=0).astype(jnp.bfloat16)                                   # (5, D, 2O)

    b_slab = jnp.concatenate([
        xe["bqk"] * qscale, xe["bv"], ye["bqk"] * qscale, ye["bv"],
        xe["bo"], ye["bo"], xe["gamma"], xe["beta"], ye["gamma"], ye["beta"],
        pr["b1"], pr["b2"],
    ], axis=0).astype(jnp.float32)                                    # (12, O)
    return w_slab, b_slab


def _detect_num_tensorcores():
    """Best-effort TensorCores per chip (v7x: 2, v5e/v6e: 1). Safe fallback = 1."""
    try:
        info = pltpu.get_tpu_info()
        for attr in ("num_cores", "tensorcore_count", "num_tensorcores",
                     "cores_per_chip"):
            v = getattr(info, attr, None)
            if isinstance(v, int) and v > 0:
                return v
    except Exception:
        pass
    try:
        if "v7" in jax.devices()[0].device_kind.lower():
            return 2
    except Exception:
        pass
    return 1


# ---------------------------------------------------------------------------
# Full forward (p=None path)
# ---------------------------------------------------------------------------
def context_encoder_v2_forward(params, x, y, q_num, n_heads,
                               batch_tile=None, num_cores=None):
    B, S = x.shape
    D = params["q_embed"].shape[1]
    O = params["x_enc"]["wo"].shape[1]
    hidden = params["proj"]["w1"].shape[1]
    dh = O // n_heads

    # Embedding gathers stay in XLA (tiny; fusing them in-kernel adds no value).
    x_embed = jnp.take(params["q_embed"], x, axis=0)                  # (B, S, D)
    y_embed = jnp.take(params["a_embed"], y, axis=0)                  # (B, S, D)
    qa_embed = jnp.take(params["qa_embed"], x + q_num * y, axis=0)    # (B, S, D)

    # Grid: one batch tile per TensorCore (grid=1 on single-TC v5e/v6e, 2 on v7x).
    # Attention is per-sequence inside the tile, so extra grid steps never change
    # the attention work -- only pipeline overhead.
    if num_cores is None:
        num_cores = _detect_num_tensorcores()
    if batch_tile is None:
        grid_n = max(1, min(int(num_cores), B))
        while B % grid_n:
            grid_n -= 1
        batch_tile = B // grid_n
    assert B % batch_tile == 0
    grid_n = B // batch_tile

    w_slab, b_slab = _pack_params(params, n_heads)

    # Block last-two dims always equal the full (S, D)/(S, O) array dims, so the
    # (8,128) block rule is satisfied for any S (S % 8 == 0 still preferred).
    act_spec = pl.BlockSpec((batch_tile, S, D), lambda i: (i, 0, 0))
    out_spec = pl.BlockSpec((batch_tile, S, O), lambda i: (i, 0, 0))
    w_spec = pl.BlockSpec(w_slab.shape, lambda i: (0, 0, 0))
    b_spec = pl.BlockSpec(b_slab.shape, lambda i: (0, 0))

    # VMEM budget: double-buffered tiles + params + score intermediates, with
    # headroom; stays inside v7x's 64 MiB and above v5e's 16 MiB scoped default.
    tile_bytes = batch_tile * S * (3 * D + O) * 4
    score_bytes = 2 * n_heads * batch_tile * S * S * 4
    param_bytes = int(w_slab.size) * 2 + int(b_slab.size) * 4
    vmem_limit = int(min(max(4 * (tile_bytes + param_bytes) + 8 * score_bytes,
                             16 * 2 ** 20), 48 * 2 ** 20))

    macs = (4 * B * S * D * O                        # Q/V projections (2 per encoder)
            + 4 * n_heads * B * S * S * dh           # scores + ctx, both encoders
            + 2 * B * S * O * O                      # output projections
            + 2 * B * S * O * hidden                 # split-W1
            + B * S * hidden * O)                    # W2
    cost = pl.CostEstimate(
        flops=2 * macs,
        transcendentals=2 * n_heads * B * S * S,
        bytes_accessed=B * S * (3 * D + O) * 4 + param_bytes)

    out = pl.pallas_call(
        functools.partial(_fused_kernel, n_heads=n_heads),
        out_shape=jax.ShapeDtypeStruct((B, S, O), jnp.float32),
        grid=(grid_n,),
        in_specs=[act_spec, act_spec, act_spec, w_spec, b_spec],
        out_specs=out_spec,
        compiler_params=pltpu.CompilerParams(
            dimension_semantics=("parallel",),   # shards batch tiles across TCs (v7x)
            vmem_limit_bytes=vmem_limit),
        cost_estimate=cost,
    )(x_embed, qa_embed, y_embed, w_slab, b_slab)
    return out


# ---------------------------------------------------------------------------
# Pure-f32 JAX reference of the same assumed semantics (for tolerance checking)
# ---------------------------------------------------------------------------
def _reference_forward(params, x, y, q_num, n_heads):
    O = params["x_enc"]["wo"].shape[1]
    dh = O // n_heads
    x_e = params["q_embed"][x]
    y_e = params["a_embed"][y]
    qa_e = params["qa_embed"][x + q_num * y]

    def encoder(p, q_in, v_in):
        B, S, _ = q_in.shape
        q = (q_in @ p["wqk"] + p["bqk"]).reshape(B, S, n_heads, dh).transpose(0, 2, 1, 3)
        v = (v_in @ p["wv"] + p["bv"]).reshape(B, S, n_heads, dh).transpose(0, 2, 1, 3)
        s = jnp.einsum('bhqd,bhkd->bhqk', q, q) / jnp.sqrt(float(dh))
        mask = jnp.tril(jnp.ones((S, S), bool))
        s = jnp.where(mask, s, -jnp.inf)
        pa = jax.nn.softmax(s, axis=-1)
        ctx = jnp.einsum('bhqk,bhkd->bhqd', pa, v)
        ctx = ctx.transpose(0, 2, 1, 3).reshape(B, S, n_heads * dh)
        attn = ctx @ p["wo"] + p["bo"]
        res = q_in + attn
        mu = res.mean(-1, keepdims=True)
        var = ((res - mu) ** 2).mean(-1, keepdims=True)
        return (res - mu) / jnp.sqrt(var + LN_EPS) * p["gamma"] + p["beta"]

    x_out = encoder(params["x_enc"], x_e, x_e)
    y_out = encoder(params["y_enc"], qa_e, y_e)
    pr = params["proj"]
    h = jnp.maximum(jnp.concatenate([x_out, y_out], -1) @ pr["w1"] + pr["b1"], 0.0)
    return h @ pr["w2"] + pr["b2"]


# ---------------------------------------------------------------------------
# Parameter construction (deterministic, PyTorch-default-style init)
# ---------------------------------------------------------------------------
def _linear(key, fan_in, fan_out):
    kw, kb = jax.random.split(key)
    bound = 1.0 / jnp.sqrt(jnp.float32(fan_in))
    w = jax.random.uniform(kw, (fan_in, fan_out), jnp.float32, -bound, bound)
    b = jax.random.uniform(kb, (1, fan_out), jnp.float32, -bound, bound)
    return w, b


def init_params(key, q_num, d_model, out_size):
    keys = jax.random.split(key, 7)
    params = {
        "q_embed": jax.random.normal(keys[0], (q_num, d_model), jnp.float32),
        "a_embed": jax.random.normal(keys[1], (2, d_model), jnp.float32),
        "qa_embed": jax.random.normal(keys[2], (2 * q_num, d_model), jnp.float32),
    }

    def attn_params(kk):
        ks = jax.random.split(kk, 3)
        wqk, bqk = _linear(ks[0], d_model, d_model)
        wv, bv = _linear(ks[1], d_model, d_model)
        wo, bo = _linear(ks[2], d_model, out_size)
        return {"wqk": wqk, "bqk": bqk, "wv": wv, "bv": bv, "wo": wo, "bo": bo,
                "gamma": jnp.ones((1, out_size), jnp.float32),
                "beta": jnp.zeros((1, out_size), jnp.float32)}

    params["x_enc"] = attn_params(keys[3])
    params["y_enc"] = attn_params(keys[4])

    # proj = PositionwiseFeedForward(2*out_size, out_size, out_size)
    w1, b1 = _linear(keys[5], 2 * out_size, out_size)
    w2, b2 = _linear(keys[6], out_size, out_size)
    params["proj"] = {"w1": w1, "b1": b1, "w2": w2, "b2": b2}
    return params


# ---------------------------------------------------------------------------
if __name__ == "__main__":
    q_num = 16
    d_model = 32
    out_size = 32       # residual inside the attention layers requires out_size == d_model
    n_heads = 2
    B, S = 8, 8

    key = jax.random.PRNGKey(0)
    kp, kx, ky = jax.random.split(key, 3)
    params = init_params(kp, q_num, d_model, out_size)
    x = jax.random.randint(kx, (B, S), 0, q_num, dtype=jnp.int32)
    y = jax.random.randint(ky, (B, S), 0, 2, dtype=jnp.int32)

    fwd = jax.jit(functools.partial(context_encoder_v2_forward,
                                    q_num=q_num, n_heads=n_heads))
    out = fwd(params, x, y)
    jax.block_until_ready(out)

    assert out.shape == (B, S, out_size)
    assert bool(jnp.all(jnp.isfinite(out)))
    # Explicit tolerance vs. a pure-f32 reference (kernel uses bf16 matmul inputs
    # and an approximate reciprocal in the softmax, so the tolerance is loose).
    ref = _reference_forward(params, x, y, q_num, n_heads)
    max_err = float(jnp.max(jnp.abs(out - ref)))
    assert max_err < 0.25, f"kernel/reference mismatch: max|diff| = {max_err}"
    print("KERNEL_OK")
</pallas_src>

<mosaic_0001>
module attributes {stable_mosaic.version = 11 : i64} {
  func.func @_fused_kernel(%arg0: i32, %arg1: memref<8x8x32xf32, #tpu.memory_space<vmem>>, %arg2: memref<8x8x32xf32, #tpu.memory_space<vmem>>, %arg3: memref<8x8x32xf32, #tpu.memory_space<vmem>>, %arg4: memref<5x32x64xbf16, #tpu.memory_space<vmem>>, %arg5: memref<12x32xf32, #tpu.memory_space<vmem>>, %arg6: memref<8x8x32xf32, #tpu.memory_space<vmem>>) attributes {dimension_semantics = [#tpu.dimension_semantics<parallel>], iteration_bounds = array<i64: 1>, scalar_prefetch = 0 : i64, scratch_operands = 0 : i64, tpu.core_type = #tpu.core_type<tc>, window_params = [{transform_indices = @transform_0, window_bounds = array<i64: 8, 8, 32>}, {transform_indices = @transform_1, window_bounds = array<i64: 8, 8, 32>}, {transform_indices = @transform_2, window_bounds = array<i64: 8, 8, 32>}, {pipeline_mode = #tpu.pipeline_mode<synchronous>, transform_indices = @transform_3, window_bounds = array<i64: 5, 32, 64>}, {pipeline_mode = #tpu.pipeline_mode<synchronous>, transform_indices = @transform_4, window_bounds = array<i64: 12, 32>}, {transform_indices = @transform_5, window_bounds = array<i64: 8, 8, 32>}]} {
    %c0 = arith.constant 0 : index
    %c0_0 = arith.constant 0 : index
    %c0_1 = arith.constant 0 : index
    %0 = vector.load %arg4[%c0, %c0_0, %c0_1] : memref<5x32x64xbf16, #tpu.memory_space<vmem>>, vector<1x32x64xbf16>
    %1 = vector.shape_cast %0 : vector<1x32x64xbf16> to vector<32x64xbf16>
    %c1 = arith.constant 1 : index
    %c0_2 = arith.constant 0 : index
    %c0_3 = arith.constant 0 : index
    %2 = vector.load %arg4[%c1, %c0_2, %c0_3] : memref<5x32x64xbf16, #tpu.memory_space<vmem>>, vector<1x32x64xbf16>
    %3 = vector.shape_cast %2 : vector<1x32x64xbf16> to vector<32x64xbf16>
    %c2 = arith.constant 2 : index
    %c0_4 = arith.constant 0 : index
    %c0_5 = arith.constant 0 : index
    %4 = vector.load %arg4[%c2, %c0_4, %c0_5] : memref<5x32x64xbf16, #tpu.memory_space<vmem>>, vector<1x32x64xbf16>
    %5 = vector.shape_cast %4 : vector<1x32x64xbf16> to vector<32x64xbf16>
    %c3 = arith.constant 3 : index
    %c0_6 = arith.constant 0 : index
    %c0_7 = arith.constant 0 : index
    %6 = vector.load %arg4[%c3, %c0_6, %c0_7] : memref<5x32x64xbf16, #tpu.memory_space<vmem>>, vector<1x32x64xbf16>
    %7 = vector.shape_cast %6 : vector<1x32x64xbf16> to vector<32x64xbf16>
    %c4 = arith.constant 4 : index
    %c0_8 = arith.constant 0 : index
    %c0_9 = arith.constant 0 : index
    %8 = vector.load %arg4[%c4, %c0_8, %c0_9] : memref<5x32x64xbf16, #tpu.memory_space<vmem>>, vector<1x32x64xbf16>
    %9 = vector.shape_cast %8 : vector<1x32x64xbf16> to vector<32x64xbf16>
    %10 = vector.extract_strided_slice %9 {offsets = [0, 0], sizes = [32, 32], strides = [1, 1]} : vector<32x64xbf16> to vector<32x32xbf16>
    %c0_10 = arith.constant 0 : index
    %c0_11 = arith.constant 0 : index
    %11 = vector.load %arg5[%c0_10, %c0_11] : memref<12x32xf32, #tpu.memory_space<vmem>>, vector<1x32xf32>
    %c1_12 = arith.constant 1 : index
    %c0_13 = arith.constant 0 : index
    %12 = vector.load %arg5[%c1_12, %c0_13] : memref<12x32xf32, #tpu.memory_space<vmem>>, vector<1x32xf32>
    %c2_14 = arith.constant 2 : index
    %c0_15 = arith.constant 0 : index
    %13 = vector.load %arg5[%c2_14, %c0_15] : memref<12x32xf32, #tpu.memory_space<vmem>>, vector<1x32xf32>
    %c3_16 = arith.constant 3 : index
    %c0_17 = arith.constant 0 : index
    %14 = vector.load %arg5[%c3_16, %c0_17] : memref<12x32xf32, #tpu.memory_space<vmem>>, vector<1x32xf32>
    %c4_18 = arith.constant 4 : index
    %c0_19 = arith.constant 0 : index
    %15 = vector.load %arg5[%c4_18, %c0_19] : memref<12x32xf32, #tpu.memory_space<vmem>>, vector<1x32xf32>
    %c5 = arith.constant 5 : index
    %c0_20 = arith.constant 0 : index
    %16 = vector.load %arg5[%c5, %c0_20] : memref<12x32xf32, #tpu.memory_space<vmem>>, vector<1x32xf32>
    %c6 = arith.constant 6 : index
    %c0_21 = arith.constant 0 : index
    %17 = vector.load %arg5[%c6, %c0_21] : memref<12x32xf32, #tpu.memory_space<vmem>>, vector<1x32xf32>
    %c7 = arith.constant 7 : index
    %c0_22 = arith.constant 0 : index
    %18 = vector.load %arg5[%c7, %c0_22] : memref<12x32xf32, #tpu.memory_space<vmem>>, vector<1x32xf32>
    %c8 = arith.constant 8 : index
    %c0_23 = arith.constant 0 : index
    %19 = vector.load %arg5[%c8, %c0_23] : memref<12x32xf32, #tpu.memory_space<vmem>>, vector<1x32xf32>
    %c9 = arith.constant 9 : index
    %c0_24 = arith.constant 0 : index
    %20 = vector.load %arg5[%c9, %c0_24] : memref<12x32xf32, #tpu.memory_space<vmem>>, vector<1x32xf32>
    %c10 = arith.constant 10 : index
    %c0_25 = arith.constant 0 : index
    %21 = vector.load %arg5[%c10, %c0_25] : memref<12x32xf32, #tpu.memory_space<vmem>>, vector<1x32xf32>
    %c11 = arith.constant 11 : index
    %c0_26 = arith.constant 0 : index
    %22 = vector.load %arg5[%c11, %c0_26] : memref<12x32xf32, #tpu.memory_space<vmem>>, vector<1x32xf32>
    %c0_27 = arith.constant 0 : index
    %c0_28 = arith.constant 0 : index
    %c0_29 = arith.constant 0 : index
    %23 = vector.load %arg1[%c0_27, %c0_28, %c0_29] : memref<8x8x32xf32, #tpu.memory_space<vmem>>, vector<8x8x32xf32>
    %24 = vector.shape_cast %23 : vector<8x8x32xf32> to vector<64x32xf32>
    %c0_30 = arith.constant 0 : index
    %c0_31 = arith.constant 0 : index
    %c0_32 = arith.constant 0 : index
    %25 = vector.load %arg2[%c0_30, %c0_31, %c0_32] : memref<8x8x32xf32, #tpu.memory_space<vmem>>, vector<8x8x32xf32>
    %26 = vector.shape_cast %25 : vector<8x8x32xf32> to vector<64x32xf32>
    %c0_33 = arith.constant 0 : index
    %c0_34 = arith.constant 0 : index
    %c0_35 = arith.constant 0 : index
    %27 = vector.load %arg3[%c0_33, %c0_34, %c0_35] : memref<8x8x32xf32, #tpu.memory_space<vmem>>, vector<8x8x32xf32>
    %28 = vector.shape_cast %27 : vector<8x8x32xf32> to vector<64x32xf32>
    %29 = arith.truncf %24 : vector<64x32xf32> to vector<64x32xbf16>
    %cst = arith.constant dense<0.000000e+00> : vector<64x64xf32>
    %30 = tpu.matmul %29, %1, %cst {dimension_numbers = #tpu.dot_dimension_numbers<[1], [0], [0], [1], [0, 0, 1, 1], [], []>} : vector<64x32xbf16>, vector<32x64xbf16>, vector<64x64xf32> -> vector<64x64xf32>
    %31 = vector.extract_strided_slice %30 {offsets = [0, 0], sizes = [64, 32], strides = [1, 1]} : vector<64x64xf32> to vector<64x32xf32>
    %32 = vector.broadcast %11 : vector<1x32xf32> to vector<64x32xf32>
    %33 = arith.addf %31, %32 : vector<64x32xf32>
    %34 = vector.extract_strided_slice %30 {offsets = [0, 32], sizes = [64, 32], strides = [1, 1]} : vector<64x64xf32> to vector<64x32xf32>
    %35 = vector.broadcast %12 : vector<1x32xf32> to vector<64x32xf32>
    %36 = arith.addf %34, %35 : vector<64x32xf32>
    %37 = arith.truncf %26 : vector<64x32xf32> to vector<64x32xbf16>
    %38 = vector.extract_strided_slice %3 {offsets = [0, 0], sizes = [32, 32], strides = [1, 1]} : vector<32x64xbf16> to vector<32x32xbf16>
    %cst_36 = arith.constant dense<0.000000e+00> : vector<64x32xf32>
    %39 = tpu.matmul %37, %38, %cst_36 {dimension_numbers = #tpu.dot_dimension_numbers<[1], [0], [0], [1], [0, 0, 1, 1], [], []>} : vector<64x32xbf16>, vector<32x32xbf16>, vector<64x32xf32> -> vector<64x32xf32>
    %40 = vector.broadcast %13 : vector<1x32xf32> to vector<64x32xf32>
    %41 = arith.addf %39, %40 : vector<64x32xf32>
    %42 = arith.truncf %28 : vector<64x32xf32> to vector<64x32xbf16>
    %43 = vector.extract_strided_slice %3 {offsets = [0, 32], sizes = [32, 32], strides = [1, 1]} : vector<32x64xbf16> to vector<32x32xbf16>
    %cst_37 = arith.constant dense<0.000000e+00> : vector<64x32xf32>
    %44 = tpu.matmul %42, %43, %cst_37 {dimension_numbers = #tpu.dot_dimension_numbers<[1], [0], [0], [1], [0, 0, 1, 1], [], []>} : vector<64x32xbf16>, vector<32x32xbf16>, vector<64x32xf32> -> vector<64x32xf32>
    %45 = vector.broadcast %14 : vector<1x32xf32> to vector<64x32xf32>
    %46 = arith.addf %44, %45 : vector<64x32xf32>
    %47 = vector.extract_strided_slice %33 {offsets = [0, 0], sizes = [64, 16], strides = [1, 1]} : vector<64x32xf32> to vector<64x16xf32>
    %48 = vector.shape_cast %47 : vector<64x16xf32> to vector<8x8x16xf32>
    %49 = vector.extract_strided_slice %33 {offsets = [0, 16], sizes = [64, 16], strides = [1, 1]} : vector<64x32xf32> to vector<64x16xf32>
    %50 = vector.shape_cast %49 : vector<64x16xf32> to vector<8x8x16xf32>
    %51 = vector.extract_strided_slice %41 {offsets = [0, 0], sizes = [64, 16], strides = [1, 1]} : vector<64x32xf32> to vector<64x16xf32>
    %52 = vector.shape_cast %51 : vector<64x16xf32> to vector<8x8x16xf32>
    %53 = vector.extract_strided_slice %41 {offsets = [0, 16], sizes = [64, 16], strides = [1, 1]} : vector<64x32xf32> to vector<64x16xf32>
    %54 = vector.shape_cast %53 : vector<64x16xf32> to vector<8x8x16xf32>
    %55 = tpu.concatenate %48, %50, %52, %54 in 0 : vector<8x8x16xf32>, vector<8x8x16xf32>, vector<8x8x16xf32>, vector<8x8x16xf32> -> vector<32x8x16xf32>
    %56 = vector.extract_strided_slice %36 {offsets = [0, 0], sizes = [64, 16], strides = [1, 1]} : vector<64x32xf32> to vector<64x16xf32>
    %57 = vector.shape_cast %56 : vector<64x16xf32> to vector<8x8x16xf32>
    %58 = vector.extract_strided_slice %36 {offsets = [0, 16], sizes = [64, 16], strides = [1, 1]} : vector<64x32xf32> to vector<64x16xf32>
    %59 = vector.shape_cast %58 : vector<64x16xf32> to vector<8x8x16xf32>
    %60 = vector.extract_strided_slice %46 {offsets = [0, 0], sizes = [64, 16], strides = [1, 1]} : vector<64x32xf32> to vector<64x16xf32>
    %61 = vector.shape_cast %60 : vector<64x16xf32> to vector<8x8x16xf32>
    %62 = vector.extract_strided_slice %46 {offsets = [0, 16], sizes = [64, 16], strides = [1, 1]} : vector<64x32xf32> to vector<64x16xf32>
    %63 = vector.shape_cast %62 : vector<64x16xf32> to vector<8x8x16xf32>
    %64 = tpu.concatenate %57, %59, %61, %63 in 0 : vector<8x8x16xf32>, vector<8x8x16xf32>, vector<8x8x16xf32>, vector<8x8x16xf32> -> vector<32x8x16xf32>
    %65 = arith.truncf %55 : vector<32x8x16xf32> to vector<32x8x16xbf16>
    %66 = arith.truncf %64 : vector<32x8x16xf32> to vector<32x8x16xbf16>
    %67 = tpu.iota {dimensions = array<i32: 0>} : vector<8x8xi32>
    %68 = tpu.iota {dimensions = array<i32: 1>} : vector<8x8xi32>
    %69 = arith.cmpi sle, %68, %67 : vector<8x8xi32>
    %70 = vector.shape_cast %69 : vector<8x8xi1> to vector<1x8x8xi1>
    "tpu.trace_start"() <{level = 10 : i32, message = "gqd,gkd->gqk"}> : () -> ()
    %cst_38 = arith.constant dense<0.000000e+00> : vector<32x8x8xf32>
    %71 = tpu.matmul %65, %65, %cst_38 {dimension_numbers = #tpu.dot_dimension_numbers<[2], [2], [1], [1], [0, 0, 0, 1, 1, 1], [0], [0]>} : vector<32x8x16xbf16>, vector<32x8x16xbf16>, vector<32x8x8xf32> -> vector<32x8x8xf32>
    %cst_39 = arith.constant -1.000000e+30 : f32
    "tpu.trace_stop"() : () -> ()
    %72 = vector.shape_cast %70 : vector<1x8x8xi1> to vector<1x8x8xi1>
    %73 = vector.broadcast %72 : vector<1x8x8xi1> to vector<32x8x8xi1>
    %74 = vector.broadcast %cst_39 : f32 to vector<32x8x8xf32>
    %75 = arith.select %73, %71, %74 : vector<32x8x8xi1>, vector<32x8x8xf32>
    %cst_40 = arith.constant dense<0xFF800000> : vector<32x8xf32>
    %76 = vector.multi_reduction <maximumf>, %75, %cst_40 [2] : vector<32x8x8xf32> to vector<32x8xf32>
    %77 = vector.shape_cast %76 : vector<32x8xf32> to vector<32x8x1xf32>
    %78 = vector.broadcast %77 : vector<32x8x1xf32> to vector<32x8x8xf32>
    %79 = arith.subf %75, %78 : vector<32x8x8xf32>
    %80 = math.exp %79 : vector<32x8x8xf32>
    %cst_41 = arith.constant dense<0.000000e+00> : vector<32x8xf32>
    %81 = vector.multi_reduction <add>, %80, %cst_41 [2] : vector<32x8x8xf32> to vector<32x8xf32>
    %82 = vector.shape_cast %81 : vector<32x8xf32> to vector<32x8x1xf32>
    %83 = arith.truncf %80 : vector<32x8x8xf32> to vector<32x8x8xbf16>
    "tpu.trace_start"() <{level = 10 : i32, message = "gqk,gkd->gqd"}> : () -> ()
    %cst_42 = arith.constant dense<0.000000e+00> : vector<32x8x16xf32>
    %84 = tpu.matmul %83, %66, %cst_42 {dimension_numbers = #tpu.dot_dimension_numbers<[2], [1], [1], [2], [0, 0, 0, 1, 1, 2], [0], [0]>} : vector<32x8x8xbf16>, vector<32x8x16xbf16>, vector<32x8x16xf32> -> vector<32x8x16xf32>
    "tpu.trace_stop"() : () -> ()
    %85 = tpu.reciprocal %82 {approx = true} : vector<32x8x1xf32> -> vector<32x8x1xf32>
    %86 = vector.broadcast %85 : vector<32x8x1xf32> to vector<32x8x16xf32>
    %87 = arith.mulf %84, %86 : vector<32x8x16xf32>
    %88 = vector.extract_strided_slice %87 {offsets = [0, 0, 0], sizes = [16, 8, 16], strides = [1, 1, 1]} : vector<32x8x16xf32> to vector<16x8x16xf32>
    %89 = vector.extract_strided_slice %88 {offsets = [0, 0, 0], sizes = [8, 8, 16], strides = [1, 1, 1]} : vector<16x8x16xf32> to vector<8x8x16xf32>
    %90 = vector.shape_cast %89 : vector<8x8x16xf32> to vector<64x16xf32>
    %91 = vector.extract_strided_slice %88 {offsets = [8, 0, 0], sizes = [8, 8, 16], strides = [1, 1, 1]} : vector<16x8x16xf32> to vector<8x8x16xf32>
    %92 = vector.shape_cast %91 : vector<8x8x16xf32> to vector<64x16xf32>
    %93 = tpu.concatenate %90, %92 in 1 : vector<64x16xf32>, vector<64x16xf32> -> vector<64x32xf32>
    %94 = vector.extract_strided_slice %87 {offsets = [16, 0, 0], sizes = [16, 8, 16], strides = [1, 1, 1]} : vector<32x8x16xf32> to vector<16x8x16xf32>
    %95 = vector.extract_strided_slice %94 {offsets = [0, 0, 0], sizes = [8, 8, 16], strides = [1, 1, 1]} : vector<16x8x16xf32> to vector<8x8x16xf32>
    %96 = vector.shape_cast %95 : vector<8x8x16xf32> to vector<64x16xf32>
    %97 = vector.extract_strided_slice %94 {offsets = [8, 0, 0], sizes = [8, 8, 16], strides = [1, 1, 1]} : vector<16x8x16xf32> to vector<8x8x16xf32>
    %98 = vector.shape_cast %97 : vector<8x8x16xf32> to vector<64x16xf32>
    %99 = tpu.concatenate %96, %98 in 1 : vector<64x16xf32>, vector<64x16xf32> -> vector<64x32xf32>
    %100 = vector.extract_strided_slice %5 {offsets = [0, 0], sizes = [32, 32], strides = [1, 1]} : vector<32x64xbf16> to vector<32x32xbf16>
    %101 = arith.truncf %93 : vector<64x32xf32> to vector<64x32xbf16>
    %cst_43 = arith.constant dense<0.000000e+00> : vector<64x32xf32>
    %102 = tpu.matmul %101, %100, %cst_43 {dimension_numbers = #tpu.dot_dimension_numbers<[1], [0], [0], [1], [0, 0, 1, 1], [], []>} : vector<64x32xbf16>, vector<32x32xbf16>, vector<64x32xf32> -> vector<64x32xf32>
    %103 = vector.broadcast %15 : vector<1x32xf32> to vector<64x32xf32>
    %104 = arith.addf %102, %103 : vector<64x32xf32>
    %105 = arith.addf %24, %104 : vector<64x32xf32>
    %cst_44 = arith.constant dense<0.000000e+00> : vector<64xf32>
    %106 = vector.multi_reduction <add>, %105, %cst_44 [1] : vector<64x32xf32> to vector<64xf32>
    %107 = vector.shape_cast %106 : vector<64xf32> to vector<64x1xf32>
    %cst_45 = arith.constant 3.200000e+01 : f32
    %108 = vector.broadcast %cst_45 : f32 to vector<64x1xf32>
    %109 = arith.divf %107, %108 : vector<64x1xf32>
    %110 = vector.broadcast %109 : vector<64x1xf32> to vector<64x32xf32>
    %111 = arith.subf %105, %110 : vector<64x32xf32>
    %112 = arith.mulf %111, %111 : vector<64x32xf32>
    %cst_46 = arith.constant dense<0.000000e+00> : vector<64xf32>
    %113 = vector.multi_reduction <add>, %112, %cst_46 [1] : vector<64x32xf32> to vector<64xf32>
    %114 = vector.shape_cast %113 : vector<64xf32> to vector<64x1xf32>
    %cst_47 = arith.constant 3.200000e+01 : f32
    %115 = vector.broadcast %cst_47 : f32 to vector<64x1xf32>
    %116 = arith.divf %114, %115 : vector<64x1xf32>
    %117 = vector.broadcast %109 : vector<64x1xf32> to vector<64x32xf32>
    %118 = arith.subf %105, %117 : vector<64x32xf32>
    %cst_48 = arith.constant 9.99999974E-6 : f32
    %119 = vector.broadcast %cst_48 : f32 to vector<64x1xf32>
    %120 = arith.addf %116, %119 : vector<64x1xf32>
    %121 = math.rsqrt %120 : vector<64x1xf32>
    %122 = vector.broadcast %121 : vector<64x1xf32> to vector<64x32xf32>
    %123 = arith.mulf %118, %122 : vector<64x32xf32>
    %124 = vector.broadcast %17 : vector<1x32xf32> to vector<64x32xf32>
    %125 = arith.mulf %123, %124 : vector<64x32xf32>
    %126 = vector.broadcast %18 : vector<1x32xf32> to vector<64x32xf32>
    %127 = arith.addf %125, %126 : vector<64x32xf32>
    %128 = vector.extract_strided_slice %5 {offsets = [0, 32], sizes = [32, 32], strides = [1, 1]} : vector<32x64xbf16> to vector<32x32xbf16>
    %129 = arith.truncf %99 : vector<64x32xf32> to vector<64x32xbf16>
    %cst_49 = arith.constant dense<0.000000e+00> : vector<64x32xf32>
    %130 = tpu.matmul %129, %128, %cst_49 {dimension_numbers = #tpu.dot_dimension_numbers<[1], [0], [0], [1], [0, 0, 1, 1], [], []>} : vector<64x32xbf16>, vector<32x32xbf16>, vector<64x32xf32> -> vector<64x32xf32>
    %131 = vector.broadcast %16 : vector<1x32xf32> to vector<64x32xf32>
    %132 = arith.addf %130, %131 : vector<64x32xf32>
    %133 = arith.addf %26, %132 : vector<64x32xf32>
    %cst_50 = arith.constant dense<0.000000e+00> : vector<64xf32>
    %134 = vector.multi_reduction <add>, %133, %cst_50 [1] : vector<64x32xf32> to vector<64xf32>
    %135 = vector.shape_cast %134 : vector<64xf32> to vector<64x1xf32>
    %cst_51 = arith.constant 3.200000e+01 : f32
    %136 = vector.broadcast %cst_51 : f32 to vector<64x1xf32>
    %137 = arith.divf %135, %136 : vector<64x1xf32>
    %138 = vector.broadcast %137 : vector<64x1xf32> to vector<64x32xf32>
    %139 = arith.subf %133, %138 : vector<64x32xf32>
    %140 = arith.mulf %139, %139 : vector<64x32xf32>
    %cst_52 = arith.constant dense<0.000000e+00> : vector<64xf32>
    %141 = vector.multi_reduction <add>, %140, %cst_52 [1] : vector<64x32xf32> to vector<64xf32>
    %142 = vector.shape_cast %141 : vector<64xf32> to vector<64x1xf32>
    %cst_53 = arith.constant 3.200000e+01 : f32
    %143 = vector.broadcast %cst_53 : f32 to vector<64x1xf32>
    %144 = arith.divf %142, %143 : vector<64x1xf32>
    %145 = vector.broadcast %137 : vector<64x1xf32> to vector<64x32xf32>
    %146 = arith.subf %133, %145 : vector<64x32xf32>
    %cst_54 = arith.constant 9.99999974E-6 : f32
    %147 = vector.broadcast %cst_54 : f32 to vector<64x1xf32>
    %148 = arith.addf %144, %147 : vector<64x1xf32>
    %149 = math.rsqrt %148 : vector<64x1xf32>
    %150 = vector.broadcast %149 : vector<64x1xf32> to vector<64x32xf32>
    %151 = arith.mulf %146, %150 : vector<64x32xf32>
    %152 = vector.broadcast %19 : vector<1x32xf32> to vector<64x32xf32>
    %153 = arith.mulf %151, %152 : vector<64x32xf32>
    %154 = vector.broadcast %20 : vector<1x32xf32> to vector<64x32xf32>
    %155 = arith.addf %153, %154 : vector<64x32xf32>
    %156 = arith.truncf %127 : vector<64x32xf32> to vector<64x32xbf16>
    %157 = vector.extract_strided_slice %7 {offsets = [0, 0], sizes = [32, 32], strides = [1, 1]} : vector<32x64xbf16> to vector<32x32xbf16>
    %cst_55 = arith.constant dense<0.000000e+00> : vector<64x32xf32>
    %158 = tpu.matmul %156, %157, %cst_55 {dimension_numbers = #tpu.dot_dimension_numbers<[1], [0], [0], [1], [0, 0, 1, 1], [], []>} : vector<64x32xbf16>, vector<32x32xbf16>, vector<64x32xf32> -> vector<64x32xf32>
    %159 = arith.truncf %155 : vector<64x32xf32> to vector<64x32xbf16>
    %160 = vector.extract_strided_slice %7 {offsets = [0, 32], sizes = [32, 32], strides = [1, 1]} : vector<32x64xbf16> to vector<32x32xbf16>
    %cst_56 = arith.constant dense<0.000000e+00> : vector<64x32xf32>
    %161 = tpu.matmul %159, %160, %cst_56 {dimension_numbers = #tpu.dot_dimension_numbers<[1], [0], [0], [1], [0, 0, 1, 1], [], []>} : vector<64x32xbf16>, vector<32x32xbf16>, vector<64x32xf32> -> vector<64x32xf32>
    %162 = arith.addf %158, %161 : vector<64x32xf32>
    %163 = vector.broadcast %21 : vector<1x32xf32> to vector<64x32xf32>
    %164 = arith.addf %162, %163 : vector<64x32xf32>
    %cst_57 = arith.constant 0.000000e+00 : f32
    %165 = vector.broadcast %cst_57 : f32 to vector<64x32xf32>
    %166 = arith.maximumf %164, %165 : vector<64x32xf32>
    %167 = arith.truncf %166 : vector<64x32xf32> to vector<64x32xbf16>
    %cst_58 = arith.constant dense<0.000000e+00> : vector<64x32xf32>
    %168 = tpu.matmul %167, %10, %cst_58 {dimension_numbers = #tpu.dot_dimension_numbers<[1], [0], [0], [1], [0, 0, 1, 1], [], []>} : vector<64x32xbf16>, vector<32x32xbf16>, vector<64x32xf32> -> vector<64x32xf32>
    %169 = vector.broadcast %22 : vector<1x32xf32> to vector<64x32xf32>
    %170 = arith.addf %168, %169 : vector<64x32xf32>
    %171 = vector.shape_cast %170 : vector<64x32xf32> to vector<8x8x32xf32>
    %c0_59 = arith.constant 0 : index
    %c0_60 = arith.constant 0 : index
    %c0_61 = arith.constant 0 : index
    %172 = vector.load %arg6[%c0_59, %c0_60, %c0_61] : memref<8x8x32xf32, #tpu.memory_space<vmem>>, vector<8x8x32xf32>
    tpu.vector_store %arg6[%c0_59, %c0_60, %c0_61], %171 {strides = array<i32>} : memref<8x8x32xf32, #tpu.memory_space<vmem>>, vector<8x8x32xf32>,
    return
  }
  func.func @transform_0(%arg0: i32) -> (i32, i32, i32) {
    %c0_i32 = arith.constant 0 : i32
    %c0_i32_0 = arith.constant 0 : i32
    %c0_i32_1 = arith.constant 0 : i32
    return %arg0, %c0_i32, %c0_i32_0 : i32, i32, i32
  }
  func.func @transform_1(%arg0: i32) -> (i32, i32, i32) {
    %c0_i32 = arith.constant 0 : i32
    %c0_i32_0 = arith.constant 0 : i32
    %c0_i32_1 = arith.constant 0 : i32
    return %arg0, %c0_i32, %c0_i32_0 : i32, i32, i32
  }
  func.func @transform_2(%arg0: i32) -> (i32, i32, i32) {
    %c0_i32 = arith.constant 0 : i32
    %c0_i32_0 = arith.constant 0 : i32
    %c0_i32_1 = arith.constant 0 : i32
    return %arg0, %c0_i32, %c0_i32_0 : i32, i32, i32
  }
  func.func @transform_3(%arg0: i32) -> (i32, i32, i32) {
    %c0_i32 = arith.constant 0 : i32
    %c0_i32_0 = arith.constant 0 : i32
    %c0_i32_1 = arith.constant 0 : i32
    %c0_i32_2 = arith.constant 0 : i32
    return %c0_i32, %c0_i32_0, %c0_i32_1 : i32, i32, i32
  }
  func.func @transform_4(%arg0: i32) -> (i32, i32) {
    %c0_i32 = arith.constant 0 : i32
    %c0_i32_0 = arith.constant 0 : i32
    %c0_i32_1 = arith.constant 0 : i32
    return %c0_i32, %c0_i32_0 : i32, i32
  }
  func.func @transform_5(%arg0: i32) -> (i32, i32, i32) {
    %c0_i32 = arith.constant 0 : i32
    %c0_i32_0 = arith.constant 0 : i32
    %c0_i32_1 = arith.constant 0 : i32
    return %arg0, %c0_i32, %c0_i32_0 : i32, i32, i32
  }
}

</mosaic_0001>

<llo_original>
// kernel: context_encoder_v2_forward.1
$region0: #{context_encoder_v2_forward.1}
  #allocation0 [shape = 'u32[]', space=smem, size = 0x4, offset = 0x4, fixed_abs, tag = 'smem constant byte address 0x4 - core index']
  #allocation1 [shape = 'u32[144,128]{1,0:T(1,128)}', space=vmem, size = 0x12000, scoped, tag = 'internal scratch']
  %s0 = inlined_call_operand.vmem [shape: f32[8,8,32], index: 0, kind: input, shape index: {}]
  %s1 = inlined_call_operand.vmem [shape: f32[8,8,32], index: 1, kind: input, shape index: {}]
  %s2 = inlined_call_operand.vmem [shape: f32[8,8,32], index: 2, kind: input, shape index: {}]
  %s3 = inlined_call_operand.vmem [shape: bf16[5,32,64], index: 3, kind: input, shape index: {}]
  %s4 = inlined_call_operand.vmem [shape: f32[12,32], index: 4, kind: input, shape index: {}]
  %s5 = inlined_call_operand.hbm [shape: f32[8,8,32], index: 5, kind: output, shape index: {}]
  %s6 = sld [smem:[#allocation0]]
  $region30: #{context_encoder_v2_forward.1} parent=0
    _
  %s8 = ssub.s32 1, %s6
  %s9 = scalar_select 0, %s8, %s6
  $region1: #{context_encoder_v2_forward.1} parent=0
    #allocation2 [shape = 'u8[32768]{0}', space=vmem, size = 0x8000, scoped, tag = 'output window, operand 0, single buffered']
    #allocation3 [shape = 's32[1]{0}', space=sflag, size = 0x4, scoped, tag = 'scoped memory for context_encoder_v2_forward.1']
    %10 = vsyncpa [#allocation3], 0
    // Predicated region
    $region2: #{context_encoder_v2_forward.1} parent=1 // pred_check
      _
    $region3: #{context_encoder_v2_forward.1} parent=1 // pred_check_branch
      %12 = sbr.rel (0) target = $region5
    $region4: #{context_encoder_v2_forward.1} parent=1 // pred_region
      _
    $region5: #{context_encoder_v2_forward.1} parent=1 // pred_fallthru
      _
    // Predicated region
    $region6: #{context_encoder_v2_forward.1} parent=1 // pred_check
      _
    $region7: #{context_encoder_v2_forward.1} parent=1 // pred_check_branch
      %14 = sbr.rel (0) target = $region9
    $region8: #{context_encoder_v2_forward.1} parent=1 // pred_region
      _
    $region9: #{context_encoder_v2_forward.1} parent=1 // pred_fallthru
      _
    // Predicated region
    $region10: #{context_encoder_v2_forward.1} parent=1 // pred_check
      _
    $region11: #{context_encoder_v2_forward.1} parent=1 // pred_check_branch
      %16 = sbr.rel (0) target = $region13
    $region12: #{context_encoder_v2_forward.1} parent=1 // pred_region
      _
    $region13: #{context_encoder_v2_forward.1} parent=1 // pred_fallthru
      _
    // Predicated region
    $region14: #{context_encoder_v2_forward.1} parent=1 // pred_check
      _
    $region15: #{context_encoder_v2_forward.1} parent=1 // pred_check_branch
      %18 = sbr.rel (0) target = $region17
    $region16: #{context_encoder_v2_forward.1} parent=1 // pred_region
      _
    $region17: #{context_encoder_v2_forward.1} parent=1 // pred_fallthru
      _
    // Predicated region
    $region18: #{context_encoder_v2_forward.1} parent=1 // pred_check
      _
    $region19: #{context_encoder_v2_forward.1} parent=1 // pred_check_branch
      %20 = sbr.rel (0) target = $region21
    $region20: #{context_encoder_v2_forward.1} parent=1 // pred_region
      _
    $region21: #{context_encoder_v2_forward.1} parent=1 // pred_fallthru
      _
    %v22 = vld [vmem:[%s3] sm:$0xf]
    %v23 = vld [vmem:[%s3 + $0x4] sm:$0xf]
    %v24 = vld [vmem:[%s3 + $0x8] sm:$0xf]
    %v25 = vld [vmem:[%s3 + $0xc] sm:$0xf]
    %s26 = scalar_lea.vmem %s3, 16
    %v27 = vld [vmem:[%s26] sm:$0xf]
    %v28 = vld [vmem:[%s26 + $0x4] sm:$0xf]
    %v29 = vld [vmem:[%s26 + $0x8] sm:$0xf]
    %v30 = vld [vmem:[%s26 + $0xc] sm:$0xf]
    %s31 = scalar_lea.vmem %s3, 32
    %v32 = vld [vmem:[%s31] sm:$0xf]
    %v33 = vld [vmem:[%s31 + $0x4] sm:$0xf]
    %v34 = vld [vmem:[%s31 + $0x8] sm:$0xf]
    %v35 = vld [vmem:[%s31 + $0xc] sm:$0xf]
    %s36 = scalar_lea.vmem %s3, 48
    %v37 = vld [vmem:[%s36] sm:$0xf]
    %v38 = vld [vmem:[%s36 + $0x4] sm:$0xf]
    %v39 = vld [vmem:[%s36 + $0x8] sm:$0xf]
    %v40 = vld [vmem:[%s36 + $0xc] sm:$0xf]
    %s41 = scalar_lea.vmem %s3, 64
    %v42 = vld [vmem:[%s41] sm:$0xf]
    %v43 = vld [vmem:[%s41 + $0x4] sm:$0xf]
    %v44 = vld [vmem:[%s41 + $0x8] sm:$0xf]
    %v45 = vld [vmem:[%s41 + $0xc] sm:$0xf]
    %v46 = vld [vmem:[%s4] sm:$0x1]
    %v47 = vld [vmem:[%s4 + $0x1] sm:$0x1]
    %v48 = vld [vmem:[%s4 + $0x2] sm:$0x1]
    %v49 = vld [vmem:[%s4 + $0x3] sm:$0x1]
    %v50 = vld [vmem:[%s4 + $0x4] sm:$0x1]
    %v51 = vld [vmem:[%s4 + $0x5] sm:$0x1]
    %v52 = vld [vmem:[%s4 + $0x6] sm:$0x1]
    %v53 = vld [vmem:[%s4 + $0x7] sm:$0x1]
    %v54 = vld [vmem:[%s4 + $0x8] sm:$0x1]
    %v55 = vld [vmem:[%s4 + $0x9] sm:$0x1]
    %v56 = vld [vmem:[%s4 + $0xa] sm:$0x1]
    %v57 = vld [vmem:[%s4 + $0xb] sm:$0x1]
    %v58 = vld [vmem:[%s0] sm:$0xff]
    %v59 = vld [vmem:[%s0 + $0x8] sm:$0xff]
    %v60 = vld [vmem:[%s0 + $0x10] sm:$0xff]
    %v61 = vld [vmem:[%s0 + $0x18] sm:$0xff]
    %v62 = vld [vmem:[%s0 + $0x20] sm:$0xff]
    %v63 = vld [vmem:[%s0 + $0x28] sm:$0xff]
    %v64 = vld [vmem:[%s0 + $0x30] sm:$0xff]
    %v65 = vld [vmem:[%s0 + $0x38] sm:$0xff]
    %v66 = vld [vmem:[%s1] sm:$0xff]
    %v67 = vld [vmem:[%s1 + $0x8] sm:$0xff]
    %v68 = vld [vmem:[%s1 + $0x10] sm:$0xff]
    %v69 = vld [vmem:[%s1 + $0x18] sm:$0xff]
    %v70 = vld [vmem:[%s1 + $0x20] sm:$0xff]
    %v71 = vld [vmem:[%s1 + $0x28] sm:$0xff]
    %v72 = vld [vmem:[%s1 + $0x30] sm:$0xff]
    %v73 = vld [vmem:[%s1 + $0x38] sm:$0xff]
    %v74 = vld [vmem:[%s2] sm:$0xff]
    %v75 = vld [vmem:[%s2 + $0x8] sm:$0xff]
    %v76 = vld [vmem:[%s2 + $0x10] sm:$0xff]
    %v77 = vld [vmem:[%s2 + $0x18] sm:$0xff]
    %v78 = vld [vmem:[%s2 + $0x20] sm:$0xff]
    %v79 = vld [vmem:[%s2 + $0x28] sm:$0xff]
    %v80 = vld [vmem:[%s2 + $0x30] sm:$0xff]
    %v81 = vld [vmem:[%s2 + $0x38] sm:$0xff]
    %v82 = vpack.c.bf16 %v59, %v58
    %v83 = vpack.c.bf16 %v61, %v60
    %v84 = vpack.c.bf16 %v63, %v62
    %v85 = vpack.c.bf16 %v65, %v64
    %v90 = vunpack.c.l.b16 %v22
    %v91 = vunpack.c.l.b16 %v23
    %v92 = vunpack.c.l.b16 %v24
    %v93 = vunpack.c.l.b16 %v25
    %v94 = vpack.c.b16 %v91, %v90
    %v95 = vpack.c.b16 %v93, %v92
    %vm98 = vcmask 261120
    %v100 = vsel %vm98, %v82, 0
    %v103 = vsel %vm98, %v83, 0
    %v106 = vsel %vm98, %v84, 0
    %v109 = vsel %vm98, %v85, 0
    %111 = vmatprep.subr.bf16.mxu0 0
    %112 = vmatpush1.bf16.msra.mxu0 0
    %113 = vmatprep.subr.bf16.mxu0 0
    %114 = vmatpush1.bf16.msra.mxu0 0
    %115 = vmatprep.subr.bf16.mxu0 0
    %116 = vmatpush1.bf16.msra.mxu0 0
    %117 = vmatprep.subr.bf16.mxu0 0
    %118 = vmatpush1.bf16.msra.mxu0 0
    %119 = vmatprep.subr.bf16.mxu0 0
    %120 = vmatpush1.bf16.msra.mxu0 0
    %121 = vmatprep.subr.bf16.mxu0 0
    %122 = vmatpush1.bf16.msra.mxu0 0
    %123 = vmatprep.subr.bf16.mxu0 0
    %124 = vmatpush1.bf16.msra.mxu0 %v95
    %125 = vmatprep.subr.bf16.mxu0 0
    %126 = vmatpush1.bf16.msra.mxu0 %v94
    %127 = vmatprep.subr.bf16.mxu0 0
    %128 = vmatpush2.bf16.msra.mxu0 0
    %129 = vmatprep.subr.bf16.mxu0 0
    %130 = vmatpush2.bf16.msra.mxu0 0
    %131 = vmatprep.subr.bf16.mxu0 0
    %132 = vmatpush2.bf16.msra.mxu0 0
    %133 = vmatprep.subr.bf16.mxu0 0
    %134 = vmatpush2.bf16.msra.mxu0 0
    %135 = vmatprep.subr.bf16.mxu0 0
    %136 = vmatpush2.bf16.msra.mxu0 0
    %137 = vmatprep.subr.bf16.mxu0 0
    %138 = vmatpush2.bf16.msra.mxu0 0
    %139 = vmatprep.subr.bf16.mxu0 0
    %140 = vmatpush2.bf16.msra.mxu0 0
    %141 = vmatprep.subr.bf16.mxu0 0
    %142 = vmatpush2.bf16.msra.mxu0 0
    %143 = vmatprep.mubr.bf16.mxu0 0
    %144 = vmatmul.mubr.bf16.gmra.mxu0 %v100
    %v145 = vpop.f32.mrf.mxu0
    %v146 = vadd.f32 0.0, %v145
    %v147 = vpop.f32.mrf.mxu0
    %v148 = vpop.f32.mrf.mxu0
    %v149 = vadd.f32 0.0, %v148
    %v150 = vpop.f32.mrf.mxu0
    %151 = vmatprep.mubr.bf16.mxu0 0
    %152 = vmatmul.mubr.bf16.gmra.mxu0 %v103
    %v153 = vpop.f32.mrf.mxu0
    %v154 = vadd.f32 0.0, %v153
    %v155 = vpop.f32.mrf.mxu0
    %v156 = vpop.f32.mrf.mxu0
    %v157 = vadd.f32 0.0, %v156
    %v158 = vpop.f32.mrf.mxu0
    %159 = vmatprep.mubr.bf16.mxu0 0
    %160 = vmatmul.mubr.bf16.gmra.mxu0 %v106
    %v161 = vpop.f32.mrf.mxu0
    %v162 = vadd.f32 0.0, %v161
    %v163 = vpop.f32.mrf.mxu0
    %v164 = vpop.f32.mrf.mxu0
    %v165 = vadd.f32 0.0, %v164
    %v166 = vpop.f32.mrf.mxu0
    %167 = vmatprep.mubr.bf16.mxu0 0
    %168 = vmatmul.mubr.bf16.gmra.mxu0 %v109
    %v169 = vpop.f32.mrf.mxu0
    %v170 = vadd.f32 0.0, %v169
    %v171 = vpop.f32.mrf.mxu0
    %v172 = vpop.f32.mrf.mxu0
    %v173 = vadd.f32 0.0, %v172
    %v174 = vpop.f32.mrf.mxu0
    %175 = vdwg.mxu0
    %v176 = vlaneseq
    %v177 = vshrl.u32 %v176, 7
    %v178 = vsub.s32 0, %v177
    %v179 = vrot.slane %v46, %v178
    %v180 = vadd.f32 %v146, %v179
    %v181 = vadd.f32 %v149, %v179
    %v182 = vadd.f32 %v154, %v179
    %v183 = vadd.f32 %v157, %v179
    %v184 = vadd.f32 %v162, %v179
    %v185 = vadd.f32 %v165, %v179
    %v186 = vadd.f32 %v170, %v179
    %v187 = vadd.f32 %v173, %v179
    %v188 = vlaneseq
    %v189 = vshrl.u32 %v188, 7
    %v190 = vsub.s32 0, %v189
    %v191 = vrot.slane %v47, %v190
    %193 = vrot.lane.b32.xlu0 %v191, 32
    %v194 = vpop.permute.xlu0 %193
    %v196 = vadd.f32 %v146, %v194
    %v197 = vadd.f32 %v149, %v194
    %v198 = vadd.f32 %v154, %v194
    %v199 = vadd.f32 %v157, %v194
    %v200 = vadd.f32 %v162, %v194
    %v201 = vadd.f32 %v165, %v194
    %v202 = vadd.f32 %v170, %v194
    %v203 = vadd.f32 %v173, %v194
    %v204 = vpack.c.bf16 %v67, %v66
    %v205 = vpack.c.bf16 %v69, %v68
    %v206 = vpack.c.bf16 %v71, %v70
    %v207 = vpack.c.bf16 %v73, %v72
    %v208 = vlaneseq
    %v209 = vshrl.u32 %v208, 7
    %v210 = vsub.s32 0, %v209
    %v211 = vrot.slane %v48, %v210
    %v216 = vunpack.c.l.b16 %v27
    %v217 = vunpack.c.l.b16 %v28
    %v218 = vunpack.c.l.b16 %v29
    %v219 = vunpack.c.l.b16 %v30
    %v220 = vpack.c.b16 %v217, %v216
    %v221 = vpack.c.b16 %v219, %v218
    %v225 = vsel %vm98, %v204, 0
    %v228 = vsel %vm98, %v205, 0
    %v231 = vsel %vm98, %v206, 0
    %v234 = vsel %vm98, %v207, 0
    %236 = vmatprep.subr.bf16.mxu0 0
    %237 = vmatpush1.bf16.msra.mxu0 0
    %238 = vmatprep.subr.bf16.mxu0 0
    %239 = vmatpush1.bf16.msra.mxu0 0
    %240 = vmatprep.subr.bf16.mxu0 0
    %241 = vmatpush1.bf16.msra.mxu0 0
    %242 = vmatprep.subr.bf16.mxu0 0
    %243 = vmatpush1.bf16.msra.mxu0 0
    %244 = vmatprep.subr.bf16.mxu0 0
    %245 = vmatpush1.bf16.msra.mxu0 0
    %246 = vmatprep.subr.bf16.mxu0 0
    %247 = vmatpush1.bf16.msra.mxu0 0
    %248 = vmatprep.subr.bf16.mxu0 0
    %249 = vmatpush1.bf16.msra.mxu0 %v221
    %250 = vmatprep.subr.bf16.mxu0 0
    %251 = vmatpush1.bf16.msra.mxu0 %v220
    %252 = vmatprep.subr.bf16.mxu0 0
    %253 = vmatpush2.bf16.msra.mxu0 0
    %254 = vmatprep.subr.bf16.mxu0 0
    %255 = vmatpush2.bf16.msra.mxu0 0
    %256 = vmatprep.subr.bf16.mxu0 0
    %257 = vmatpush2.bf16.msra.mxu0 0
    %258 = vmatprep.subr.bf16.mxu0 0
    %259 = vmatpush2.bf16.msra.mxu0 0
    %260 = vmatprep.subr.bf16.mxu0 0
    %261 = vmatpush2.bf16.msra.mxu0 0
    %262 = vmatprep.subr.bf16.mxu0 0
    %263 = vmatpush2.bf16.msra.mxu0 0
    %264 = vmatprep.subr.bf16.mxu0 0
    %265 = vmatpush2.bf16.msra.mxu0 0
    %266 = vmatprep.subr.bf16.mxu0 0
    %267 = vmatpush2.bf16.msra.mxu0 0
    %268 = vmatprep.mubr.bf16.mxu0 0
    %269 = vmatmul.mubr.bf16.gmra.mxu0 %v225
    %v270 = vpop.f32.mrf.mxu0
    %v271 = vadd.f32 %v211, %v270
    %v272 = vpop.f32.mrf.mxu0
    %v273 = vpop.f32.mrf.mxu0
    %v274 = vadd.f32 %v211, %v273
    %v275 = vpop.f32.mrf.mxu0
    %276 = vmatprep.mubr.bf16.mxu0 0
    %277 = vmatmul.mubr.bf16.gmra.mxu0 %v228
    %v278 = vpop.f32.mrf.mxu0
    %v279 = vadd.f32 %v211, %v278
    %v280 = vpop.f32.mrf.mxu0
    %v281 = vpop.f32.mrf.mxu0
    %v282 = vadd.f32 %v211, %v281
    %v283 = vpop.f32.mrf.mxu0
    %284 = vmatprep.mubr.bf16.mxu0 0
    %285 = vmatmul.mubr.bf16.gmra.mxu0 %v231
    %v286 = vpop.f32.mrf.mxu0
    %v287 = vadd.f32 %v211, %v286
    %v288 = vpop.f32.mrf.mxu0
    %v289 = vpop.f32.mrf.mxu0
    %v290 = vadd.f32 %v211, %v289
    %v291 = vpop.f32.mrf.mxu0
    %292 = vmatprep.mubr.bf16.mxu0 0
    %293 = vmatmul.mubr.bf16.gmra.mxu0 %v234
    %v294 = vpop.f32.mrf.mxu0
    %v295 = vadd.f32 %v211, %v294
    %v296 = vpop.f32.mrf.mxu0
    %v297 = vpop.f32.mrf.mxu0
    %v298 = vadd.f32 %v211, %v297
    %v299 = vpop.f32.mrf.mxu0
    %300 = vdwg.mxu0
    %v301 = vpack.c.bf16 %v75, %v74
    %v302 = vpack.c.bf16 %v77, %v76
    %v303 = vpack.c.bf16 %v79, %v78
    %v304 = vpack.c.bf16 %v81, %v80
    %v305 = vlaneseq
    %v306 = vshrl.u32 %v305, 7
    %v307 = vsub.s32 0, %v306
    %v308 = vrot.slane %v49, %v307
    %309 = vrot.lane.b32.xlu0 %v220, 96
    %v310 = vpop.permute.xlu0 %309
    %311 = vrot.lane.b32.xlu0 %v221, 96
    %v312 = vpop.permute.xlu0 %311
    %v316 = vsel %vm98, %v301, 0
    %v319 = vsel %vm98, %v302, 0
    %v322 = vsel %vm98, %v303, 0
    %v325 = vsel %vm98, %v304, 0
    %327 = vmatprep.subr.bf16.mxu0 0
    %328 = vmatpush1.bf16.msra.mxu0 0
    %329 = vmatprep.subr.bf16.mxu0 0
    %330 = vmatpush1.bf16.msra.mxu0 0
    %331 = vmatprep.subr.bf16.mxu0 0
    %332 = vmatpush1.bf16.msra.mxu0 0
    %333 = vmatprep.subr.bf16.mxu0 0
    %334 = vmatpush1.bf16.msra.mxu0 0
    %335 = vmatprep.subr.bf16.mxu0 0
    %336 = vmatpush1.bf16.msra.mxu0 0
    %337 = vmatprep.subr.bf16.mxu0 0
    %338 = vmatpush1.bf16.msra.mxu0 0
    %339 = vmatprep.subr.bf16.mxu0 0
    %340 = vmatpush1.bf16.msra.mxu0 %v312
    %341 = vmatprep.subr.bf16.mxu0 0
    %342 = vmatpush1.bf16.msra.mxu0 %v310
    %343 = vmatprep.subr.bf16.mxu0 0
    %344 = vmatpush2.bf16.msra.mxu0 0
    %345 = vmatprep.subr.bf16.mxu0 0
    %346 = vmatpush2.bf16.msra.mxu0 0
    %347 = vmatprep.subr.bf16.mxu0 0
    %348 = vmatpush2.bf16.msra.mxu0 0
    %349 = vmatprep.subr.bf16.mxu0 0
    %350 = vmatpush2.bf16.msra.mxu0 0
    %351 = vmatprep.subr.bf16.mxu0 0
    %352 = vmatpush2.bf16.msra.mxu0 0
    %353 = vmatprep.subr.bf16.mxu0 0
    %354 = vmatpush2.bf16.msra.mxu0 0
    %355 = vmatprep.subr.bf16.mxu0 0
    %356 = vmatpush2.bf16.msra.mxu0 0
    %357 = vmatprep.subr.bf16.mxu0 0
    %358 = vmatpush2.bf16.msra.mxu0 0
    %359 = vmatprep.mubr.bf16.mxu0 0
    %360 = vmatmul.mubr.bf16.gmra.mxu0 %v316
    %v361 = vpop.f32.mrf.mxu0
    %v362 = vadd.f32 %v308, %v361
    %v363 = vpop.f32.mrf.mxu0
    %v364 = vpop.f32.mrf.mxu0
    %v365 = vadd.f32 %v308, %v364
    %v366 = vpop.f32.mrf.mxu0
    %367 = vmatprep.mubr.bf16.mxu0 0
    %368 = vmatmul.mubr.bf16.gmra.mxu0 %v319
    %v369 = vpop.f32.mrf.mxu0
    %v370 = vadd.f32 %v308, %v369
    %v371 = vpop.f32.mrf.mxu0
    %v372 = vpop.f32.mrf.mxu0
    %v373 = vadd.f32 %v308, %v372
    %v374 = vpop.f32.mrf.mxu0
    %375 = vmatprep.mubr.bf16.mxu0 0
    %376 = vmatmul.mubr.bf16.gmra.mxu0 %v322
    %v377 = vpop.f32.mrf.mxu0
    %v378 = vadd.f32 %v308, %v377
    %v379 = vpop.f32.mrf.mxu0
    %v380 = vpop.f32.mrf.mxu0
    %v381 = vadd.f32 %v308, %v380
    %v382 = vpop.f32.mrf.mxu0
    %383 = vmatprep.mubr.bf16.mxu0 0
    %384 = vmatmul.mubr.bf16.gmra.mxu0 %v325
    %v385 = vpop.f32.mrf.mxu0
    %v386 = vadd.f32 %v308, %v385
    %v387 = vpop.f32.mrf.mxu0
    %v388 = vpop.f32.mrf.mxu0
    %v389 = vadd.f32 %v308, %v388
    %v390 = vpop.f32.mrf.mxu0
    %391 = vdwg.mxu0
    %400 = vrot.lane.b32.xlu0 %v180, 112
    %v401 = vpop.permute.xlu0 %400
    %402 = vrot.lane.b32.xlu0 %v181, 112
    %v403 = vpop.permute.xlu0 %402
    %404 = vrot.lane.b32.xlu0 %v182, 112
    %v405 = vpop.permute.xlu0 %404
    %406 = vrot.lane.b32.xlu0 %v183, 112
    %v407 = vpop.permute.xlu0 %406
    %408 = vrot.lane.b32.xlu0 %v184, 112
    %v409 = vpop.permute.xlu0 %408
    %410 = vrot.lane.b32.xlu0 %v185, 112
    %v411 = vpop.permute.xlu0 %410
    %412 = vrot.lane.b32.xlu0 %v186, 112
    %v413 = vpop.permute.xlu0 %412
    %414 = vrot.lane.b32.xlu0 %v187, 112
    %v415 = vpop.permute.xlu0 %414
    %432 = vrot.lane.b32.xlu0 %v271, 112
    %v433 = vpop.permute.xlu0 %432
    %434 = vrot.lane.b32.xlu0 %v274, 112
    %v435 = vpop.permute.xlu0 %434
    %436 = vrot.lane.b32.xlu0 %v279, 112
    %v437 = vpop.permute.xlu0 %436
    %438 = vrot.lane.b32.xlu0 %v282, 112
    %v439 = vpop.permute.xlu0 %438
    %440 = vrot.lane.b32.xlu0 %v287, 112
    %v441 = vpop.permute.xlu0 %440
    %442 = vrot.lane.b32.xlu0 %v290, 112
    %v443 = vpop.permute.xlu0 %442
    %444 = vrot.lane.b32.xlu0 %v295, 112
    %v445 = vpop.permute.xlu0 %444
    %446 = vrot.lane.b32.xlu0 %v298, 112
    %v447 = vpop.permute.xlu0 %446
    %464 = vrot.lane.b32.xlu0 %v196, 112
    %v465 = vpop.permute.xlu0 %464
    %466 = vrot.lane.b32.xlu0 %v197, 112
    %v467 = vpop.permute.xlu0 %466
    %468 = vrot.lane.b32.xlu0 %v198, 112
    %v469 = vpop.permute.xlu0 %468
    %470 = vrot.lane.b32.xlu0 %v199, 112
    %v471 = vpop.permute.xlu0 %470
    %472 = vrot.lane.b32.xlu0 %v200, 112
    %v473 = vpop.permute.xlu0 %472
    %474 = vrot.lane.b32.xlu0 %v201, 112
    %v475 = vpop.permute.xlu0 %474
    %476 = vrot.lane.b32.xlu0 %v202, 112
    %v477 = vpop.permute.xlu0 %476
    %478 = vrot.lane.b32.xlu0 %v203, 112
    %v479 = vpop.permute.xlu0 %478
    %496 = vrot.lane.b32.xlu0 %v362, 32
    %v497 = vpop.permute.xlu0 %496
    %498 = vrot.lane.b32.xlu0 %v365, 32
    %v499 = vpop.permute.xlu0 %498
    %500 = vrot.lane.b32.xlu0 %v370, 32
    %v501 = vpop.permute.xlu0 %500
    %502 = vrot.lane.b32.xlu0 %v373, 32
    %v503 = vpop.permute.xlu0 %502
    %504 = vrot.lane.b32.xlu0 %v378, 32
    %v505 = vpop.permute.xlu0 %504
    %506 = vrot.lane.b32.xlu0 %v381, 32
    %v507 = vpop.permute.xlu0 %506
    %508 = vrot.lane.b32.xlu0 %v386, 32
    %v509 = vpop.permute.xlu0 %508
    %510 = vrot.lane.b32.xlu0 %v389, 32
    %v511 = vpop.permute.xlu0 %510
    %520 = vrot.lane.b32.xlu0 %v362, 16
    %v521 = vpop.permute.xlu0 %520
    %522 = vrot.lane.b32.xlu0 %v365, 16
    %v523 = vpop.permute.xlu0 %522
    %524 = vrot.lane.b32.xlu0 %v370, 16
    %v525 = vpop.permute.xlu0 %524
    %526 = vrot.lane.b32.xlu0 %v373, 16
    %v527 = vpop.permute.xlu0 %526
    %528 = vrot.lane.b32.xlu0 %v378, 16
    %v529 = vpop.permute.xlu0 %528
    %530 = vrot.lane.b32.xlu0 %v381, 16
    %v531 = vpop.permute.xlu0 %530
    %532 = vrot.lane.b32.xlu0 %v386, 16
    %v533 = vpop.permute.xlu0 %532
    %534 = vrot.lane.b32.xlu0 %v389, 16
    %v535 = vpop.permute.xlu0 %534
    %v544 = vpack.c.bf16 %v180, %v180
    %v545 = vpack.c.bf16 %v181, %v181
    %v546 = vpack.c.bf16 %v182, %v182
    %v547 = vpack.c.bf16 %v183, %v183
    %v548 = vpack.c.bf16 %v184, %v184
    %v549 = vpack.c.bf16 %v185, %v185
    %v550 = vpack.c.bf16 %v186, %v186
    %v551 = vpack.c.bf16 %v187, %v187
    %v552 = vpack.c.bf16 %v401, %v401
    %v553 = vpack.c.bf16 %v403, %v403
    %v554 = vpack.c.bf16 %v405, %v405
    %v555 = vpack.c.bf16 %v407, %v407
    %v556 = vpack.c.bf16 %v409, %v409
    %v557 = vpack.c.bf16 %v411, %v411
    %v558 = vpack.c.bf16 %v413, %v413
    %v559 = vpack.c.bf16 %v415, %v415
    %v560 = vpack.c.bf16 %v271, %v271
    %v561 = vpack.c.bf16 %v274, %v274
    %v562 = vpack.c.bf16 %v279, %v279
    %v563 = vpack.c.bf16 %v282, %v282
    %v564 = vpack.c.bf16 %v287, %v287
    %v565 = vpack.c.bf16 %v290, %v290
    %v566 = vpack.c.bf16 %v295, %v295
    %v567 = vpack.c.bf16 %v298, %v298
    %v568 = vpack.c.bf16 %v433, %v433
    %v569 = vpack.c.bf16 %v435, %v435
    %v570 = vpack.c.bf16 %v437, %v437
    %v571 = vpack.c.bf16 %v439, %v439
    %v572 = vpack.c.bf16 %v441, %v441
    %v573 = vpack.c.bf16 %v443, %v443
    %v574 = vpack.c.bf16 %v445, %v445
    %v575 = vpack.c.bf16 %v447, %v447
    %v576 = vpack.c.bf16 %v196, %v196
    %v577 = vpack.c.bf16 %v197, %v197
    %v578 = vpack.c.bf16 %v198, %v198
    %v579 = vpack.c.bf16 %v199, %v199
    %v580 = vpack.c.bf16 %v200, %v200
    %v581 = vpack.c.bf16 %v201, %v201
    %v582 = vpack.c.bf16 %v202, %v202
    %v583 = vpack.c.bf16 %v203, %v203
    %v584 = vpack.c.bf16 %v465, %v465
    %v585 = vpack.c.bf16 %v467, %v467
    %v586 = vpack.c.bf16 %v469, %v469
    %v587 = vpack.c.bf16 %v471, %v471
    %v588 = vpack.c.bf16 %v473, %v473
    %v589 = vpack.c.bf16 %v475, %v475
    %v590 = vpack.c.bf16 %v477, %v477
    %v591 = vpack.c.bf16 %v479, %v479
    %v592 = vpack.c.bf16 %v497, %v497
    %v593 = vpack.c.bf16 %v499, %v499
    %v594 = vpack.c.bf16 %v501, %v501
    %v595 = vpack.c.bf16 %v503, %v503
    %v596 = vpack.c.bf16 %v505, %v505
    %v597 = vpack.c.bf16 %v507, %v507
    %v598 = vpack.c.bf16 %v509, %v509
    %v599 = vpack.c.bf16 %v511, %v511
    %v600 = vpack.c.bf16 %v521, %v521
    %v601 = vpack.c.bf16 %v523, %v523
    %v602 = vpack.c.bf16 %v525, %v525
    %v603 = vpack.c.bf16 %v527, %v527
    %v604 = vpack.c.bf16 %v529, %v529
    %v605 = vpack.c.bf16 %v531, %v531
    %v606 = vpack.c.bf16 %v533, %v533
    %v607 = vpack.c.bf16 %v535, %v535
    %v608 = vlaneseq
    %v609 = vshrl.u32 %v608, 7
    %v610 = vlaneseq
    %v611 = vand.u32 %v610, 127
    %vm612 = vcmp.le.s32.totalorder %v611, %v609
    %vm613 = vcmask 130048
    %v615 = vsel %vm613, %v544, 0
    %617 = vmatprep.subr.bf16.mxu0 0
    %618 = vmatpush1.bf16.xpose.msra.mxu0 0
    %619 = vmatprep.subr.bf16.mxu0 0
    %620 = vmatpush1.bf16.xpose.msra.mxu0 0
    %621 = vmatprep.subr.bf16.mxu0 0
    %622 = vmatpush1.bf16.xpose.msra.mxu0 0
    %623 = vmatprep.subr.bf16.mxu0 0
    %624 = vmatpush1.bf16.xpose.msra.mxu0 0
    %625 = vmatprep.subr.bf16.mxu0 0
    %626 = vmatpush1.bf16.xpose.msra.mxu0 0
    %627 = vmatprep.subr.bf16.mxu0 0
    %628 = vmatpush1.bf16.xpose.msra.mxu0 0
    %629 = vmatprep.subr.bf16.mxu0 0
    %630 = vmatpush1.bf16.xpose.msra.mxu0 0
    %631 = vmatprep.subr.bf16.mxu0 0
    %632 = vmatpush1.bf16.xpose.msra.mxu0 %v615
    %633 = vmatprep.subr.bf16.mxu0 0
    %634 = vmatpush2.bf16.xpose.msra.mxu0 0
    %635 = vmatprep.subr.bf16.mxu0 0
    %636 = vmatpush2.bf16.xpose.msra.mxu0 0
    %637 = vmatprep.subr.bf16.mxu0 0
    %638 = vmatpush2.bf16.xpose.msra.mxu0 0
    %639 = vmatprep.subr.bf16.mxu0 0
    %640 = vmatpush2.bf16.xpose.msra.mxu0 0
    %641 = vmatprep.subr.bf16.mxu0 0
    %642 = vmatpush2.bf16.xpose.msra.mxu0 0
    %643 = vmatprep.subr.bf16.mxu0 0
    %644 = vmatpush2.bf16.xpose.msra.mxu0 0
    %645 = vmatprep.subr.bf16.mxu0 0
    %646 = vmatpush2.bf16.xpose.msra.mxu0 0
    %647 = vmatprep.subr.bf16.mxu0 0
    %648 = vmatpush2.bf16.xpose.msra.mxu0 0
    %649 = vmatprep.mubr.bf16.mxu0 0
    %650 = vmatmul.mubr.bf16.gmra.mxu0 %v615
    %v651 = vpop.f32.mrf.mxu0
    %v652 = vadd.f32 0.0, %v651
    %v653 = vpop.f32.mrf.mxu0
    %v654 = vpop.f32.mrf.mxu0
    %v655 = vpop.f32.mrf.mxu0
    %656 = vdwg.mxu0
    %v658 = vsel %vm613, %v545, 0
    %660 = vmatprep.subr.bf16.mxu0 0
    %661 = vmatpush1.bf16.xpose.msra.mxu0 0
    %662 = vmatprep.subr.bf16.mxu0 0
    %663 = vmatpush1.bf16.xpose.msra.mxu0 0
    %664 = vmatprep.subr.bf16.mxu0 0
    %665 = vmatpush1.bf16.xpose.msra.mxu0 0
    %666 = vmatprep.subr.bf16.mxu0 0
    %667 = vmatpush1.bf16.xpose.msra.mxu0 0
    %668 = vmatprep.subr.bf16.mxu0 0
    %669 = vmatpush1.bf16.xpose.msra.mxu0 0
    %670 = vmatprep.subr.bf16.mxu0 0
    %671 = vmatpush1.bf16.xpose.msra.mxu0 0
    %672 = vmatprep.subr.bf16.mxu0 0
    %673 = vmatpush1.bf16.xpose.msra.mxu0 0
    %674 = vmatprep.subr.bf16.mxu0 0
    %675 = vmatpush1.bf16.xpose.msra.mxu0 %v658
    %676 = vmatprep.subr.bf16.mxu0 0
    %677 = vmatpush2.bf16.xpose.msra.mxu0 0
    %678 = vmatprep.subr.bf16.mxu0 0
    %679 = vmatpush2.bf16.xpose.msra.mxu0 0
    %680 = vmatprep.subr.bf16.mxu0 0
    %681 = vmatpush2.bf16.xpose.msra.mxu0 0
    %682 = vmatprep.subr.bf16.mxu0 0
    %683 = vmatpush2.bf16.xpose.msra.mxu0 0
    %684 = vmatprep.subr.bf16.mxu0 0
    %685 = vmatpush2.bf16.xpose.msra.mxu0 0
    %686 = vmatprep.subr.bf16.mxu0 0
    %687 = vmatpush2.bf16.xpose.msra.mxu0 0
    %688 = vmatprep.subr.bf16.mxu0 0
    %689 = vmatpush2.bf16.xpose.msra.mxu0 0
    %690 = vmatprep.subr.bf16.mxu0 0
    %691 = vmatpush2.bf16.xpose.msra.mxu0 0
    %692 = vmatprep.mubr.bf16.mxu0 0
    %693 = vmatmul.mubr.bf16.gmra.mxu0 %v658
    %v694 = vpop.f32.mrf.mxu0
    %v695 = vadd.f32 0.0, %v694
    %v696 = vpop.f32.mrf.mxu0
    %v697 = vpop.f32.mrf.mxu0
    %v698 = vpop.f32.mrf.mxu0
    %699 = vdwg.mxu0
    %v701 = vsel %vm613, %v546, 0
    %703 = vmatprep.subr.bf16.mxu0 0
    %704 = vmatpush1.bf16.xpose.msra.mxu0 0
    %705 = vmatprep.subr.bf16.mxu0 0
    %706 = vmatpush1.bf16.xpose.msra.mxu0 0
    %707 = vmatprep.subr.bf16.mxu0 0
    %708 = vmatpush1.bf16.xpose.msra.mxu0 0
    %709 = vmatprep.subr.bf16.mxu0 0
    %710 = vmatpush1.bf16.xpose.msra.mxu0 0
    %711 = vmatprep.subr.bf16.mxu0 0
    %712 = vmatpush1.bf16.xpose.msra.mxu0 0
    %713 = vmatprep.subr.bf16.mxu0 0
    %714 = vmatpush1.bf16.xpose.msra.mxu0 0
    %715 = vmatprep.subr.bf16.mxu0 0
    %716 = vmatpush1.bf16.xpose.msra.mxu0 0
    %717 = vmatprep.subr.bf16.mxu0 0
    %718 = vmatpush1.bf16.xpose.msra.mxu0 %v701
    %719 = vmatprep.subr.bf16.mxu0 0
    %720 = vmatpush2.bf16.xpose.msra.mxu0 0
    %721 = vmatprep.subr.bf16.mxu0 0
    %722 = vmatpush2.bf16.xpose.msra.mxu0 0
    %723 = vmatprep.subr.bf16.mxu0 0
    %724 = vmatpush2.bf16.xpose.msra.mxu0 0
    %725 = vmatprep.subr.bf16.mxu0 0
    %726 = vmatpush2.bf16.xpose.msra.mxu0 0
    %727 = vmatprep.subr.bf16.mxu0 0
    %728 = vmatpush2.bf16.xpose.msra.mxu0 0
    %729 = vmatprep.subr.bf16.mxu0 0
    %730 = vmatpush2.bf16.xpose.msra.mxu0 0
    %731 = vmatprep.subr.bf16.mxu0 0
    %732 = vmatpush2.bf16.xpose.msra.mxu0 0
    %733 = vmatprep.subr.bf16.mxu0 0
    %734 = vmatpush2.bf16.xpose.msra.mxu0 0
    %735 = vmatprep.mubr.bf16.mxu0 0
    %736 = vmatmul.mubr.bf16.gmra.mxu0 %v701
    %v737 = vpop.f32.mrf.mxu0
    %v738 = vadd.f32 0.0, %v737
    %v739 = vpop.f32.mrf.mxu0
    %v740 = vpop.f32.mrf.mxu0
    %v741 = vpop.f32.mrf.mxu0
    %742 = vdwg.mxu0
    %v744 = vsel %vm613, %v547, 0
    %746 = vmatprep.subr.bf16.mxu0 0
    %747 = vmatpush1.bf16.xpose.msra.mxu0 0
    %748 = vmatprep.subr.bf16.mxu0 0
    %749 = vmatpush1.bf16.xpose.msra.mxu0 0
    %750 = vmatprep.subr.bf16.mxu0 0
    %751 = vmatpush1.bf16.xpose.msra.mxu0 0
    %752 = vmatprep.subr.bf16.mxu0 0
    %753 = vmatpush1.bf16.xpose.msra.mxu0 0
    %754 = vmatprep.subr.bf16.mxu0 0
    %755 = vmatpush1.bf16.xpose.msra.mxu0 0
    %756 = vmatprep.subr.bf16.mxu0 0
    %757 = vmatpush1.bf16.xpose.msra.mxu0 0
    %758 = vmatprep.subr.bf16.mxu0 0
    %759 = vmatpush1.bf16.xpose.msra.mxu0 0
    %760 = vmatprep.subr.bf16.mxu0 0
    %761 = vmatpush1.bf16.xpose.msra.mxu0 %v744
    %762 = vmatprep.subr.bf16.mxu0 0
    %763 = vmatpush2.bf16.xpose.msra.mxu0 0
    %764 = vmatprep.subr.bf16.mxu0 0
    %765 = vmatpush2.bf16.xpose.msra.mxu0 0
    %766 = vmatprep.subr.bf16.mxu0 0
    %767 = vmatpush2.bf16.xpose.msra.mxu0 0
    %768 = vmatprep.subr.bf16.mxu0 0
    %769 = vmatpush2.bf16.xpose.msra.mxu0 0
    %770 = vmatprep.subr.bf16.mxu0 0
    %771 = vmatpush2.bf16.xpose.msra.mxu0 0
    %772 = vmatprep.subr.bf16.mxu0 0
    %773 = vmatpush2.bf16.xpose.msra.mxu0 0
    %774 = vmatprep.subr.bf16.mxu0 0
    %775 = vmatpush2.bf16.xpose.msra.mxu0 0
    %776 = vmatprep.subr.bf16.mxu0 0
    %777 = vmatpush2.bf16.xpose.msra.mxu0 0
    %778 = vmatprep.mubr.bf16.mxu0 0
    %779 = vmatmul.mubr.bf16.gmra.mxu0 %v744
    %v780 = vpop.f32.mrf.mxu0
    %v781 = vadd.f32 0.0, %v780
    %v782 = vpop.f32.mrf.mxu0
    %v783 = vpop.f32.mrf.mxu0
    %v784 = vpop.f32.mrf.mxu0
    %785 = vdwg.mxu0
    %v787 = vsel %vm613, %v548, 0
    %789 = vmatprep.subr.bf16.mxu0 0
    %790 = vmatpush1.bf16.xpose.msra.mxu0 0
    %791 = vmatprep.subr.bf16.mxu0 0
    %792 = vmatpush1.bf16.xpose.msra.mxu0 0
    %793 = vmatprep.subr.bf16.mxu0 0
    %794 = vmatpush1.bf16.xpose.msra.mxu0 0
    %795 = vmatprep.subr.bf16.mxu0 0
    %796 = vmatpush1.bf16.xpose.msra.mxu0 0
    %797 = vmatprep.subr.bf16.mxu0 0
    %798 = vmatpush1.bf16.xpose.msra.mxu0 0
    %799 = vmatprep.subr.bf16.mxu0 0
    %800 = vmatpush1.bf16.xpose.msra.mxu0 0
    %801 = vmatprep.subr.bf16.mxu0 0
    %802 = vmatpush1.bf16.xpose.msra.mxu0 0
    %803 = vmatprep.subr.bf16.mxu0 0
    %804 = vmatpush1.bf16.xpose.msra.mxu0 %v787
    %805 = vmatprep.subr.bf16.mxu0 0
    %806 = vmatpush2.bf16.xpose.msra.mxu0 0
    %807 = vmatprep.subr.bf16.mxu0 0
    %808 = vmatpush2.bf16.xpose.msra.mxu0 0
    %809 = vmatprep.subr.bf16.mxu0 0
    %810 = vmatpush2.bf16.xpose.msra.mxu0 0
    %811 = vmatprep.subr.bf16.mxu0 0
    %812 = vmatpush2.bf16.xpose.msra.mxu0 0
    %813 = vmatprep.subr.bf16.mxu0 0
    %814 = vmatpush2.bf16.xpose.msra.mxu0 0
    %815 = vmatprep.subr.bf16.mxu0 0
    %816 = vmatpush2.bf16.xpose.msra.mxu0 0
    %817 = vmatprep.subr.bf16.mxu0 0
    %818 = vmatpush2.bf16.xpose.msra.mxu0 0
    %819 = vmatprep.subr.bf16.mxu0 0
    %820 = vmatpush2.bf16.xpose.msra.mxu0 0
    %821 = vmatprep.mubr.bf16.mxu0 0
    %822 = vmatmul.mubr.bf16.gmra.mxu0 %v787
    %v823 = vpop.f32.mrf.mxu0
    %v824 = vadd.f32 0.0, %v823
    %v825 = vpop.f32.mrf.mxu0
    %v826 = vpop.f32.mrf.mxu0
    %v827 = vpop.f32.mrf.mxu0
    %828 = vdwg.mxu0
    %v830 = vsel %vm613, %v549, 0
    %832 = vmatprep.subr.bf16.mxu0 0
    %833 = vmatpush1.bf16.xpose.msra.mxu0 0
    %834 = vmatprep.subr.bf16.mxu0 0
    %835 = vmatpush1.bf16.xpose.msra.mxu0 0
    %836 = vmatprep.subr.bf16.mxu0 0
    %837 = vmatpush1.bf16.xpose.msra.mxu0 0
    %838 = vmatprep.subr.bf16.mxu0 0
    %839 = vmatpush1.bf16.xpose.msra.mxu0 0
    %840 = vmatprep.subr.bf16.mxu0 0
    %841 = vmatpush1.bf16.xpose.msra.mxu0 0
    %842 = vmatprep.subr.bf16.mxu0 0
    %843 = vmatpush1.bf16.xpose.msra.mxu0 0
    %844 = vmatprep.subr.bf16.mxu0 0
    %845 = vmatpush1.bf16.xpose.msra.mxu0 0
    %846 = vmatprep.subr.bf16.mxu0 0
    %847 = vmatpush1.bf16.xpose.msra.mxu0 %v830
    %848 = vmatprep.subr.bf16.mxu0 0
    %849 = vmatpush2.bf16.xpose.msra.mxu0 0
    %850 = vmatprep.subr.bf16.mxu0 0
    %851 = vmatpush2.bf16.xpose.msra.mxu0 0
    %852 = vmatprep.subr.bf16.mxu0 0
    %853 = vmatpush2.bf16.xpose.msra.mxu0 0
    %854 = vmatprep.subr.bf16.mxu0 0
    %855 = vmatpush2.bf16.xpose.msra.mxu0 0
    %856 = vmatprep.subr.bf16.mxu0 0
    %857 = vmatpush2.bf16.xpose.msra.mxu0 0
    %858 = vmatprep.subr.bf16.mxu0 0
    %859 = vmatpush2.bf16.xpose.msra.mxu0 0
    %860 = vmatprep.subr.bf16.mxu0 0
    %861 = vmatpush2.bf16.xpose.msra.mxu0 0
    %862 = vmatprep.subr.bf16.mxu0 0
    %863 = vmatpush2.bf16.xpose.msra.mxu0 0
    %864 = vmatprep.mubr.bf16.mxu0 0
    %865 = vmatmul.mubr.bf16.gmra.mxu0 %v830
    %v866 = vpop.f32.mrf.mxu0
    %v867 = vadd.f32 0.0, %v866
    %v868 = vpop.f32.mrf.mxu0
    %v869 = vpop.f32.mrf.mxu0
    %v870 = vpop.f32.mrf.mxu0
    %871 = vdwg.mxu0
    %v873 = vsel %vm613, %v550, 0
    %875 = vmatprep.subr.bf16.mxu0 0
    %876 = vmatpush1.bf16.xpose.msra.mxu0 0
    %877 = vmatprep.subr.bf16.mxu0 0
    %878 = vmatpush1.bf16.xpose.msra.mxu0 0
    %879 = vmatprep.subr.bf16.mxu0 0
    %880 = vmatpush1.bf16.xpose.msra.mxu0 0
    %881 = vmatprep.subr.bf16.mxu0 0
    %882 = vmatpush1.bf16.xpose.msra.mxu0 0
    %883 = vmatprep.subr.bf16.mxu0 0
    %884 = vmatpush1.bf16.xpose.msra.mxu0 0
    %885 = vmatprep.subr.bf16.mxu0 0
    %886 = vmatpush1.bf16.xpose.msra.mxu0 0
    %887 = vmatprep.subr.bf16.mxu0 0
    %888 = vmatpush1.bf16.xpose.msra.mxu0 0
    %889 = vmatprep.subr.bf16.mxu0 0
    %890 = vmatpush1.bf16.xpose.msra.mxu0 %v873
    %891 = vmatprep.subr.bf16.mxu0 0
    %892 = vmatpush2.bf16.xpose.msra.mxu0 0
    %893 = vmatprep.subr.bf16.mxu0 0
    %894 = vmatpush2.bf16.xpose.msra.mxu0 0
    %895 = vmatprep.subr.bf16.mxu0 0
    %896 = vmatpush2.bf16.xpose.msra.mxu0 0
    %897 = vmatprep.subr.bf16.mxu0 0
    %898 = vmatpush2.bf16.xpose.msra.mxu0 0
    %899 = vmatprep.subr.bf16.mxu0 0
    %900 = vmatpush2.bf16.xpose.msra.mxu0 0
    %901 = vmatprep.subr.bf16.mxu0 0
    %902 = vmatpush2.bf16.xpose.msra.mxu0 0
    %903 = vmatprep.subr.bf16.mxu0 0
    %904 = vmatpush2.bf16.xpose.msra.mxu0 0
    %905 = vmatprep.subr.bf16.mxu0 0
    %906 = vmatpush2.bf16.xpose.msra.mxu0 0
    %907 = vmatprep.mubr.bf16.mxu0 0
    %908 = vmatmul.mubr.bf16.gmra.mxu0 %v873
    %v909 = vpop.f32.mrf.mxu0
    %v910 = vadd.f32 0.0, %v909
    %v911 = vpop.f32.mrf.mxu0
    %v912 = vpop.f32.mrf.mxu0
    %v913 = vpop.f32.mrf.mxu0
    %914 = vdwg.mxu0
    %v916 = vsel %vm613, %v551, 0
    %918 = vmatprep.subr.bf16.mxu0 0
    %919 = vmatpush1.bf16.xpose.msra.mxu0 0
    %920 = vmatprep.subr.bf16.mxu0 0
    %921 = vmatpush1.bf16.xpose.msra.mxu0 0
    %922 = vmatprep.subr.bf16.mxu0 0
    %923 = vmatpush1.bf16.xpose.msra.mxu0 0
    %924 = vmatprep.subr.bf16.mxu0 0
    %925 = vmatpush1.bf16.xpose.msra.mxu0 0
    %926 = vmatprep.subr.bf16.mxu0 0
    %927 = vmatpush1.bf16.xpose.msra.mxu0 0
    %928 = vmatprep.subr.bf16.mxu0 0
    %929 = vmatpush1.bf16.xpose.msra.mxu0 0
    %930 = vmatprep.subr.bf16.mxu0 0
    %931 = vmatpush1.bf16.xpose.msra.mxu0 0
    %932 = vmatprep.subr.bf16.mxu0 0
    %933 = vmatpush1.bf16.xpose.msra.mxu0 %v916
    %934 = vmatprep.subr.bf16.mxu0 0
    %935 = vmatpush2.bf16.xpose.msra.mxu0 0
    %936 = vmatprep.subr.bf16.mxu0 0
    %937 = vmatpush2.bf16.xpose.msra.mxu0 0
    %938 = vmatprep.subr.bf16.mxu0 0
    %939 = vmatpush2.bf16.xpose.msra.mxu0 0
    %940 = vmatprep.subr.bf16.mxu0 0
    %941 = vmatpush2.bf16.xpose.msra.mxu0 0
    %942 = vmatprep.subr.bf16.mxu0 0
    %943 = vmatpush2.bf16.xpose.msra.mxu0 0
    %944 = vmatprep.subr.bf16.mxu0 0
    %945 = vmatpush2.bf16.xpose.msra.mxu0 0
    %946 = vmatprep.subr.bf16.mxu0 0
    %947 = vmatpush2.bf16.xpose.msra.mxu0 0
    %948 = vmatprep.subr.bf16.mxu0 0
    %949 = vmatpush2.bf16.xpose.msra.mxu0 0
    %950 = vmatprep.mubr.bf16.mxu0 0
    %951 = vmatmul.mubr.bf16.gmra.mxu0 %v916
    %v952 = vpop.f32.mrf.mxu0
    %v953 = vadd.f32 0.0, %v952
    %v954 = vpop.f32.mrf.mxu0
    %v955 = vpop.f32.mrf.mxu0
    %v956 = vpop.f32.mrf.mxu0
    %957 = vdwg.mxu0
    %v959 = vsel %vm613, %v552, 0
    %961 = vmatprep.subr.bf16.mxu0 0
    %962 = vmatpush1.bf16.xpose.msra.mxu0 0
    %963 = vmatprep.subr.bf16.mxu0 0
    %964 = vmatpush1.bf16.xpose.msra.mxu0 0
    %965 = vmatprep.subr.bf16.mxu0 0
    %966 = vmatpush1.bf16.xpose.msra.mxu0 0
    %967 = vmatprep.subr.bf16.mxu0 0
    %968 = vmatpush1.bf16.xpose.msra.mxu0 0
    %969 = vmatprep.subr.bf16.mxu0 0
    %970 = vmatpush1.bf16.xpose.msra.mxu0 0
    %971 = vmatprep.subr.bf16.mxu0 0
    %972 = vmatpush1.bf16.xpose.msra.mxu0 0
    %973 = vmatprep.subr.bf16.mxu0 0
    %974 = vmatpush1.bf16.xpose.msra.mxu0 0
    %975 = vmatprep.subr.bf16.mxu0 0
    %976 = vmatpush1.bf16.xpose.msra.mxu0 %v959
    %977 = vmatprep.subr.bf16.mxu0 0
    %978 = vmatpush2.bf16.xpose.msra.mxu0 0
    %979 = vmatprep.subr.bf16.mxu0 0
    %980 = vmatpush2.bf16.xpose.msra.mxu0 0
    %981 = vmatprep.subr.bf16.mxu0 0
    %982 = vmatpush2.bf16.xpose.msra.mxu0 0
    %983 = vmatprep.subr.bf16.mxu0 0
    %984 = vmatpush2.bf16.xpose.msra.mxu0 0
    %985 = vmatprep.subr.bf16.mxu0 0
    %986 = vmatpush2.bf16.xpose.msra.mxu0 0
    %987 = vmatprep.subr.bf16.mxu0 0
    %988 = vmatpush2.bf16.xpose.msra.mxu0 0
    %989 = vmatprep.subr.bf16.mxu0 0
    %990 = vmatpush2.bf16.xpose.msra.mxu0 0
    %991 = vmatprep.subr.bf16.mxu0 0
    %992 = vmatpush2.bf16.xpose.msra.mxu0 0
    %993 = vmatprep.mubr.bf16.mxu0 0
    %994 = vmatmul.mubr.bf16.gmra.mxu0 %v959
    %v995 = vpop.f32.mrf.mxu0
    %v996 = vadd.f32 0.0, %v995
    %v997 = vpop.f32.mrf.mxu0
    %v998 = vpop.f32.mrf.mxu0
    %v999 = vpop.f32.mrf.mxu0
    %1000 = vdwg.mxu0
    %v1002 = vsel %vm613, %v553, 0
    %1004 = vmatprep.subr.bf16.mxu0 0
    %1005 = vmatpush1.bf16.xpose.msra.mxu0 0
    %1006 = vmatprep.subr.bf16.mxu0 0
    %1007 = vmatpush1.bf16.xpose.msra.mxu0 0
    %1008 = vmatprep.subr.bf16.mxu0 0
    %1009 = vmatpush1.bf16.xpose.msra.mxu0 0
    %1010 = vmatprep.subr.bf16.mxu0 0
    %1011 = vmatpush1.bf16.xpose.msra.mxu0 0
    %1012 = vmatprep.subr.bf16.mxu0 0
    %1013 = vmatpush1.bf16.xpose.msra.mxu0 0
    %1014 = vmatprep.subr.bf16.mxu0 0
    %1015 = vmatpush1.bf16.xpose.msra.mxu0 0
    %1016 = vmatprep.subr.bf16.mxu0 0
    %1017 = vmatpush1.bf16.xpose.msra.mxu0 0
    %1018 = vmatprep.subr.bf16.mxu0 0
    %1019 = vmatpush1.bf16.xpose.msra.mxu0 %v1002
    %1020 = vmatprep.subr.bf16.mxu0 0
    %1021 = vmatpush2.bf16.xpose.msra.mxu0 0
    %1022 = vmatprep.subr.bf16.mxu0 0
    %1023 = vmatpush2.bf16.xpose.msra.mxu0 0
    %1024 = vmatprep.subr.bf16.mxu0 0
    %1025 = vmatpush2.bf16.xpose.msra.mxu0 0
    %1026 = vmatprep.subr.bf16.mxu0 0
    %1027 = vmatpush2.bf16.xpose.msra.mxu0 0
    %1028 = vmatprep.subr.bf16.mxu0 0
    %1029 = vmatpush2.bf16.xpose.msra.mxu0 0
    %1030 = vmatprep.subr.bf16.mxu0 0
    %1031 = vmatpush2.bf16.xpose.msra.mxu0 0
    %1032 = vmatprep.subr.bf16.mxu0 0
    %1033 = vmatpush2.bf16.xpose.msra.mxu0 0
    %1034 = vmatprep.subr.bf16.mxu0 0
    %1035 = vmatpush2.bf16.xpose.msra.mxu0 0
    %1036 = vmatprep.mubr.bf16.mxu0 0
    %1037 = vmatmul.mubr.bf16.gmra.mxu0 %v1002
    %v1038 = vpop.f32.mrf.mxu0
    %v1039 = vadd.f32 0.0, %v1038
    %v1040 = vpop.f32.mrf.mxu0
    %v1041 = vpop.f32.mrf.mxu0
    %v1042 = vpop.f32.mrf.mxu0
    %1043 = vdwg.mxu0
    %v1045 = vsel %vm613, %v554, 0
    %1047 = vmatprep.subr.bf16.mxu0 0
    %1048 = vmatpush1.bf16.xpose.msra.mxu0 0
    %1049 = vmatprep.subr.bf16.mxu0 0
    %1050 = vmatpush1.bf16.xpose.msra.mxu0 0
    %1051 = vmatprep.subr.bf16.mxu0 0
    %1052 = vmatpush1.bf16.xpose.msra.mxu0 0
    %1053 = vmatprep.subr.bf16.mxu0 0
    %1054 = vmatpush1.bf16.xpose.msra.mxu0 0
    %1055 = vmatprep.subr.bf16.mxu0 0
    %1056 = vmatpush1.bf16.xpose.msra.mxu0 0
    %1057 = vmatprep.subr.bf16.mxu0 0
    %1058 = vmatpush1.bf16.xpose.msra.mxu0 0
    %1059 = vmatprep.subr.bf16.mxu0 0
    %1060 = vmatpush1.bf16.xpose.msra.mxu0 0
    %1061 = vmatprep.subr.bf16.mxu0 0
    %1062 = vmatpush1.bf16.xpose.msra.mxu0 %v1045
    %1063 = vmatprep.subr.bf16.mxu0 0
    %1064 = vmatpush2.bf16.xpose.msra.mxu0 0
    %1065 = vmatprep.subr.bf16.mxu0 0
    %1066 = vmatpush2.bf16.xpose.msra.mxu0 0
    %1067 = vmatprep.subr.bf16.mxu0 0
    %1068 = vmatpush2.bf16.xpose.msra.mxu0 0
    %1069 = vmatprep.subr.bf16.mxu0 0
    %1070 = vmatpush2.bf16.xpose.msra.mxu0 0
    %1071 = vmatprep.subr.bf16.mxu0 0
    %1072 = vmatpush2.bf16.xpose.msra.mxu0 0
    %1073 = vmatprep.subr.bf16.mxu0 0
    %1074 = vmatpush2.bf16.xpose.msra.mxu0 0
    %1075 = vmatprep.subr.bf16.mxu0 0
    %1076 = vmatpush2.bf16.xpose.msra.mxu0 0
    %1077 = vmatprep.subr.bf16.mxu0 0
    %1078 = vmatpush2.bf16.xpose.msra.mxu0 0
    %1079 = vmatprep.mubr.bf16.mxu0 0
    %1080 = vmatmul.mubr.bf16.gmra.mxu0 %v1045
    %v1081 = vpop.f32.mrf.mxu0
    %v1082 = vadd.f32 0.0, %v1081
    %v1083 = vpop.f32.mrf.mxu0
    %v1084 = vpop.f32.mrf.mxu0
    %v1085 = vpop.f32.mrf.mxu0
    %1086 = vdwg.mxu0
    %v1088 = vsel %vm613, %v555, 0
    %1090 = vmatprep.subr.bf16.mxu0 0
    %1091 = vmatpush1.bf16.xpose.msra.mxu0 0
    %1092 = vmatprep.subr.bf16.mxu0 0
    %1093 = vmatpush1.bf16.xpose.msra.mxu0 0
    %1094 = vmatprep.subr.bf16.mxu0 0
    %1095 = vmatpush1.bf16.xpose.msra.mxu0 0
    %1096 = vmatprep.subr.bf16.mxu0 0
    %1097 = vmatpush1.bf16.xpose.msra.mxu0 0
    %1098 = vmatprep.subr.bf16.mxu0 0
    %1099 = vmatpush1.bf16.xpose.msra.mxu0 0
    %1100 = vmatprep.subr.bf16.mxu0 0
    %1101 = vmatpush1.bf16.xpose.msra.mxu0 0
    %1102 = vmatprep.subr.bf16.mxu0 0
    %1103 = vmatpush1.bf16.xpose.msra.mxu0 0
    %1104 = vmatprep.subr.bf16.mxu0 0
    %1105 = vmatpush1.bf16.xpose.msra.mxu0 %v1088
    %1106 = vmatprep.subr.bf16.mxu0 0
    %1107 = vmatpush2.bf16.xpose.msra.mxu0 0
    %1108 = vmatprep.subr.bf16.mxu0 0
    %1109 = vmatpush2.bf16.xpose.msra.mxu0 0
    %1110 = vmatprep.subr.bf16.mxu0 0
    %1111 = vmatpush2.bf16.xpose.msra.mxu0 0
    %1112 = vmatprep.subr.bf16.mxu0 0
    %1113 = vmatpush2.bf16.xpose.msra.mxu0 0
    %1114 = vmatprep.subr.bf16.mxu0 0
    %1115 = vmatpush2.bf16.xpose.msra.mxu0 0
    %1116 = vmatprep.subr.bf16.mxu0 0
    %1117 = vmatpush2.bf16.xpose.msra.mxu0 0
    %1118 = vmatprep.subr.bf16.mxu0 0
    %1119 = vmatpush2.bf16.xpose.msra.mxu0 0
    %1120 = vmatprep.subr.bf16.mxu0 0
    %1121 = vmatpush2.bf16.xpose.msra.mxu0 0
    %1122 = vmatprep.mubr.bf16.mxu0 0
    %1123 = vmatmul.mubr.bf16.gmra.mxu0 %v1088
    %v1124 = vpop.f32.mrf.mxu0
    %v1125 = vadd.f32 0.0, %v1124
    %v1126 = vpop.f32.mrf.mxu0
    %v1127 = vpop.f32.mrf.mxu0
    %v1128 = vpop.f32.mrf.mxu0
    %1129 = vdwg.mxu0
    %v1131 = vsel %vm613, %v556, 0
    %1133 = vmatprep.subr.bf16.mxu0 0
    %1134 = vmatpush1.bf16.xpose.msra.mxu0 0
    %1135 = vmatprep.subr.bf16.mxu0 0
    %1136 = vmatpush1.bf16.xpose.msra.mxu0 0
    %1137 = vmatprep.subr.bf16.mxu0 0
    %1138 = vmatpush1.bf16.xpose.msra.mxu0 0
    %1139 = vmatprep.subr.bf16.mxu0 0
    %1140 = vmatpush1.bf16.xpose.msra.mxu0 0
    %1141 = vmatprep.subr.bf16.mxu0 0
    %1142 = vmatpush1.bf16.xpose.msra.mxu0 0
    %1143 = vmatprep.subr.bf16.mxu0 0
    %1144 = vmatpush1.bf16.xpose.msra.mxu0 0
    %1145 = vmatprep.subr.bf16.mxu0 0
    %1146 = vmatpush1.bf16.xpose.msra.mxu0 0
    %1147 = vmatprep.subr.bf16.mxu0 0
    %1148 = vmatpush1.bf16.xpose.msra.mxu0 %v1131
    %1149 = vmatprep.subr.bf16.mxu0 0
    %1150 = vmatpush2.bf16.xpose.msra.mxu0 0
    %1151 = vmatprep.subr.bf16.mxu0 0
    %1152 = vmatpush2.bf16.xpose.msra.mxu0 0
    %1153 = vmatprep.subr.bf16.mxu0 0
    %1154 = vmatpush2.bf16.xpose.msra.mxu0 0
    %1155 = vmatprep.subr.bf16.mxu0 0
    %1156 = vmatpush2.bf16.xpose.msra.mxu0 0
    %1157 = vmatprep.subr.bf16.mxu0 0
    %1158 = vmatpush2.bf16.xpose.msra.mxu0 0
    %1159 = vmatprep.subr.bf16.mxu0 0
    %1160 = vmatpush2.bf16.xpose.msra.mxu0 0
    %1161 = vmatprep.subr.bf16.mxu0 0
    %1162 = vmatpush2.bf16.xpose.msra.mxu0 0
    %1163 = vmatprep.subr.bf16.mxu0 0
    %1164 = vmatpush2.bf16.xpose.msra.mxu0 0
    %1165 = vmatprep.mubr.bf16.mxu0 0
    %1166 = vmatmul.mubr.bf16.gmra.mxu0 %v1131
    %v1167 = vpop.f32.mrf.mxu0
    %v1168 = vadd.f32 0.0, %v1167
    %v1169 = vpop.f32.mrf.mxu0
    %v1170 = vpop.f32.mrf.mxu0
    %v1171 = vpop.f32.mrf.mxu0
    %1172 = vdwg.mxu0
    %v1174 = vsel %vm613, %v557, 0
    %1176 = vmatprep.subr.bf16.mxu0 0
    %1177 = vmatpush1.bf16.xpose.msra.mxu0 0
    %1178 = vmatprep.subr.bf16.mxu0 0
    %1179 = vmatpush1.bf16.xpose.msra.mxu0 0
    %1180 = vmatprep.subr.bf16.mxu0 0
    %1181 = vmatpush1.bf16.xpose.msra.mxu0 0
    %1182 = vmatprep.subr.bf16.mxu0 0
    %1183 = vmatpush1.bf16.xpose.msra.mxu0 0
    %1184 = vmatprep.subr.bf16.mxu0 0
    %1185 = vmatpush1.bf16.xpose.msra.mxu0 0
    %1186 = vmatprep.subr.bf16.mxu0 0
    %1187 = vmatpush1.bf16.xpose.msra.mxu0 0
    %1188 = vmatprep.subr.bf16.mxu0 0
    %1189 = vmatpush1.bf16.xpose.msra.mxu0 0
    %1190 = vmatprep.subr.bf16.mxu0 0
    %1191 = vmatpush1.bf16.xpose.msra.mxu0 %v1174
    %1192 = vmatprep.subr.bf16.mxu0 0
    %1193 = vmatpush2.bf16.xpose.msra.mxu0 0
    %1194 = vmatprep.subr.bf16.mxu0 0
    %1195 = vmatpush2.bf16.xpose.msra.mxu0 0
    %1196 = vmatprep.subr.bf16.mxu0 0
    %1197 = vmatpush2.bf16.xpose.msra.mxu0 0
    %1198 = vmatprep.subr.bf16.mxu0 0
    %1199 = vmatpush2.bf16.xpose.msra.mxu0 0
    %1200 = vmatprep.subr.bf16.mxu0 0
    %1201 = vmatpush2.bf16.xpose.msra.mxu0 0
    %1202 = vmatprep.subr.bf16.mxu0 0
    %1203 = vmatpush2.bf16.xpose.msra.mxu0 0
    %1204 = vmatprep.subr.bf16.mxu0 0
    %1205 = vmatpush2.bf16.xpose.msra.mxu0 0
    %1206 = vmatprep.subr.bf16.mxu0 0
    %1207 = vmatpush2.bf16.xpose.msra.mxu0 0
    %1208 = vmatprep.mubr.bf16.mxu0 0
    %1209 = vmatmul.mubr.bf16.gmra.mxu0 %v1174
    %v1210 = vpop.f32.mrf.mxu0
    %v1211 = vadd.f32 0.0, %v1210
    %v1212 = vpop.f32.mrf.mxu0
    %v1213 = vpop.f32.mrf.mxu0
    %v1214 = vpop.f32.mrf.mxu0
    %1215 = vdwg.mxu0
    %v1217 = vsel %vm613, %v558, 0
    %1219 = vmatprep.subr.bf16.mxu0 0
    %1220 = vmatpush1.bf16.xpose.msra.mxu0 0
    %1221 = vmatprep.subr.bf16.mxu0 0
    %1222 = vmatpush1.bf16.xpose.msra.mxu0 0
    %1223 = vmatprep.subr.bf16.mxu0 0
    %1224 = vmatpush1.bf16.xpose.msra.mxu0 0
    %1225 = vmatprep.subr.bf16.mxu0 0
    %1226 = vmatpush1.bf16.xpose.msra.mxu0 0
    %1227 = vmatprep.subr.bf16.mxu0 0
    %1228 = vmatpush1.bf16.xpose.msra.mxu0 0
    %1229 = vmatprep.subr.bf16.mxu0 0
    %1230 = vmatpush1.bf16.xpose.msra.mxu0 0
    %1231 = vmatprep.subr.bf16.mxu0 0
    %1232 = vmatpush1.bf16.xpose.msra.mxu0 0
    %1233 = vmatprep.subr.bf16.mxu0 0
    %1234 = vmatpush1.bf16.xpose.msra.mxu0 %v1217
    %1235 = vmatprep.subr.bf16.mxu0 0
    %1236 = vmatpush2.bf16.xpose.msra.mxu0 0
    %1237 = vmatprep.subr.bf16.mxu0 0
    %1238 = vmatpush2.bf16.xpose.msra.mxu0 0
    %1239 = vmatprep.subr.bf16.mxu0 0
    %1240 = vmatpush2.bf16.xpose.msra.mxu0 0
    %1241 = vmatprep.subr.bf16.mxu0 0
    %1242 = vmatpush2.bf16.xpose.msra.mxu0 0
    %1243 = vmatprep.subr.bf16.mxu0 0
    %1244 = vmatpush2.bf16.xpose.msra.mxu0 0
    %1245 = vmatprep.subr.bf16.mxu0 0
    %1246 = vmatpush2.bf16.xpose.msra.mxu0 0
    %1247 = vmatprep.subr.bf16.mxu0 0
    %1248 = vmatpush2.bf16.xpose.msra.mxu0 0
    %1249 = vmatprep.subr.bf16.mxu0 0
    %1250 = vmatpush2.bf16.xpose.msra.mxu0 0
    %1251 = vmatprep.mubr.bf16.mxu0 0
    %1252 = vmatmul.mubr.bf16.gmra.mxu0 %v1217
    %v1253 = vpop.f32.mrf.mxu0
    %v1254 = vadd.f32 0.0, %v1253
    %v1255 = vpop.f32.mrf.mxu0
    %v1256 = vpop.f32.mrf.mxu0
    %v1257 = vpop.f32.mrf.mxu0
    %1258 = vdwg.mxu0
    %v1260 = vsel %vm613, %v559, 0
    %1262 = vmatprep.subr.bf16.mxu0 0
    %1263 = vmatpush1.bf16.xpose.msra.mxu0 0
    %1264 = vmatprep.subr.bf16.mxu0 0
    %1265 = vmatpush1.bf16.xpose.msra.mxu0 0
    %1266 = vmatprep.subr.bf16.mxu0 0
    %1267 = vmatpush1.bf16.xpose.msra.mxu0 0
    %1268 = vmatprep.subr.bf16.mxu0 0
    %1269 = vmatpush1.bf16.xpose.msra.mxu0 0
    %1270 = vmatprep.subr.bf16.mxu0 0
    %1271 = vmatpush1.bf16.xpose.msra.mxu0 0
    %1272 = vmatprep.subr.bf16.mxu0 0
    %1273 = vmatpush1.bf16.xpose.msra.mxu0 0
    %1274 = vmatprep.subr.bf16.mxu0 0
    %1275 = vmatpush1.bf16.xpose.msra.mxu0 0
    %1276 = vmatprep.subr.bf16.mxu0 0
    %1277 = vmatpush1.bf16.xpose.msra.mxu0 %v1260
    %1278 = vmatprep.subr.bf16.mxu0 0
    %1279 = vmatpush2.bf16.xpose.msra.mxu0 0
    %1280 = vmatprep.subr.bf16.mxu0 0
    %1281 = vmatpush2.bf16.xpose.msra.mxu0 0
    %1282 = vmatprep.subr.bf16.mxu0 0
    %1283 = vmatpush2.bf16.xpose.msra.mxu0 0
    %1284 = vmatprep.subr.bf16.mxu0 0
    %1285 = vmatpush2.bf16.xpose.msra.mxu0 0
    %1286 = vmatprep.subr.bf16.mxu0 0
    %1287 = vmatpush2.bf16.xpose.msra.mxu0 0
    %1288 = vmatprep.subr.bf16.mxu0 0
    %1289 = vmatpush2.bf16.xpose.msra.mxu0 0
    %1290 = vmatprep.subr.bf16.mxu0 0
    %1291 = vmatpush2.bf16.xpose.msra.mxu0 0
    %1292 = vmatprep.subr.bf16.mxu0 0
    %1293 = vmatpush2.bf16.xpose.msra.mxu0 0
    %1294 = vmatprep.mubr.bf16.mxu0 0
    %1295 = vmatmul.mubr.bf16.gmra.mxu0 %v1260
    %v1296 = vpop.f32.mrf.mxu0
    %v1297 = vadd.f32 0.0, %v1296
    %v1298 = vpop.f32.mrf.mxu0
    %v1299 = vpop.f32.mrf.mxu0
    %v1300 = vpop.f32.mrf.mxu0
    %1301 = vdwg.mxu0
    %v1303 = vsel %vm613, %v560, 0
    %1305 = vmatprep.subr.bf16.mxu0 0
    %1306 = vmatpush1.bf16.xpose.msra.mxu0 0
    %1307 = vmatprep.subr.bf16.mxu0 0
    %1308 = vmatpush1.bf16.xpose.msra.mxu0 0
    %1309 = vmatprep.subr.bf16.mxu0 0
    %1310 = vmatpush1.bf16.xpose.msra.mxu0 0
    %1311 = vmatprep.subr.bf16.mxu0 0
    %1312 = vmatpush1.bf16.xpose.msra.mxu0 0
    %1313 = vmatprep.subr.bf16.mxu0 0
    %1314 = vmatpush1.bf16.xpose.msra.mxu0 0
    %1315 = vmatprep.subr.bf16.mxu0 0
    %1316 = vmatpush1.bf16.xpose.msra.mxu0 0
    %1317 = vmatprep.subr.bf16.mxu0 0
    %1318 = vmatpush1.bf16.xpose.msra.mxu0 0
    %1319 = vmatprep.subr.bf16.mxu0 0
    %1320 = vmatpush1.bf16.xpose.msra.mxu0 %v1303
    %1321 = vmatprep.subr.bf16.mxu0 0
    %1322 = vmatpush2.bf16.xpose.msra.mxu0 0
    %1323 = vmatprep.subr.bf16.mxu0 0
    %1324 = vmatpush2.bf16.xpose.msra.mxu0 0
    %1325 = vmatprep.subr.bf16.mxu0 0
    %1326 = vmatpush2.bf16.xpose.msra.mxu0 0
    %1327 = vmatprep.subr.bf16.mxu0 0
    %1328 = vmatpush2.bf16.xpose.msra.mxu0 0
    %1329 = vmatprep.subr.bf16.mxu0 0
    %1330 = vmatpush2.bf16.xpose.msra.mxu0 0
    %1331 = vmatprep.subr.bf16.mxu0 0
    %1332 = vmatpush2.bf16.xpose.msra.mxu0 0
    %1333 = vmatprep.subr.bf16.mxu0 0
    %1334 = vmatpush2.bf16.xpose.msra.mxu0 0
    %1335 = vmatprep.subr.bf16.mxu0 0
    %1336 = vmatpush2.bf16.xpose.msra.mxu0 0
    %1337 = vmatprep.mubr.bf16.mxu0 0
    %1338 = vmatmul.mubr.bf16.gmra.mxu0 %v1303
    %v1339 = vpop.f32.mrf.mxu0
    %v1340 = vadd.f32 0.0, %v1339
    %v1341 = vpop.f32.mrf.mxu0
    %v1342 = vpop.f32.mrf.mxu0
    %v1343 = vpop.f32.mrf.mxu0
    %1344 = vdwg.mxu0
    %v1346 = vsel %vm613, %v561, 0
    %1348 = vmatprep.subr.bf16.mxu0 0
    %1349 = vmatpush1.bf16.xpose.msra.mxu0 0
    %1350 = vmatprep.subr.bf16.mxu0 0
    %1351 = vmatpush1.bf16.xpose.msra.mxu0 0
    %1352 = vmatprep.subr.bf16.mxu0 0
    %1353 = vmatpush1.bf16.xpose.msra.mxu0 0
    %1354 = vmatprep.subr.bf16.mxu0 0
    %1355 = vmatpush1.bf16.xpose.msra.mxu0 0
    %1356 = vmatprep.subr.bf16.mxu0 0
    %1357 = vmatpush1.bf16.xpose.msra.mxu0 0
    %1358 = vmatprep.subr.bf16.mxu0 0
    %1359 = vmatpush1.bf16.xpose.msra.mxu0 0
    %1360 = vmatprep.subr.bf16.mxu0 0
    %1361 = vmatpush1.bf16.xpose.msra.mxu0 0
    %1362 = vmatprep.subr.bf16.mxu0 0
    %1363 = vmatpush1.bf16.xpose.msra.mxu0 %v1346
    %1364 = vmatprep.subr.bf16.mxu0 0
    %1365 = vmatpush2.bf16.xpose.msra.mxu0 0
    %1366 = vmatprep.subr.bf16.mxu0 0
    %1367 = vmatpush2.bf16.xpose.msra.mxu0 0
    %1368 = vmatprep.subr.bf16.mxu0 0
    %1369 = vmatpush2.bf16.xpose.msra.mxu0 0
    %1370 = vmatprep.subr.bf16.mxu0 0
    %1371 = vmatpush2.bf16.xpose.msra.mxu0 0
    %1372 = vmatprep.subr.bf16.mxu0 0
    %1373 = vmatpush2.bf16.xpose.msra.mxu0 0
    %1374 = vmatprep.subr.bf16.mxu0 0
    %1375 = vmatpush2.bf16.xpose.msra.mxu0 0
    %1376 = vmatprep.subr.bf16.mxu0 0
    %1377 = vmatpush2.bf16.xpose.msra.mxu0 0
    %1378 = vmatprep.subr.bf16.mxu0 0
    %1379 = vmatpush2.bf16.xpose.msra.mxu0 0
    %1380 = vmatprep.mubr.bf16.mxu0 0
    %1381 = vmatmul.mubr.bf16.gmra.mxu0 %v1346
    %v1382 = vpop.f32.mrf.mxu0
    %v1383 = vadd.f32 0.0, %v1382
    %v1384 = vpop.f32.mrf.mxu0
    %v1385 = vpop.f32.mrf.mxu0
    %v1386 = vpop.f32.mrf.mxu0
    %1387 = vdwg.mxu0
    %v1389 = vsel %vm613, %v562, 0
    %1391 = vmatprep.subr.bf16.mxu0 0
    %1392 = vmatpush1.bf16.xpose.msra.mxu0 0
    %1393 = vmatprep.subr.bf16.mxu0 0
    %1394 = vmatpush1.bf16.xpose.msra.mxu0 0
    %1395 = vmatprep.subr.bf16.mxu0 0
    %1396 = vmatpush1.bf16.xpose.msra.mxu0 0
    %1397 = vmatprep.subr.bf16.mxu0 0
    %1398 = vmatpush1.bf16.xpose.msra.mxu0 0
    %1399 = vmatprep.subr.bf16.mxu0 0
    %1400 = vmatpush1.bf16.xpose.msra.mxu0 0
    %1401 = vmatprep.subr.bf16.mxu0 0
    %1402 = vmatpush1.bf16.xpose.msra.mxu0 0
    %1403 = vmatprep.subr.bf16.mxu0 0
    %1404 = vmatpush1.bf16.xpose.msra.mxu0 0
    %1405 = vmatprep.subr.bf16.mxu0 0
    %1406 = vmatpush1.bf16.xpose.msra.mxu0 %v1389
    %1407 = vmatprep.subr.bf16.mxu0 0
    %1408 = vmatpush2.bf16.xpose.msra.mxu0 0
    %1409 = vmatprep.subr.bf16.mxu0 0
    %1410 = vmatpush2.bf16.xpose.msra.mxu0 0
    %1411 = vmatprep.subr.bf16.mxu0 0
    %1412 = vmatpush2.bf16.xpose.msra.mxu0 0
    %1413 = vmatprep.subr.bf16.mxu0 0
    %1414 = vmatpush2.bf16.xpose.msra.mxu0 0
    %1415 = vmatprep.subr.bf16.mxu0 0
    %1416 = vmatpush2.bf16.xpose.msra.mxu0 0
    %1417 = vmatprep.subr.bf16.mxu0 0
    %1418 = vmatpush2.bf16.xpose.msra.mxu0 0
    %1419 = vmatprep.subr.bf16.mxu0 0
    %1420 = vmatpush2.bf16.xpose.msra.mxu0 0
    %1421 = vmatprep.subr.bf16.mxu0 0
    %1422 = vmatpush2.bf16.xpose.msra.mxu0 0
    %1423 = vmatprep.mubr.bf16.mxu0 0
    %1424 = vmatmul.mubr.bf16.gmra.mxu0 %v1389
    %v1425 = vpop.f32.mrf.mxu0
    %v1426 = vadd.f32 0.0, %v1425
    %v1427 = vpop.f32.mrf.mxu0
    %v1428 = vpop.f32.mrf.mxu0
    %v1429 = vpop.f32.mrf.mxu0
    %1430 = vdwg.mxu0
    %v1432 = vsel %vm613, %v563, 0
    %1434 = vmatprep.subr.bf16.mxu0 0
    %1435 = vmatpush1.bf16.xpose.msra.mxu0 0
    %1436 = vmatprep.subr.bf16.mxu0 0
    %1437 = vmatpush1.bf16.xpose.msra.mxu0 0
    %1438 = vmatprep.subr.bf16.mxu0 0
    %1439 = vmatpush1.bf16.xpose.msra.mxu0 0
    %1440 = vmatprep.subr.bf16.mxu0 0
    %1441 = vmatpush1.bf16.xpose.msra.mxu0 0
    %1442 = vmatprep.subr.bf16.mxu0 0
    %1443 = vmatpush1.bf16.xpose.msra.mxu0 0
    %1444 = vmatprep.subr.bf16.mxu0 0
    %1445 = vmatpush1.bf16.xpose.msra.mxu0 0
    %1446 = vmatprep.subr.bf16.mxu0 0
    %1447 = vmatpush1.bf16.xpose.msra.mxu0 0
    %1448 = vmatprep.subr.bf16.mxu0 0
    %1449 = vmatpush1.bf16.xpose.msra.mxu0 %v1432
    %1450 = vmatprep.subr.bf16.mxu0 0
    %1451 = vmatpush2.bf16.xpose.msra.mxu0 0
    %1452 = vmatprep.subr.bf16.mxu0 0
    %1453 = vmatpush2.bf16.xpose.msra.mxu0 0
    %1454 = vmatprep.subr.bf16.mxu0 0
    %1455 = vmatpush2.bf16.xpose.msra.mxu0 0
    %1456 = vmatprep.subr.bf16.mxu0 0
    %1457 = vmatpush2.bf16.xpose.msra.mxu0 0
    %1458 = vmatprep.subr.bf16.mxu0 0
    %1459 = vmatpush2.bf16.xpose.msra.mxu0 0
    %1460 = vmatprep.subr.bf16.mxu0 0
    %1461 = vmatpush2.bf16.xpose.msra.mxu0 0
    %1462 = vmatprep.subr.bf16.mxu0 0
    %1463 = vmatpush2.bf16.xpose.msra.mxu0 0
    %1464 = vmatprep.subr.bf16.mxu0 0
    %1465 = vmatpush2.bf16.xpose.msra.mxu0 0
    %1466 = vmatprep.mubr.bf16.mxu0 0
    %1467 = vmatmul.mubr.bf16.gmra.mxu0 %v1432
    %v1468 = vpop.f32.mrf.mxu0
    %v1469 = vadd.f32 0.0, %v1468
    %v1470 = vpop.f32.mrf.mxu0
    %v1471 = vpop.f32.mrf.mxu0
    %v1472 = vpop.f32.mrf.mxu0
    %1473 = vdwg.mxu0
    %v1475 = vsel %vm613, %v564, 0
    %1477 = vmatprep.subr.bf16.mxu0 0
    %1478 = vmatpush1.bf16.xpose.msra.mxu0 0
    %1479 = vmatprep.subr.bf16.mxu0 0
    %1480 = vmatpush1.bf16.xpose.msra.mxu0 0
    %1481 = vmatprep.subr.bf16.mxu0 0
    %1482 = vmatpush1.bf16.xpose.msra.mxu0 0
    %1483 = vmatprep.subr.bf16.mxu0 0
    %1484 = vmatpush1.bf16.xpose.msra.mxu0 0
    %1485 = vmatprep.subr.bf16.mxu0 0
    %1486 = vmatpush1.bf16.xpose.msra.mxu0 0
    %1487 = vmatprep.subr.bf16.mxu0 0
    %1488 = vmatpush1.bf16.xpose.msra.mxu0 0
    %1489 = vmatprep.subr.bf16.mxu0 0
    %1490 = vmatpush1.bf16.xpose.msra.mxu0 0
    %1491 = vmatprep.subr.bf16.mxu0 0
    %1492 = vmatpush1.bf16.xpose.msra.mxu0 %v1475
    %1493 = vmatprep.subr.bf16.mxu0 0
    %1494 = vmatpush2.bf16.xpose.msra.mxu0 0
    %1495 = vmatprep.subr.bf16.mxu0 0
    %1496 = vmatpush2.bf16.xpose.msra.mxu0 0
    %1497 = vmatprep.subr.bf16.mxu0 0
    %1498 = vmatpush2.bf16.xpose.msra.mxu0 0
    %1499 = vmatprep.subr.bf16.mxu0 0
    %1500 = vmatpush2.bf16.xpose.msra.mxu0 0
    %1501 = vmatprep.subr.bf16.mxu0 0
    %1502 = vmatpush2.bf16.xpose.msra.mxu0 0
    %1503 = vmatprep.subr.bf16.mxu0 0
    %1504 = vmatpush2.bf16.xpose.msra.mxu0 0
    %1505 = vmatprep.subr.bf16.mxu0 0
    %1506 = vmatpush2.bf16.xpose.msra.mxu0 0
    %1507 = vmatprep.subr.bf16.mxu0 0
    %1508 = vmatpush2.bf16.xpose.msra.mxu0 0
    %1509 = vmatprep.mubr.bf16.mxu0 0
    %1510 = vmatmul.mubr.bf16.gmra.mxu0 %v1475
    %v1511 = vpop.f32.mrf.mxu0
    %v1512 = vadd.f32 0.0, %v1511
    %v1513 = vpop.f32.mrf.mxu0
    %v1514 = vpop.f32.mrf.mxu0
    %v1515 = vpop.f32.mrf.mxu0
    %1516 = vdwg.mxu0
    %v1518 = vsel %vm613, %v565, 0
    %1520 = vmatprep.subr.bf16.mxu0 0
    %1521 = vmatpush1.bf16.xpose.msra.mxu0 0
    %1522 = vmatprep.subr.bf16.mxu0 0
    %1523 = vmatpush1.bf16.xpose.msra.mxu0 0
    %1524 = vmatprep.subr.bf16.mxu0 0
    %1525 = vmatpush1.bf16.xpose.msra.mxu0 0
    %1526 = vmatprep.subr.bf16.mxu0 0
    %1527 = vmatpush1.bf16.xpose.msra.mxu0 0
    %1528 = vmatprep.subr.bf16.mxu0 0
    %1529 = vmatpush1.bf16.xpose.msra.mxu0 0
    %1530 = vmatprep.subr.bf16.mxu0 0
    %1531 = vmatpush1.bf16.xpose.msra.mxu0 0
    %1532 = vmatprep.subr.bf16.mxu0 0
    %1533 = vmatpush1.bf16.xpose.msra.mxu0 0
    %1534 = vmatprep.subr.bf16.mxu0 0
    %1535 = vmatpush1.bf16.xpose.msra.mxu0 %v1518
    %1536 = vmatprep.subr.bf16.mxu0 0
    %1537 = vmatpush2.bf16.xpose.msra.mxu0 0
    %1538 = vmatprep.subr.bf16.mxu0 0
    %1539 = vmatpush2.bf16.xpose.msra.mxu0 0
    %1540 = vmatprep.subr.bf16.mxu0 0
    %1541 = vmatpush2.bf16.xpose.msra.mxu0 0
    %1542 = vmatprep.subr.bf16.mxu0 0
    %1543 = vmatpush2.bf16.xpose.msra.mxu0 0
    %1544 = vmatprep.subr.bf16.mxu0 0
    %1545 = vmatpush2.bf16.xpose.msra.mxu0 0
    %1546 = vmatprep.subr.bf16.mxu0 0
    %1547 = vmatpush2.bf16.xpose.msra.mxu0 0
    %1548 = vmatprep.subr.bf16.mxu0 0
    %1549 = vmatpush2.bf16.xpose.msra.mxu0 0
    %1550 = vmatprep.subr.bf16.mxu0 0
    %1551 = vmatpush2.bf16.xpose.msra.mxu0 0
    %1552 = vmatprep.mubr.bf16.mxu0 0
    %1553 = vmatmul.mubr.bf16.gmra.mxu0 %v1518
    %v1554 = vpop.f32.mrf.mxu0
    %v1555 = vadd.f32 0.0, %v1554
    %v1556 = vpop.f32.mrf.mxu0
    %v1557 = vpop.f32.mrf.mxu0
    %v1558 = vpop.f32.mrf.mxu0
    %1559 = vdwg.mxu0
    %v1561 = vsel %vm613, %v566, 0
    %1563 = vmatprep.subr.bf16.mxu0 0
    %1564 = vmatpush1.bf16.xpose.msra.mxu0 0
    %1565 = vmatprep.subr.bf16.mxu0 0
    %1566 = vmatpush1.bf16.xpose.msra.mxu0 0
    %1567 = vmatprep.subr.bf16.mxu0 0
    %1568 = vmatpush1.bf16.xpose.msra.mxu0 0
    %1569 = vmatprep.subr.bf16.mxu0 0
    %1570 = vmatpush1.bf16.xpose.msra.mxu0 0
    %1571 = vmatprep.subr.bf16.mxu0 0
    %1572 = vmatpush1.bf16.xpose.msra.mxu0 0
    %1573 = vmatprep.subr.bf16.mxu0 0
    %1574 = vmatpush1.bf16.xpose.msra.mxu0 0
    %1575 = vmatprep.subr.bf16.mxu0 0
    %1576 = vmatpush1.bf16.xpose.msra.mxu0 0
    %1577 = vmatprep.subr.bf16.mxu0 0
    %1578 = vmatpush1.bf16.xpose.msra.mxu0 %v1561
    %1579 = vmatprep.subr.bf16.mxu0 0
    %1580 = vmatpush2.bf16.xpose.msra.mxu0 0
    %1581 = vmatprep.subr.bf16.mxu0 0
    %1582 = vmatpush2.bf16.xpose.msra.mxu0 0
    %1583 = vmatprep.subr.bf16.mxu0 0
    %1584 = vmatpush2.bf16.xpose.msra.mxu0 0
    %1585 = vmatprep.subr.bf16.mxu0 0
    %1586 = vmatpush2.bf16.xpose.msra.mxu0 0
    %1587 = vmatprep.subr.bf16.mxu0 0
    %1588 = vmatpush2.bf16.xpose.msra.mxu0 0
    %1589 = vmatprep.subr.bf16.mxu0 0
    %1590 = vmatpush2.bf16.xpose.msra.mxu0 0
    %1591 = vmatprep.subr.bf16.mxu0 0
    %1592 = vmatpush2.bf16.xpose.msra.mxu0 0
    %1593 = vmatprep.subr.bf16.mxu0 0
    %1594 = vmatpush2.bf16.xpose.msra.mxu0 0
    %1595 = vmatprep.mubr.bf16.mxu0 0
    %1596 = vmatmul.mubr.bf16.gmra.mxu0 %v1561
    %v1597 = vpop.f32.mrf.mxu0
    %v1598 = vadd.f32 0.0, %v1597
    %v1599 = vpop.f32.mrf.mxu0
    %v1600 = vpop.f32.mrf.mxu0
    %v1601 = vpop.f32.mrf.mxu0
    %1602 = vdwg.mxu0
    %v1604 = vsel %vm613, %v567, 0
    %1606 = vmatprep.subr.bf16.mxu0 0
    %1607 = vmatpush1.bf16.xpose.msra.mxu0 0
    %1608 = vmatprep.subr.bf16.mxu0 0
    %1609 = vmatpush1.bf16.xpose.msra.mxu0 0
    %1610 = vmatprep.subr.bf16.mxu0 0
    %1611 = vmatpush1.bf16.xpose.msra.mxu0 0
    %1612 = vmatprep.subr.bf16.mxu0 0
    %1613 = vmatpush1.bf16.xpose.msra.mxu0 0
    %1614 = vmatprep.subr.bf16.mxu0 0
    %1615 = vmatpush1.bf16.xpose.msra.mxu0 0
    %1616 = vmatprep.subr.bf16.mxu0 0
    %1617 = vmatpush1.bf16.xpose.msra.mxu0 0
    %1618 = vmatprep.subr.bf16.mxu0 0
    %1619 = vmatpush1.bf16.xpose.msra.mxu0 0
    %1620 = vmatprep.subr.bf16.mxu0 0
    %1621 = vmatpush1.bf16.xpose.msra.mxu0 %v1604
    %1622 = vmatprep.subr.bf16.mxu0 0
    %1623 = vmatpush2.bf16.xpose.msra.mxu0 0
    %1624 = vmatprep.subr.bf16.mxu0 0
    %1625 = vmatpush2.bf16.xpose.msra.mxu0 0
    %1626 = vmatprep.subr.bf16.mxu0 0
    %1627 = vmatpush2.bf16.xpose.msra.mxu0 0
    %1628 = vmatprep.subr.bf16.mxu0 0
    %1629 = vmatpush2.bf16.xpose.msra.mxu0 0
    %1630 = vmatprep.subr.bf16.mxu0 0
    %1631 = vmatpush2.bf16.xpose.msra.mxu0 0
    %1632 = vmatprep.subr.bf16.mxu0 0
    %1633 = vmatpush2.bf16.xpose.msra.mxu0 0
    %1634 = vmatprep.subr.bf16.mxu0 0
    %1635 = vmatpush2.bf16.xpose.msra.mxu0 0
    %1636 = vmatprep.subr.bf16.mxu0 0
    %1637 = vmatpush2.bf16.xpose.msra.mxu0 0
    %1638 = vmatprep.mubr.bf16.mxu0 0
    %1639 = vmatmul.mubr.bf16.gmra.mxu0 %v1604
    %v1640 = vpop.f32.mrf.mxu0
    %v1641 = vadd.f32 0.0, %v1640
    %v1642 = vpop.f32.mrf.mxu0
    %v1643 = vpop.f32.mrf.mxu0
    %v1644 = vpop.f32.mrf.mxu0
    %1645 = vdwg.mxu0
    %v1647 = vsel %vm613, %v568, 0
    %1649 = vmatprep.subr.bf16.mxu0 0
    %1650 = vmatpush1.bf16.xpose.msra.mxu0 0
    %1651 = vmatprep.subr.bf16.mxu0 0
    %1652 = vmatpush1.bf16.xpose.msra.mxu0 0
    %1653 = vmatprep.subr.bf16.mxu0 0
    %1654 = vmatpush1.bf16.xpose.msra.mxu0 0
    %1655 = vmatprep.subr.bf16.mxu0 0
    %1656 = vmatpush1.bf16.xpose.msra.mxu0 0
    %1657 = vmatprep.subr.bf16.mxu0 0
    %1658 = vmatpush1.bf16.xpose.msra.mxu0 0
    %1659 = vmatprep.subr.bf16.mxu0 0
    %1660 = vmatpush1.bf16.xpose.msra.mxu0 0
    %1661 = vmatprep.subr.bf16.mxu0 0
    %1662 = vmatpush1.bf16.xpose.msra.mxu0 0
    %1663 = vmatprep.subr.bf16.mxu0 0
    %1664 = vmatpush1.bf16.xpose.msra.mxu0 %v1647
    %1665 = vmatprep.subr.bf16.mxu0 0
    %1666 = vmatpush2.bf16.xpose.msra.mxu0 0
    %1667 = vmatprep.subr.bf16.mxu0 0
    %1668 = vmatpush2.bf16.xpose.msra.mxu0 0
    %1669 = vmatprep.subr.bf16.mxu0 0
    %1670 = vmatpush2.bf16.xpose.msra.mxu0 0
    %1671 = vmatprep.subr.bf16.mxu0 0
    %1672 = vmatpush2.bf16.xpose.msra.mxu0 0
    %1673 = vmatprep.subr.bf16.mxu0 0
    %1674 = vmatpush2.bf16.xpose.msra.mxu0 0
    %1675 = vmatprep.subr.bf16.mxu0 0
    %1676 = vmatpush2.bf16.xpose.msra.mxu0 0
    %1677 = vmatprep.subr.bf16.mxu0 0
    %1678 = vmatpush2.bf16.xpose.msra.mxu0 0
    %1679 = vmatprep.subr.bf16.mxu0 0
    %1680 = vmatpush2.bf16.xpose.msra.mxu0 0
    %1681 = vmatprep.mubr.bf16.mxu0 0
    %1682 = vmatmul.mubr.bf16.gmra.mxu0 %v1647
    %v1683 = vpop.f32.mrf.mxu0
    %v1684 = vadd.f32 0.0, %v1683
    %v1685 = vpop.f32.mrf.mxu0
    %v1686 = vpop.f32.mrf.mxu0
    %v1687 = vpop.f32.mrf.mxu0
    %1688 = vdwg.mxu0
    %v1690 = vsel %vm613, %v569, 0
    %1692 = vmatprep.subr.bf16.mxu0 0
    %1693 = vmatpush1.bf16.xpose.msra.mxu0 0
    %1694 = vmatprep.subr.bf16.mxu0 0
    %1695 = vmatpush1.bf16.xpose.msra.mxu0 0
    %1696 = vmatprep.subr.bf16.mxu0 0
    %1697 = vmatpush1.bf16.xpose.msra.mxu0 0
    %1698 = vmatprep.subr.bf16.mxu0 0
    %1699 = vmatpush1.bf16.xpose.msra.mxu0 0
    %1700 = vmatprep.subr.bf16.mxu0 0
    %1701 = vmatpush1.bf16.xpose.msra.mxu0 0
    %1702 = vmatprep.subr.bf16.mxu0 0
    %1703 = vmatpush1.bf16.xpose.msra.mxu0 0
    %1704 = vmatprep.subr.bf16.mxu0 0
    %1705 = vmatpush1.bf16.xpose.msra.mxu0 0
    %1706 = vmatprep.subr.bf16.mxu0 0
    %1707 = vmatpush1.bf16.xpose.msra.mxu0 %v1690
    %1708 = vmatprep.subr.bf16.mxu0 0
    %1709 = vmatpush2.bf16.xpose.msra.mxu0 0
    %1710 = vmatprep.subr.bf16.mxu0 0
    %1711 = vmatpush2.bf16.xpose.msra.mxu0 0
    %1712 = vmatprep.subr.bf16.mxu0 0
    %1713 = vmatpush2.bf16.xpose.msra.mxu0 0
    %1714 = vmatprep.subr.bf16.mxu0 0
    %1715 = vmatpush2.bf16.xpose.msra.mxu0 0
    %1716 = vmatprep.subr.bf16.mxu0 0
    %1717 = vmatpush2.bf16.xpose.msra.mxu0 0
    %1718 = vmatprep.subr.bf16.mxu0 0
    %1719 = vmatpush2.bf16.xpose.msra.mxu0 0
    %1720 = vmatprep.subr.bf16.mxu0 0
    %1721 = vmatpush2.bf16.xpose.msra.mxu0 0
    %1722 = vmatprep.subr.bf16.mxu0 0
    %1723 = vmatpush2.bf16.xpose.msra.mxu0 0
    %1724 = vmatprep.mubr.bf16.mxu0 0
    %1725 = vmatmul.mubr.bf16.gmra.mxu0 %v1690
    %v1726 = vpop.f32.mrf.mxu0
    %v1727 = vadd.f32 0.0, %v1726
    %v1728 = vpop.f32.mrf.mxu0
    %v1729 = vpop.f32.mrf.mxu0
    %v1730 = vpop.f32.mrf.mxu0
    %1731 = vdwg.mxu0
    %v1733 = vsel %vm613, %v570, 0
    %1735 = vmatprep.subr.bf16.mxu0 0
    %1736 = vmatpush1.bf16.xpose.msra.mxu0 0
    %1737 = vmatprep.subr.bf16.mxu0 0
    %1738 = vmatpush1.bf16.xpose.msra.mxu0 0
    %1739 = vmatprep.subr.bf16.mxu0 0
    %1740 = vmatpush1.bf16.xpose.msra.mxu0 0
    %1741 = vmatprep.subr.bf16.mxu0 0
    %1742 = vmatpush1.bf16.xpose.msra.mxu0 0
    %1743 = vmatprep.subr.bf16.mxu0 0
    %1744 = vmatpush1.bf16.xpose.msra.mxu0 0
    %1745 = vmatprep.subr.bf16.mxu0 0
    %1746 = vmatpush1.bf16.xpose.msra.mxu0 0
    %1747 = vmatprep.subr.bf16.mxu0 0
    %1748 = vmatpush1.bf16.xpose.msra.mxu0 0
    %1749 = vmatprep.subr.bf16.mxu0 0
    %1750 = vmatpush1.bf16.xpose.msra.mxu0 %v1733
    %1751 = vmatprep.subr.bf16.mxu0 0
    %1752 = vmatpush2.bf16.xpose.msra.mxu0 0
    %1753 = vmatprep.subr.bf16.mxu0 0
    %1754 = vmatpush2.bf16.xpose.msra.mxu0 0
    %1755 = vmatprep.subr.bf16.mxu0 0
    %1756 = vmatpush2.bf16.xpose.msra.mxu0 0
    %1757 = vmatprep.subr.bf16.mxu0 0
    %1758 = vmatpush2.bf16.xpose.msra.mxu0 0
    %1759 = vmatprep.subr.bf16.mxu0 0
    %1760 = vmatpush2.bf16.xpose.msra.mxu0 0
    %1761 = vmatprep.subr.bf16.mxu0 0
    %1762 = vmatpush2.bf16.xpose.msra.mxu0 0
    %1763 = vmatprep.subr.bf16.mxu0 0
    %1764 = vmatpush2.bf16.xpose.msra.mxu0 0
    %1765 = vmatprep.subr.bf16.mxu0 0
    %1766 = vmatpush2.bf16.xpose.msra.mxu0 0
    %1767 = vmatprep.mubr.bf16.mxu0 0
    %1768 = vmatmul.mubr.bf16.gmra.mxu0 %v1733
    %v1769 = vpop.f32.mrf.mxu0
    %v1770 = vadd.f32 0.0, %v1769
    %v1771 = vpop.f32.mrf.mxu0
    %v1772 = vpop.f32.mrf.mxu0
    %v1773 = vpop.f32.mrf.mxu0
    %1774 = vdwg.mxu0
    %v1776 = vsel %vm613, %v571, 0
    %1778 = vmatprep.subr.bf16.mxu0 0
    %1779 = vmatpush1.bf16.xpose.msra.mxu0 0
    %1780 = vmatprep.subr.bf16.mxu0 0
    %1781 = vmatpush1.bf16.xpose.msra.mxu0 0
    %1782 = vmatprep.subr.bf16.mxu0 0
    %1783 = vmatpush1.bf16.xpose.msra.mxu0 0
    %1784 = vmatprep.subr.bf16.mxu0 0
    %1785 = vmatpush1.bf16.xpose.msra.mxu0 0
    %1786 = vmatprep.subr.bf16.mxu0 0
    %1787 = vmatpush1.bf16.xpose.msra.mxu0 0
    %1788 = vmatprep.subr.bf16.mxu0 0
    %1789 = vmatpush1.bf16.xpose.msra.mxu0 0
    %1790 = vmatprep.subr.bf16.mxu0 0
    %1791 = vmatpush1.bf16.xpose.msra.mxu0 0
    %1792 = vmatprep.subr.bf16.mxu0 0
    %1793 = vmatpush1.bf16.xpose.msra.mxu0 %v1776
    %1794 = vmatprep.subr.bf16.mxu0 0
    %1795 = vmatpush2.bf16.xpose.msra.mxu0 0
    %1796 = vmatprep.subr.bf16.mxu0 0
    %1797 = vmatpush2.bf16.xpose.msra.mxu0 0
    %1798 = vmatprep.subr.bf16.mxu0 0
    %1799 = vmatpush2.bf16.xpose.msra.mxu0 0
    %1800 = vmatprep.subr.bf16.mxu0 0
    %1801 = vmatpush2.bf16.xpose.msra.mxu0 0
    %1802 = vmatprep.subr.bf16.mxu0 0
    %1803 = vmatpush2.bf16.xpose.msra.mxu0 0
    %1804 = vmatprep.subr.bf16.mxu0 0
    %1805 = vmatpush2.bf16.xpose.msra.mxu0 0
    %1806 = vmatprep.subr.bf16.mxu0 0
    %1807 = vmatpush2.bf16.xpose.msra.mxu0 0
    %1808 = vmatprep.subr.bf16.mxu0 0
    %1809 = vmatpush2.bf16.xpose.msra.mxu0 0
    %1810 = vmatprep.mubr.bf16.mxu0 0
    %1811 = vmatmul.mubr.bf16.gmra.mxu0 %v1776
    %v1812 = vpop.f32.mrf.mxu0
    %v1813 = vadd.f32 0.0, %v1812
    %v1814 = vpop.f32.mrf.mxu0
    %v1815 = vpop.f32.mrf.mxu0
    %v1816 = vpop.f32.mrf.mxu0
    %1817 = vdwg.mxu0
    %v1819 = vsel %vm613, %v572, 0
    %1821 = vmatprep.subr.bf16.mxu0 0
    %1822 = vmatpush1.bf16.xpose.msra.mxu0 0
    %1823 = vmatprep.subr.bf16.mxu0 0
    %1824 = vmatpush1.bf16.xpose.msra.mxu0 0
    %1825 = vmatprep.subr.bf16.mxu0 0
    %1826 = vmatpush1.bf16.xpose.msra.mxu0 0
    %1827 = vmatprep.subr.bf16.mxu0 0
    %1828 = vmatpush1.bf16.xpose.msra.mxu0 0
    %1829 = vmatprep.subr.bf16.mxu0 0
    %1830 = vmatpush1.bf16.xpose.msra.mxu0 0
    %1831 = vmatprep.subr.bf16.mxu0 0
    %1832 = vmatpush1.bf16.xpose.msra.mxu0 0
    %1833 = vmatprep.subr.bf16.mxu0 0
    %1834 = vmatpush1.bf16.xpose.msra.mxu0 0
    %1835 = vmatprep.subr.bf16.mxu0 0
    %1836 = vmatpush1.bf16.xpose.msra.mxu0 %v1819
    %1837 = vmatprep.subr.bf16.mxu0 0
    %1838 = vmatpush2.bf16.xpose.msra.mxu0 0
    %1839 = vmatprep.subr.bf16.mxu0 0
    %1840 = vmatpush2.bf16.xpose.msra.mxu0 0
    %1841 = vmatprep.subr.bf16.mxu0 0
    %1842 = vmatpush2.bf16.xpose.msra.mxu0 0
    %1843 = vmatprep.subr.bf16.mxu0 0
    %1844 = vmatpush2.bf16.xpose.msra.mxu0 0
    %1845 = vmatprep.subr.bf16.mxu0 0
    %1846 = vmatpush2.bf16.xpose.msra.mxu0 0
    %1847 = vmatprep.subr.bf16.mxu0 0
    %1848 = vmatpush2.bf16.xpose.msra.mxu0 0
    %1849 = vmatprep.subr.bf16.mxu0 0
    %1850 = vmatpush2.bf16.xpose.msra.mxu0 0
    %1851 = vmatprep.subr.bf16.mxu0 0
    %1852 = vmatpush2.bf16.xpose.msra.mxu0 0
    %1853 = vmatprep.mubr.bf16.mxu0 0
    %1854 = vmatmul.mubr.bf16.gmra.mxu0 %v1819
    %v1855 = vpop.f32.mrf.mxu0
    %v1856 = vadd.f32 0.0, %v1855
    %v1857 = vpop.f32.mrf.mxu0
    %v1858 = vpop.f32.mrf.mxu0
    %v1859 = vpop.f32.mrf.mxu0
    %1860 = vdwg.mxu0
    %v1862 = vsel %vm613, %v573, 0
    %1864 = vmatprep.subr.bf16.mxu0 0
    %1865 = vmatpush1.bf16.xpose.msra.mxu0 0
    %1866 = vmatprep.subr.bf16.mxu0 0
    %1867 = vmatpush1.bf16.xpose.msra.mxu0 0
    %1868 = vmatprep.subr.bf16.mxu0 0
    %1869 = vmatpush1.bf16.xpose.msra.mxu0 0
    %1870 = vmatprep.subr.bf16.mxu0 0
    %1871 = vmatpush1.bf16.xpose.msra.mxu0 0
    %1872 = vmatprep.subr.bf16.mxu0 0
    %1873 = vmatpush1.bf16.xpose.msra.mxu0 0
    %1874 = vmatprep.subr.bf16.mxu0 0
    %1875 = vmatpush1.bf16.xpose.msra.mxu0 0
    %1876 = vmatprep.subr.bf16.mxu0 0
    %1877 = vmatpush1.bf16.xpose.msra.mxu0 0
    %1878 = vmatprep.subr.bf16.mxu0 0
    %1879 = vmatpush1.bf16.xpose.msra.mxu0 %v1862
    %1880 = vmatprep.subr.bf16.mxu0 0
    %1881 = vmatpush2.bf16.xpose.msra.mxu0 0
    %1882 = vmatprep.subr.bf16.mxu0 0
    %1883 = vmatpush2.bf16.xpose.msra.mxu0 0
    %1884 = vmatprep.subr.bf16.mxu0 0
    %1885 = vmatpush2.bf16.xpose.msra.mxu0 0
    %1886 = vmatprep.subr.bf16.mxu0 0
    %1887 = vmatpush2.bf16.xpose.msra.mxu0 0
    %1888 = vmatprep.subr.bf16.mxu0 0
    %1889 = vmatpush2.bf16.xpose.msra.mxu0 0
    %1890 = vmatprep.subr.bf16.mxu0 0
    %1891 = vmatpush2.bf16.xpose.msra.mxu0 0
    %1892 = vmatprep.subr.bf16.mxu0 0
    %1893 = vmatpush2.bf16.xpose.msra.mxu0 0
    %1894 = vmatprep.subr.bf16.mxu0 0
    %1895 = vmatpush2.bf16.xpose.msra.mxu0 0
    %1896 = vmatprep.mubr.bf16.mxu0 0
    %1897 = vmatmul.mubr.bf16.gmra.mxu0 %v1862
    %v1898 = vpop.f32.mrf.mxu0
    %v1899 = vadd.f32 0.0, %v1898
    %v1900 = vpop.f32.mrf.mxu0
    %v1901 = vpop.f32.mrf.mxu0
    %v1902 = vpop.f32.mrf.mxu0
    %1903 = vdwg.mxu0
    %v1905 = vsel %vm613, %v574, 0
    %1907 = vmatprep.subr.bf16.mxu0 0
    %1908 = vmatpush1.bf16.xpose.msra.mxu0 0
    %1909 = vmatprep.subr.bf16.mxu0 0
    %1910 = vmatpush1.bf16.xpose.msra.mxu0 0
    %1911 = vmatprep.subr.bf16.mxu0 0
    %1912 = vmatpush1.bf16.xpose.msra.mxu0 0
    %1913 = vmatprep.subr.bf16.mxu0 0
    %1914 = vmatpush1.bf16.xpose.msra.mxu0 0
    %1915 = vmatprep.subr.bf16.mxu0 0
    %1916 = vmatpush1.bf16.xpose.msra.mxu0 0
    %1917 = vmatprep.subr.bf16.mxu0 0
    %1918 = vmatpush1.bf16.xpose.msra.mxu0 0
    %1919 = vmatprep.subr.bf16.mxu0 0
    %1920 = vmatpush1.bf16.xpose.msra.mxu0 0
    %1921 = vmatprep.subr.bf16.mxu0 0
    %1922 = vmatpush1.bf16.xpose.msra.mxu0 %v1905
    %1923 = vmatprep.subr.bf16.mxu0 0
    %1924 = vmatpush2.bf16.xpose.msra.mxu0 0
    %1925 = vmatprep.subr.bf16.mxu0 0
    %1926 = vmatpush2.bf16.xpose.msra.mxu0 0
    %1927 = vmatprep.subr.bf16.mxu0 0
    %1928 = vmatpush2.bf16.xpose.msra.mxu0 0
    %1929 = vmatprep.subr.bf16.mxu0 0
    %1930 = vmatpush2.bf16.xpose.msra.mxu0 0
    %1931 = vmatprep.subr.bf16.mxu0 0
    %1932 = vmatpush2.bf16.xpose.msra.mxu0 0
    %1933 = vmatprep.subr.bf16.mxu0 0
    %1934 = vmatpush2.bf16.xpose.msra.mxu0 0
    %1935 = vmatprep.subr.bf16.mxu0 0
    %1936 = vmatpush2.bf16.xpose.msra.mxu0 0
    %1937 = vmatprep.subr.bf16.mxu0 0
    %1938 = vmatpush2.bf16.xpose.msra.mxu0 0
    %1939 = vmatprep.mubr.bf16.mxu0 0
    %1940 = vmatmul.mubr.bf16.gmra.mxu0 %v1905
    %v1941 = vpop.f32.mrf.mxu0
    %v1942 = vadd.f32 0.0, %v1941
    %v1943 = vpop.f32.mrf.mxu0
    %v1944 = vpop.f32.mrf.mxu0
    %v1945 = vpop.f32.mrf.mxu0
    %1946 = vdwg.mxu0
    %v1948 = vsel %vm613, %v575, 0
    %1950 = vmatprep.subr.bf16.mxu0 0
    %1951 = vmatpush1.bf16.xpose.msra.mxu0 0
    %1952 = vmatprep.subr.bf16.mxu0 0
    %1953 = vmatpush1.bf16.xpose.msra.mxu0 0
    %1954 = vmatprep.subr.bf16.mxu0 0
    %1955 = vmatpush1.bf16.xpose.msra.mxu0 0
    %1956 = vmatprep.subr.bf16.mxu0 0
    %1957 = vmatpush1.bf16.xpose.msra.mxu0 0
    %1958 = vmatprep.subr.bf16.mxu0 0
    %1959 = vmatpush1.bf16.xpose.msra.mxu0 0
    %1960 = vmatprep.subr.bf16.mxu0 0
    %1961 = vmatpush1.bf16.xpose.msra.mxu0 0
    %1962 = vmatprep.subr.bf16.mxu0 0
    %1963 = vmatpush1.bf16.xpose.msra.mxu0 0
    %1964 = vmatprep.subr.bf16.mxu0 0
    %1965 = vmatpush1.bf16.xpose.msra.mxu0 %v1948
    %1966 = vmatprep.subr.bf16.mxu0 0
    %1967 = vmatpush2.bf16.xpose.msra.mxu0 0
    %1968 = vmatprep.subr.bf16.mxu0 0
    %1969 = vmatpush2.bf16.xpose.msra.mxu0 0
    %1970 = vmatprep.subr.bf16.mxu0 0
    %1971 = vmatpush2.bf16.xpose.msra.mxu0 0
    %1972 = vmatprep.subr.bf16.mxu0 0
    %1973 = vmatpush2.bf16.xpose.msra.mxu0 0
    %1974 = vmatprep.subr.bf16.mxu0 0
    %1975 = vmatpush2.bf16.xpose.msra.mxu0 0
    %1976 = vmatprep.subr.bf16.mxu0 0
    %1977 = vmatpush2.bf16.xpose.msra.mxu0 0
    %1978 = vmatprep.subr.bf16.mxu0 0
    %1979 = vmatpush2.bf16.xpose.msra.mxu0 0
    %1980 = vmatprep.subr.bf16.mxu0 0
    %1981 = vmatpush2.bf16.xpose.msra.mxu0 0
    %1982 = vmatprep.mubr.bf16.mxu0 0
    %1983 = vmatmul.mubr.bf16.gmra.mxu0 %v1948
    %v1984 = vpop.f32.mrf.mxu0
    %v1985 = vadd.f32 0.0, %v1984
    %v1986 = vpop.f32.mrf.mxu0
    %v1987 = vpop.f32.mrf.mxu0
    %v1988 = vpop.f32.mrf.mxu0
    %1989 = vdwg.mxu0
    %v1990 = vsel %vm612, 1, 0
    %vm1991 = vcmp.eq.s32.totalorder %v1990, 1
    %v1992 = vsel %vm1991, %v652, -1e+30
    %v1993 = vsel %vm1991, %v695, -1e+30
    %v1994 = vsel %vm1991, %v738, -1e+30
    %v1995 = vsel %vm1991, %v781, -1e+30
    %v1996 = vsel %vm1991, %v824, -1e+30
    %v1997 = vsel %vm1991, %v867, -1e+30
    %v1998 = vsel %vm1991, %v910, -1e+30
    %v1999 = vsel %vm1991, %v953, -1e+30
    %v2000 = vsel %vm1991, %v996, -1e+30
    %v2001 = vsel %vm1991, %v1039, -1e+30
    %v2002 = vsel %vm1991, %v1082, -1e+30
    %v2003 = vsel %vm1991, %v1125, -1e+30
    %v2004 = vsel %vm1991, %v1168, -1e+30
    %v2005 = vsel %vm1991, %v1211, -1e+30
    %v2006 = vsel %vm1991, %v1254, -1e+30
    %v2007 = vsel %vm1991, %v1297, -1e+30
    %v2008 = vsel %vm1991, %v1340, -1e+30
    %v2009 = vsel %vm1991, %v1383, -1e+30
    %v2010 = vsel %vm1991, %v1426, -1e+30
    %v2011 = vsel %vm1991, %v1469, -1e+30
    %v2012 = vsel %vm1991, %v1512, -1e+30
    %v2013 = vsel %vm1991, %v1555, -1e+30
    %v2014 = vsel %vm1991, %v1598, -1e+30
    %v2015 = vsel %vm1991, %v1641, -1e+30
    %v2016 = vsel %vm1991, %v1684, -1e+30
    %v2017 = vsel %vm1991, %v1727, -1e+30
    %v2018 = vsel %vm1991, %v1770, -1e+30
    %v2019 = vsel %vm1991, %v1813, -1e+30
    %v2020 = vsel %vm1991, %v1856, -1e+30
    %v2021 = vsel %vm1991, %v1899, -1e+30
    %v2022 = vsel %vm1991, %v1942, -1e+30
    %v2023 = vsel %vm1991, %v1985, -1e+30
    %vm2024 = vcmask 64512
    %v2025 = vsel %vm2024, %v1992, -inf
    %2026 = vmax.xlane.f32.xlu0 %v2025
    %v2027 = vpop.xlane.xlu0 %2026
    %v2028 = vsel %vm2024, %v1993, -inf
    %2029 = vmax.xlane.f32.xlu0 %v2028
    %v2030 = vpop.xlane.xlu0 %2029
    %v2031 = vsel %vm2024, %v1994, -inf
    %2032 = vmax.xlane.f32.xlu0 %v2031
    %v2033 = vpop.xlane.xlu0 %2032
    %v2034 = vsel %vm2024, %v1995, -inf
    %2035 = vmax.xlane.f32.xlu0 %v2034
    %v2036 = vpop.xlane.xlu0 %2035
    %v2037 = vsel %vm2024, %v1996, -inf
    %2038 = vmax.xlane.f32.xlu0 %v2037
    %v2039 = vpop.xlane.xlu0 %2038
    %v2040 = vsel %vm2024, %v1997, -inf
    %2041 = vmax.xlane.f32.xlu0 %v2040
    %v2042 = vpop.xlane.xlu0 %2041
    %v2043 = vsel %vm2024, %v1998, -inf
    %2044 = vmax.xlane.f32.xlu0 %v2043
    %v2045 = vpop.xlane.xlu0 %2044
    %v2046 = vsel %vm2024, %v1999, -inf
    %2047 = vmax.xlane.f32.xlu0 %v2046
    %v2048 = vpop.xlane.xlu0 %2047
    %v2049 = vsel %vm2024, %v2000, -inf
    %2050 = vmax.xlane.f32.xlu0 %v2049
    %v2051 = vpop.xlane.xlu0 %2050
    %v2052 = vsel %vm2024, %v2001, -inf
    %2053 = vmax.xlane.f32.xlu0 %v2052
    %v2054 = vpop.xlane.xlu0 %2053
    %v2055 = vsel %vm2024, %v2002, -inf
    %2056 = vmax.xlane.f32.xlu0 %v2055
    %v2057 = vpop.xlane.xlu0 %2056
    %v2058 = vsel %vm2024, %v2003, -inf
    %2059 = vmax.xlane.f32.xlu0 %v2058
    %v2060 = vpop.xlane.xlu0 %2059
    %v2061 = vsel %vm2024, %v2004, -inf
    %2062 = vmax.xlane.f32.xlu0 %v2061
    %v2063 = vpop.xlane.xlu0 %2062
    %v2064 = vsel %vm2024, %v2005, -inf
    %2065 = vmax.xlane.f32.xlu0 %v2064
    %v2066 = vpop.xlane.xlu0 %2065
    %v2067 = vsel %vm2024, %v2006, -inf
    %2068 = vmax.xlane.f32.xlu0 %v2067
    %v2069 = vpop.xlane.xlu0 %2068
    %v2070 = vsel %vm2024, %v2007, -inf
    %2071 = vmax.xlane.f32.xlu0 %v2070
    %v2072 = vpop.xlane.xlu0 %2071
    %v2073 = vsel %vm2024, %v2008, -inf
    %2074 = vmax.xlane.f32.xlu0 %v2073
    %v2075 = vpop.xlane.xlu0 %2074
    %v2076 = vsel %vm2024, %v2009, -inf
    %2077 = vmax.xlane.f32.xlu0 %v2076
    %v2078 = vpop.xlane.xlu0 %2077
    %v2079 = vsel %vm2024, %v2010, -inf
    %2080 = vmax.xlane.f32.xlu0 %v2079
    %v2081 = vpop.xlane.xlu0 %2080
    %v2082 = vsel %vm2024, %v2011, -inf
    %2083 = vmax.xlane.f32.xlu0 %v2082
    %v2084 = vpop.xlane.xlu0 %2083
    %v2085 = vsel %vm2024, %v2012, -inf
    %2086 = vmax.xlane.f32.xlu0 %v2085
    %v2087 = vpop.xlane.xlu0 %2086
    %v2088 = vsel %vm2024, %v2013, -inf
    %2089 = vmax.xlane.f32.xlu0 %v2088
    %v2090 = vpop.xlane.xlu0 %2089
    %v2091 = vsel %vm2024, %v2014, -inf
    %2092 = vmax.xlane.f32.xlu0 %v2091
    %v2093 = vpop.xlane.xlu0 %2092
    %v2094 = vsel %vm2024, %v2015, -inf
    %2095 = vmax.xlane.f32.xlu0 %v2094
    %v2096 = vpop.xlane.xlu0 %2095
    %v2097 = vsel %vm2024, %v2016, -inf
    %2098 = vmax.xlane.f32.xlu0 %v2097
    %v2099 = vpop.xlane.xlu0 %2098
    %v2100 = vsel %vm2024, %v2017, -inf
    %2101 = vmax.xlane.f32.xlu0 %v2100
    %v2102 = vpop.xlane.xlu0 %2101
    %v2103 = vsel %vm2024, %v2018, -inf
    %2104 = vmax.xlane.f32.xlu0 %v2103
    %v2105 = vpop.xlane.xlu0 %2104
    %v2106 = vsel %vm2024, %v2019, -inf
    %2107 = vmax.xlane.f32.xlu0 %v2106
    %v2108 = vpop.xlane.xlu0 %2107
    %v2109 = vsel %vm2024, %v2020, -inf
    %2110 = vmax.xlane.f32.xlu0 %v2109
    %v2111 = vpop.xlane.xlu0 %2110
    %v2112 = vsel %vm2024, %v2021, -inf
    %2113 = vmax.xlane.f32.xlu0 %v2112
    %v2114 = vpop.xlane.xlu0 %2113
    %v2115 = vsel %vm2024, %v2022, -inf
    %2116 = vmax.xlane.f32.xlu0 %v2115
    %v2117 = vpop.xlane.xlu0 %2116
    %v2118 = vsel %vm2024, %v2023, -inf
    %2119 = vmax.xlane.f32.xlu0 %v2118
    %v2120 = vpop.xlane.xlu0 %2119
    %v2121 = vsub.f32 %v1992, %v2027
    %v2122 = vsub.f32 %v1993, %v2030
    %v2123 = vsub.f32 %v1994, %v2033
    %v2124 = vsub.f32 %v1995, %v2036
    %v2125 = vsub.f32 %v1996, %v2039
    %v2126 = vsub.f32 %v1997, %v2042
    %v2127 = vsub.f32 %v1998, %v2045
    %v2128 = vsub.f32 %v1999, %v2048
    %v2129 = vsub.f32 %v2000, %v2051
    %v2130 = vsub.f32 %v2001, %v2054
    %v2131 = vsub.f32 %v2002, %v2057
    %v2132 = vsub.f32 %v2003, %v2060
    %v2133 = vsub.f32 %v2004, %v2063
    %v2134 = vsub.f32 %v2005, %v2066
    %v2135 = vsub.f32 %v2006, %v2069
    %v2136 = vsub.f32 %v2007, %v2072
    %v2137 = vsub.f32 %v2008, %v2075
    %v2138 = vsub.f32 %v2009, %v2078
    %v2139 = vsub.f32 %v2010, %v2081
    %v2140 = vsub.f32 %v2011, %v2084
    %v2141 = vsub.f32 %v2012, %v2087
    %v2142 = vsub.f32 %v2013, %v2090
    %v2143 = vsub.f32 %v2014, %v2093
    %v2144 = vsub.f32 %v2015, %v2096
    %v2145 = vsub.f32 %v2016, %v2099
    %v2146 = vsub.f32 %v2017, %v2102
    %v2147 = vsub.f32 %v2018, %v2105
    %v2148 = vsub.f32 %v2019, %v2108
    %v2149 = vsub.f32 %v2020, %v2111
    %v2150 = vsub.f32 %v2021, %v2114
    %v2151 = vsub.f32 %v2022, %v2117
    %v2152 = vsub.f32 %v2023, %v2120
    %v2153 = vmul.f32 %v2121, 1.442695
    %v2154 = vpow.pop %v2153
    %v2155 = vmul.f32 %v2122, 1.442695
    %v2156 = vpow.pop %v2155
    %v2157 = vmul.f32 %v2123, 1.442695
    %v2158 = vpow.pop %v2157
    %v2159 = vmul.f32 %v2124, 1.442695
    %v2160 = vpow.pop %v2159
    %v2161 = vmul.f32 %v2125, 1.442695
    %v2162 = vpow.pop %v2161
    %v2163 = vmul.f32 %v2126, 1.442695
    %v2164 = vpow.pop %v2163
    %v2165 = vmul.f32 %v2127, 1.442695
    %v2166 = vpow.pop %v2165
    %v2167 = vmul.f32 %v2128, 1.442695
    %v2168 = vpow.pop %v2167
    %v2169 = vmul.f32 %v2129, 1.442695
    %v2170 = vpow.pop %v2169
    %v2171 = vmul.f32 %v2130, 1.442695
    %v2172 = vpow.pop %v2171
    %v2173 = vmul.f32 %v2131, 1.442695
    %v2174 = vpow.pop %v2173
    %v2175 = vmul.f32 %v2132, 1.442695
    %v2176 = vpow.pop %v2175
    %v2177 = vmul.f32 %v2133, 1.442695
    %v2178 = vpow.pop %v2177
    %v2179 = vmul.f32 %v2134, 1.442695
    %v2180 = vpow.pop %v2179
    %v2181 = vmul.f32 %v2135, 1.442695
    %v2182 = vpow.pop %v2181
    %v2183 = vmul.f32 %v2136, 1.442695
    %v2184 = vpow.pop %v2183
    %v2185 = vmul.f32 %v2137, 1.442695
    %v2186 = vpow.pop %v2185
    %v2187 = vmul.f32 %v2138, 1.442695
    %v2188 = vpow.pop %v2187
    %v2189 = vmul.f32 %v2139, 1.442695
    %v2190 = vpow.pop %v2189
    %v2191 = vmul.f32 %v2140, 1.442695
    %v2192 = vpow.pop %v2191
    %v2193 = vmul.f32 %v2141, 1.442695
    %v2194 = vpow.pop %v2193
    %v2195 = vmul.f32 %v2142, 1.442695
    %v2196 = vpow.pop %v2195
    %v2197 = vmul.f32 %v2143, 1.442695
    %v2198 = vpow.pop %v2197
    %v2199 = vmul.f32 %v2144, 1.442695
    %v2200 = vpow.pop %v2199
    %v2201 = vmul.f32 %v2145, 1.442695
    %v2202 = vpow.pop %v2201
    %v2203 = vmul.f32 %v2146, 1.442695
    %v2204 = vpow.pop %v2203
    %v2205 = vmul.f32 %v2147, 1.442695
    %v2206 = vpow.pop %v2205
    %v2207 = vmul.f32 %v2148, 1.442695
    %v2208 = vpow.pop %v2207
    %v2209 = vmul.f32 %v2149, 1.442695
    %v2210 = vpow.pop %v2209
    %v2211 = vmul.f32 %v2150, 1.442695
    %v2212 = vpow.pop %v2211
    %v2213 = vmul.f32 %v2151, 1.442695
    %v2214 = vpow.pop %v2213
    %v2215 = vmul.f32 %v2152, 1.442695
    %v2216 = vpow.pop %v2215
    %v2217 = vsel %vm2024, %v2154, 0.0
    %2218 = vadd.xlane.f32.xlu0 %v2217
    %v2219 = vpop.xlane.xlu0 %2218
    %v2220 = vsel %vm2024, %v2156, 0.0
    %2221 = vadd.xlane.f32.xlu0 %v2220
    %v2222 = vpop.xlane.xlu0 %2221
    %v2223 = vsel %vm2024, %v2158, 0.0
    %2224 = vadd.xlane.f32.xlu0 %v2223
    %v2225 = vpop.xlane.xlu0 %2224
    %v2226 = vsel %vm2024, %v2160, 0.0
    %2227 = vadd.xlane.f32.xlu0 %v2226
    %v2228 = vpop.xlane.xlu0 %2227
    %v2229 = vsel %vm2024, %v2162, 0.0
    %2230 = vadd.xlane.f32.xlu0 %v2229
    %v2231 = vpop.xlane.xlu0 %2230
    %v2232 = vsel %vm2024, %v2164, 0.0
    %2233 = vadd.xlane.f32.xlu0 %v2232
    %v2234 = vpop.xlane.xlu0 %2233
    %v2235 = vsel %vm2024, %v2166, 0.0
    %2236 = vadd.xlane.f32.xlu0 %v2235
    %v2237 = vpop.xlane.xlu0 %2236
    %v2238 = vsel %vm2024, %v2168, 0.0
    %2239 = vadd.xlane.f32.xlu0 %v2238
    %v2240 = vpop.xlane.xlu0 %2239
    %v2241 = vsel %vm2024, %v2170, 0.0
    %2242 = vadd.xlane.f32.xlu0 %v2241
    %v2243 = vpop.xlane.xlu0 %2242
    %v2244 = vsel %vm2024, %v2172, 0.0
    %2245 = vadd.xlane.f32.xlu0 %v2244
    %v2246 = vpop.xlane.xlu0 %2245
    %v2247 = vsel %vm2024, %v2174, 0.0
    %2248 = vadd.xlane.f32.xlu0 %v2247
    %v2249 = vpop.xlane.xlu0 %2248
    %v2250 = vsel %vm2024, %v2176, 0.0
    %2251 = vadd.xlane.f32.xlu0 %v2250
    %v2252 = vpop.xlane.xlu0 %2251
    %v2253 = vsel %vm2024, %v2178, 0.0
    %2254 = vadd.xlane.f32.xlu0 %v2253
    %v2255 = vpop.xlane.xlu0 %2254
    %v2256 = vsel %vm2024, %v2180, 0.0
    %2257 = vadd.xlane.f32.xlu0 %v2256
    %v2258 = vpop.xlane.xlu0 %2257
    %v2259 = vsel %vm2024, %v2182, 0.0
    %2260 = vadd.xlane.f32.xlu0 %v2259
    %v2261 = vpop.xlane.xlu0 %2260
    %v2262 = vsel %vm2024, %v2184, 0.0
    %2263 = vadd.xlane.f32.xlu0 %v2262
    %v2264 = vpop.xlane.xlu0 %2263
    %v2265 = vsel %vm2024, %v2186, 0.0
    %2266 = vadd.xlane.f32.xlu0 %v2265
    %v2267 = vpop.xlane.xlu0 %2266
    %v2268 = vsel %vm2024, %v2188, 0.0
    %2269 = vadd.xlane.f32.xlu0 %v2268
    %v2270 = vpop.xlane.xlu0 %2269
    %v2271 = vsel %vm2024, %v2190, 0.0
    %2272 = vadd.xlane.f32.xlu0 %v2271
    %v2273 = vpop.xlane.xlu0 %2272
    %v2274 = vsel %vm2024, %v2192, 0.0
    %2275 = vadd.xlane.f32.xlu0 %v2274
    %v2276 = vpop.xlane.xlu0 %2275
    %v2277 = vsel %vm2024, %v2194, 0.0
    %2278 = vadd.xlane.f32.xlu0 %v2277
    %v2279 = vpop.xlane.xlu0 %2278
    %v2280 = vsel %vm2024, %v2196, 0.0
    %2281 = vadd.xlane.f32.xlu0 %v2280
    %v2282 = vpop.xlane.xlu0 %2281
    %v2283 = vsel %vm2024, %v2198, 0.0
    %2284 = vadd.xlane.f32.xlu0 %v2283
    %v2285 = vpop.xlane.xlu0 %2284
    %v2286 = vsel %vm2024, %v2200, 0.0
    %2287 = vadd.xlane.f32.xlu0 %v2286
    %v2288 = vpop.xlane.xlu0 %2287
    %v2289 = vsel %vm2024, %v2202, 0.0
    %2290 = vadd.xlane.f32.xlu0 %v2289
    %v2291 = vpop.xlane.xlu0 %2290
    %v2292 = vsel %vm2024, %v2204, 0.0
    %2293 = vadd.xlane.f32.xlu0 %v2292
    %v2294 = vpop.xlane.xlu0 %2293
    %v2295 = vsel %vm2024, %v2206, 0.0
    %2296 = vadd.xlane.f32.xlu0 %v2295
    %v2297 = vpop.xlane.xlu0 %2296
    %v2298 = vsel %vm2024, %v2208, 0.0
    %2299 = vadd.xlane.f32.xlu0 %v2298
    %v2300 = vpop.xlane.xlu0 %2299
    %v2301 = vsel %vm2024, %v2210, 0.0
    %2302 = vadd.xlane.f32.xlu0 %v2301
    %v2303 = vpop.xlane.xlu0 %2302
    %v2304 = vsel %vm2024, %v2212, 0.0
    %2305 = vadd.xlane.f32.xlu0 %v2304
    %v2306 = vpop.xlane.xlu0 %2305
    %v2307 = vsel %vm2024, %v2214, 0.0
    %2308 = vadd.xlane.f32.xlu0 %v2307
    %v2309 = vpop.xlane.xlu0 %2308
    %v2310 = vsel %vm2024, %v2216, 0.0
    %2311 = vadd.xlane.f32.xlu0 %v2310
    %v2312 = vpop.xlane.xlu0 %2311
    %v2313 = vpack.c.bf16 %v2154, %v2154
    %v2314 = vpack.c.bf16 %v2156, %v2156
    %v2315 = vpack.c.bf16 %v2158, %v2158
    %v2316 = vpack.c.bf16 %v2160, %v2160
    %v2317 = vpack.c.bf16 %v2162, %v2162
    %v2318 = vpack.c.bf16 %v2164, %v2164
    %v2319 = vpack.c.bf16 %v2166, %v2166
    %v2320 = vpack.c.bf16 %v2168, %v2168
    %v2321 = vpack.c.bf16 %v2170, %v2170
    %v2322 = vpack.c.bf16 %v2172, %v2172
    %v2323 = vpack.c.bf16 %v2174, %v2174
    %v2324 = vpack.c.bf16 %v2176, %v2176
    %v2325 = vpack.c.bf16 %v2178, %v2178
    %v2326 = vpack.c.bf16 %v2180, %v2180
    %v2327 = vpack.c.bf16 %v2182, %v2182
    %v2328 = vpack.c.bf16 %v2184, %v2184
    %v2329 = vpack.c.bf16 %v2186, %v2186
    %v2330 = vpack.c.bf16 %v2188, %v2188
    %v2331 = vpack.c.bf16 %v2190, %v2190
    %v2332 = vpack.c.bf16 %v2192, %v2192
    %v2333 = vpack.c.bf16 %v2194, %v2194
    %v2334 = vpack.c.bf16 %v2196, %v2196
    %v2335 = vpack.c.bf16 %v2198, %v2198
    %v2336 = vpack.c.bf16 %v2200, %v2200
    %v2337 = vpack.c.bf16 %v2202, %v2202
    %v2338 = vpack.c.bf16 %v2204, %v2204
    %v2339 = vpack.c.bf16 %v2206, %v2206
    %v2340 = vpack.c.bf16 %v2208, %v2208
    %v2341 = vpack.c.bf16 %v2210, %v2210
    %v2342 = vpack.c.bf16 %v2212, %v2212
    %v2343 = vpack.c.bf16 %v2214, %v2214
    %v2344 = vpack.c.bf16 %v2216, %v2216
    %2346 = vrot.lane.b32.xlu0 %v576, 96
    %v2347 = vpop.permute.xlu0 %2346
    %v2349 = vsel %vm2024, %v2313, 0
    %vm2351 = vcmask 1043456
    %v2353 = vsel %vm2351, %v2347, 0
    %2355 = vmatprep.subr.bf16.mxu0 0
    %2356 = vmatpush1.bf16.msra.mxu0 0
    %2357 = vmatprep.subr.bf16.mxu0 0
    %2358 = vmatpush1.bf16.msra.mxu0 0
    %2359 = vmatprep.subr.bf16.mxu0 0
    %2360 = vmatpush1.bf16.msra.mxu0 0
    %2361 = vmatprep.subr.bf16.mxu0 0
    %2362 = vmatpush1.bf16.msra.mxu0 0
    %2363 = vmatprep.subr.bf16.mxu0 0
    %2364 = vmatpush1.bf16.msra.mxu0 0
    %2365 = vmatprep.subr.bf16.mxu0 0
    %2366 = vmatpush1.bf16.msra.mxu0 0
    %2367 = vmatprep.subr.bf16.mxu0 0
    %2368 = vmatpush1.bf16.msra.mxu0 0
    %2369 = vmatprep.subr.bf16.mxu0 0
    %2370 = vmatpush1.bf16.msra.mxu0 %v2353
    %2371 = vmatprep.subr.bf16.mxu0 0
    %2372 = vmatpush2.bf16.msra.mxu0 0
    %2373 = vmatprep.subr.bf16.mxu0 0
    %2374 = vmatpush2.bf16.msra.mxu0 0
    %2375 = vmatprep.subr.bf16.mxu0 0
    %2376 = vmatpush2.bf16.msra.mxu0 0
    %2377 = vmatprep.subr.bf16.mxu0 0
    %2378 = vmatpush2.bf16.msra.mxu0 0
    %2379 = vmatprep.subr.bf16.mxu0 0
    %2380 = vmatpush2.bf16.msra.mxu0 0
    %2381 = vmatprep.subr.bf16.mxu0 0
    %2382 = vmatpush2.bf16.msra.mxu0 0
    %2383 = vmatprep.subr.bf16.mxu0 0
    %2384 = vmatpush2.bf16.msra.mxu0 0
    %2385 = vmatprep.subr.bf16.mxu0 0
    %2386 = vmatpush2.bf16.msra.mxu0 0
    %2387 = vmatprep.mubr.bf16.mxu0 0
    %2388 = vmatmul.mubr.bf16.gmra.mxu0 %v2349
    %v2389 = vpop.f32.mrf.mxu0
    %v2390 = vadd.f32 0.0, %v2389
    %v2391 = vpop.f32.mrf.mxu0
    %v2392 = vpop.f32.mrf.mxu0
    %v2393 = vpop.f32.mrf.mxu0
    %2394 = vdwg.mxu0
    %2396 = vrot.lane.b32.xlu0 %v577, 96
    %v2397 = vpop.permute.xlu0 %2396
    %v2399 = vsel %vm2024, %v2314, 0
    %v2402 = vsel %vm2351, %v2397, 0
    %2404 = vmatprep.subr.bf16.mxu0 0
    %2405 = vmatpush1.bf16.msra.mxu0 0
    %2406 = vmatprep.subr.bf16.mxu0 0
    %2407 = vmatpush1.bf16.msra.mxu0 0
    %2408 = vmatprep.subr.bf16.mxu0 0
    %2409 = vmatpush1.bf16.msra.mxu0 0
    %2410 = vmatprep.subr.bf16.mxu0 0
    %2411 = vmatpush1.bf16.msra.mxu0 0
    %2412 = vmatprep.subr.bf16.mxu0 0
    %2413 = vmatpush1.bf16.msra.mxu0 0
    %2414 = vmatprep.subr.bf16.mxu0 0
    %2415 = vmatpush1.bf16.msra.mxu0 0
    %2416 = vmatprep.subr.bf16.mxu0 0
    %2417 = vmatpush1.bf16.msra.mxu0 0
    %2418 = vmatprep.subr.bf16.mxu0 0
    %2419 = vmatpush1.bf16.msra.mxu0 %v2402
    %2420 = vmatprep.subr.bf16.mxu0 0
    %2421 = vmatpush2.bf16.msra.mxu0 0
    %2422 = vmatprep.subr.bf16.mxu0 0
    %2423 = vmatpush2.bf16.msra.mxu0 0
    %2424 = vmatprep.subr.bf16.mxu0 0
    %2425 = vmatpush2.bf16.msra.mxu0 0
    %2426 = vmatprep.subr.bf16.mxu0 0
    %2427 = vmatpush2.bf16.msra.mxu0 0
    %2428 = vmatprep.subr.bf16.mxu0 0
    %2429 = vmatpush2.bf16.msra.mxu0 0
    %2430 = vmatprep.subr.bf16.mxu0 0
    %2431 = vmatpush2.bf16.msra.mxu0 0
    %2432 = vmatprep.subr.bf16.mxu0 0
    %2433 = vmatpush2.bf16.msra.mxu0 0
    %2434 = vmatprep.subr.bf16.mxu0 0
    %2435 = vmatpush2.bf16.msra.mxu0 0
    %2436 = vmatprep.mubr.bf16.mxu0 0
    %2437 = vmatmul.mubr.bf16.gmra.mxu0 %v2399
    %v2438 = vpop.f32.mrf.mxu0
    %v2439 = vadd.f32 0.0, %v2438
    %v2440 = vpop.f32.mrf.mxu0
    %v2441 = vpop.f32.mrf.mxu0
    %v2442 = vpop.f32.mrf.mxu0
    %2443 = vdwg.mxu0
    %2445 = vrot.lane.b32.xlu0 %v578, 96
    %v2446 = vpop.permute.xlu0 %2445
    %v2448 = vsel %vm2024, %v2315, 0
    %v2451 = vsel %vm2351, %v2446, 0
    %2453 = vmatprep.subr.bf16.mxu0 0
    %2454 = vmatpush1.bf16.msra.mxu0 0
    %2455 = vmatprep.subr.bf16.mxu0 0
    %2456 = vmatpush1.bf16.msra.mxu0 0
    %2457 = vmatprep.subr.bf16.mxu0 0
    %2458 = vmatpush1.bf16.msra.mxu0 0
    %2459 = vmatprep.subr.bf16.mxu0 0
    %2460 = vmatpush1.bf16.msra.mxu0 0
    %2461 = vmatprep.subr.bf16.mxu0 0
    %2462 = vmatpush1.bf16.msra.mxu0 0
    %2463 = vmatprep.subr.bf16.mxu0 0
    %2464 = vmatpush1.bf16.msra.mxu0 0
    %2465 = vmatprep.subr.bf16.mxu0 0
    %2466 = vmatpush1.bf16.msra.mxu0 0
    %2467 = vmatprep.subr.bf16.mxu0 0
    %2468 = vmatpush1.bf16.msra.mxu0 %v2451
    %2469 = vmatprep.subr.bf16.mxu0 0
    %2470 = vmatpush2.bf16.msra.mxu0 0
    %2471 = vmatprep.subr.bf16.mxu0 0
    %2472 = vmatpush2.bf16.msra.mxu0 0
    %2473 = vmatprep.subr.bf16.mxu0 0
    %2474 = vmatpush2.bf16.msra.mxu0 0
    %2475 = vmatprep.subr.bf16.mxu0 0
    %2476 = vmatpush2.bf16.msra.mxu0 0
    %2477 = vmatprep.subr.bf16.mxu0 0
    %2478 = vmatpush2.bf16.msra.mxu0 0
    %2479 = vmatprep.subr.bf16.mxu0 0
    %2480 = vmatpush2.bf16.msra.mxu0 0
    %2481 = vmatprep.subr.bf16.mxu0 0
    %2482 = vmatpush2.bf16.msra.mxu0 0
    %2483 = vmatprep.subr.bf16.mxu0 0
    %2484 = vmatpush2.bf16.msra.mxu0 0
    %2485 = vmatprep.mubr.bf16.mxu0 0
    %2486 = vmatmul.mubr.bf16.gmra.mxu0 %v2448
    %v2487 = vpop.f32.mrf.mxu0
    %v2488 = vadd.f32 0.0, %v2487
    %v2489 = vpop.f32.mrf.mxu0
    %v2490 = vpop.f32.mrf.mxu0
    %v2491 = vpop.f32.mrf.mxu0
    %2492 = vdwg.mxu0
    %2494 = vrot.lane.b32.xlu0 %v579, 96
    %v2495 = vpop.permute.xlu0 %2494
    %v2497 = vsel %vm2024, %v2316, 0
    %v2500 = vsel %vm2351, %v2495, 0
    %2502 = vmatprep.subr.bf16.mxu0 0
    %2503 = vmatpush1.bf16.msra.mxu0 0
    %2504 = vmatprep.subr.bf16.mxu0 0
    %2505 = vmatpush1.bf16.msra.mxu0 0
    %2506 = vmatprep.subr.bf16.mxu0 0
    %2507 = vmatpush1.bf16.msra.mxu0 0
    %2508 = vmatprep.subr.bf16.mxu0 0
    %2509 = vmatpush1.bf16.msra.mxu0 0
    %2510 = vmatprep.subr.bf16.mxu0 0
    %2511 = vmatpush1.bf16.msra.mxu0 0
    %2512 = vmatprep.subr.bf16.mxu0 0
    %2513 = vmatpush1.bf16.msra.mxu0 0
    %2514 = vmatprep.subr.bf16.mxu0 0
    %2515 = vmatpush1.bf16.msra.mxu0 0
    %2516 = vmatprep.subr.bf16.mxu0 0
    %2517 = vmatpush1.bf16.msra.mxu0 %v2500
    %2518 = vmatprep.subr.bf16.mxu0 0
    %2519 = vmatpush2.bf16.msra.mxu0 0
    %2520 = vmatprep.subr.bf16.mxu0 0
    %2521 = vmatpush2.bf16.msra.mxu0 0
    %2522 = vmatprep.subr.bf16.mxu0 0
    %2523 = vmatpush2.bf16.msra.mxu0 0
    %2524 = vmatprep.subr.bf16.mxu0 0
    %2525 = vmatpush2.bf16.msra.mxu0 0
    %2526 = vmatprep.subr.bf16.mxu0 0
    %2527 = vmatpush2.bf16.msra.mxu0 0
    %2528 = vmatprep.subr.bf16.mxu0 0
    %2529 = vmatpush2.bf16.msra.mxu0 0
    %2530 = vmatprep.subr.bf16.mxu0 0
    %2531 = vmatpush2.bf16.msra.mxu0 0
    %2532 = vmatprep.subr.bf16.mxu0 0
    %2533 = vmatpush2.bf16.msra.mxu0 0
    %2534 = vmatprep.mubr.bf16.mxu0 0
    %2535 = vmatmul.mubr.bf16.gmra.mxu0 %v2497
    %v2536 = vpop.f32.mrf.mxu0
    %v2537 = vadd.f32 0.0, %v2536
    %v2538 = vpop.f32.mrf.mxu0
    %v2539 = vpop.f32.mrf.mxu0
    %v2540 = vpop.f32.mrf.mxu0
    %2541 = vdwg.mxu0
    %2543 = vrot.lane.b32.xlu0 %v580, 96
    %v2544 = vpop.permute.xlu0 %2543
    %v2546 = vsel %vm2024, %v2317, 0
    %v2549 = vsel %vm2351, %v2544, 0
    %2551 = vmatprep.subr.bf16.mxu0 0
    %2552 = vmatpush1.bf16.msra.mxu0 0
    %2553 = vmatprep.subr.bf16.mxu0 0
    %2554 = vmatpush1.bf16.msra.mxu0 0
    %2555 = vmatprep.subr.bf16.mxu0 0
    %2556 = vmatpush1.bf16.msra.mxu0 0
    %2557 = vmatprep.subr.bf16.mxu0 0
    %2558 = vmatpush1.bf16.msra.mxu0 0
    %2559 = vmatprep.subr.bf16.mxu0 0
    %2560 = vmatpush1.bf16.msra.mxu0 0
    %2561 = vmatprep.subr.bf16.mxu0 0
    %2562 = vmatpush1.bf16.msra.mxu0 0
    %2563 = vmatprep.subr.bf16.mxu0 0
    %2564 = vmatpush1.bf16.msra.mxu0 0
    %2565 = vmatprep.subr.bf16.mxu0 0
    %2566 = vmatpush1.bf16.msra.mxu0 %v2549
    %2567 = vmatprep.subr.bf16.mxu0 0
    %2568 = vmatpush2.bf16.msra.mxu0 0
    %2569 = vmatprep.subr.bf16.mxu0 0
    %2570 = vmatpush2.bf16.msra.mxu0 0
    %2571 = vmatprep.subr.bf16.mxu0 0
    %2572 = vmatpush2.bf16.msra.mxu0 0
    %2573 = vmatprep.subr.bf16.mxu0 0
    %2574 = vmatpush2.bf16.msra.mxu0 0
    %2575 = vmatprep.subr.bf16.mxu0 0
    %2576 = vmatpush2.bf16.msra.mxu0 0
    %2577 = vmatprep.subr.bf16.mxu0 0
    %2578 = vmatpush2.bf16.msra.mxu0 0
    %2579 = vmatprep.subr.bf16.mxu0 0
    %2580 = vmatpush2.bf16.msra.mxu0 0
    %2581 = vmatprep.subr.bf16.mxu0 0
    %2582 = vmatpush2.bf16.msra.mxu0 0
    %2583 = vmatprep.mubr.bf16.mxu0 0
    %2584 = vmatmul.mubr.bf16.gmra.mxu0 %v2546
    %v2585 = vpop.f32.mrf.mxu0
    %v2586 = vadd.f32 0.0, %v2585
    %v2587 = vpop.f32.mrf.mxu0
    %v2588 = vpop.f32.mrf.mxu0
    %v2589 = vpop.f32.mrf.mxu0
    %2590 = vdwg.mxu0
    %2592 = vrot.lane.b32.xlu0 %v581, 96
    %v2593 = vpop.permute.xlu0 %2592
    %v2595 = vsel %vm2024, %v2318, 0
    %v2598 = vsel %vm2351, %v2593, 0
    %2600 = vmatprep.subr.bf16.mxu0 0
    %2601 = vmatpush1.bf16.msra.mxu0 0
    %2602 = vmatprep.subr.bf16.mxu0 0
    %2603 = vmatpush1.bf16.msra.mxu0 0
    %2604 = vmatprep.subr.bf16.mxu0 0
    %2605 = vmatpush1.bf16.msra.mxu0 0
    %2606 = vmatprep.subr.bf16.mxu0 0
    %2607 = vmatpush1.bf16.msra.mxu0 0
    %2608 = vmatprep.subr.bf16.mxu0 0
    %2609 = vmatpush1.bf16.msra.mxu0 0
    %2610 = vmatprep.subr.bf16.mxu0 0
    %2611 = vmatpush1.bf16.msra.mxu0 0
    %2612 = vmatprep.subr.bf16.mxu0 0
    %2613 = vmatpush1.bf16.msra.mxu0 0
    %2614 = vmatprep.subr.bf16.mxu0 0
    %2615 = vmatpush1.bf16.msra.mxu0 %v2598
    %2616 = vmatprep.subr.bf16.mxu0 0
    %2617 = vmatpush2.bf16.msra.mxu0 0
    %2618 = vmatprep.subr.bf16.mxu0 0
    %2619 = vmatpush2.bf16.msra.mxu0 0
    %2620 = vmatprep.subr.bf16.mxu0 0
    %2621 = vmatpush2.bf16.msra.mxu0 0
    %2622 = vmatprep.subr.bf16.mxu0 0
    %2623 = vmatpush2.bf16.msra.mxu0 0
    %2624 = vmatprep.subr.bf16.mxu0 0
    %2625 = vmatpush2.bf16.msra.mxu0 0
    %2626 = vmatprep.subr.bf16.mxu0 0
    %2627 = vmatpush2.bf16.msra.mxu0 0
    %2628 = vmatprep.subr.bf16.mxu0 0
    %2629 = vmatpush2.bf16.msra.mxu0 0
    %2630 = vmatprep.subr.bf16.mxu0 0
    %2631 = vmatpush2.bf16.msra.mxu0 0
    %2632 = vmatprep.mubr.bf16.mxu0 0
    %2633 = vmatmul.mubr.bf16.gmra.mxu0 %v2595
    %v2634 = vpop.f32.mrf.mxu0
    %v2635 = vadd.f32 0.0, %v2634
    %v2636 = vpop.f32.mrf.mxu0
    %v2637 = vpop.f32.mrf.mxu0
    %v2638 = vpop.f32.mrf.mxu0
    %2639 = vdwg.mxu0
    %2641 = vrot.lane.b32.xlu0 %v582, 96
    %v2642 = vpop.permute.xlu0 %2641
    %v2644 = vsel %vm2024, %v2319, 0
    %v2647 = vsel %vm2351, %v2642, 0
    %2649 = vmatprep.subr.bf16.mxu0 0
    %2650 = vmatpush1.bf16.msra.mxu0 0
    %2651 = vmatprep.subr.bf16.mxu0 0
    %2652 = vmatpush1.bf16.msra.mxu0 0
    %2653 = vmatprep.subr.bf16.mxu0 0
    %2654 = vmatpush1.bf16.msra.mxu0 0
    %2655 = vmatprep.subr.bf16.mxu0 0
    %2656 = vmatpush1.bf16.msra.mxu0 0
    %2657 = vmatprep.subr.bf16.mxu0 0
    %2658 = vmatpush1.bf16.msra.mxu0 0
    %2659 = vmatprep.subr.bf16.mxu0 0
    %2660 = vmatpush1.bf16.msra.mxu0 0
    %2661 = vmatprep.subr.bf16.mxu0 0
    %2662 = vmatpush1.bf16.msra.mxu0 0
    %2663 = vmatprep.subr.bf16.mxu0 0
    %2664 = vmatpush1.bf16.msra.mxu0 %v2647
    %2665 = vmatprep.subr.bf16.mxu0 0
    %2666 = vmatpush2.bf16.msra.mxu0 0
    %2667 = vmatprep.subr.bf16.mxu0 0
    %2668 = vmatpush2.bf16.msra.mxu0 0
    %2669 = vmatprep.subr.bf16.mxu0 0
    %2670 = vmatpush2.bf16.msra.mxu0 0
    %2671 = vmatprep.subr.bf16.mxu0 0
    %2672 = vmatpush2.bf16.msra.mxu0 0
    %2673 = vmatprep.subr.bf16.mxu0 0
    %2674 = vmatpush2.bf16.msra.mxu0 0
    %2675 = vmatprep.subr.bf16.mxu0 0
    %2676 = vmatpush2.bf16.msra.mxu0 0
    %2677 = vmatprep.subr.bf16.mxu0 0
    %2678 = vmatpush2.bf16.msra.mxu0 0
    %2679 = vmatprep.subr.bf16.mxu0 0
    %2680 = vmatpush2.bf16.msra.mxu0 0
    %2681 = vmatprep.mubr.bf16.mxu0 0
    %2682 = vmatmul.mubr.bf16.gmra.mxu0 %v2644
    %v2683 = vpop.f32.mrf.mxu0
    %v2684 = vadd.f32 0.0, %v2683
    %v2685 = vpop.f32.mrf.mxu0
    %v2686 = vpop.f32.mrf.mxu0
    %v2687 = vpop.f32.mrf.mxu0
    %2688 = vdwg.mxu0
    %2690 = vrot.lane.b32.xlu0 %v583, 96
    %v2691 = vpop.permute.xlu0 %2690
    %v2693 = vsel %vm2024, %v2320, 0
    %v2696 = vsel %vm2351, %v2691, 0
    %2698 = vmatprep.subr.bf16.mxu0 0
    %2699 = vmatpush1.bf16.msra.mxu0 0
    %2700 = vmatprep.subr.bf16.mxu0 0
    %2701 = vmatpush1.bf16.msra.mxu0 0
    %2702 = vmatprep.subr.bf16.mxu0 0
    %2703 = vmatpush1.bf16.msra.mxu0 0
    %2704 = vmatprep.subr.bf16.mxu0 0
    %2705 = vmatpush1.bf16.msra.mxu0 0
    %2706 = vmatprep.subr.bf16.mxu0 0
    %2707 = vmatpush1.bf16.msra.mxu0 0
    %2708 = vmatprep.subr.bf16.mxu0 0
    %2709 = vmatpush1.bf16.msra.mxu0 0
    %2710 = vmatprep.subr.bf16.mxu0 0
    %2711 = vmatpush1.bf16.msra.mxu0 0
    %2712 = vmatprep.subr.bf16.mxu0 0
    %2713 = vmatpush1.bf16.msra.mxu0 %v2696
    %2714 = vmatprep.subr.bf16.mxu0 0
    %2715 = vmatpush2.bf16.msra.mxu0 0
    %2716 = vmatprep.subr.bf16.mxu0 0
    %2717 = vmatpush2.bf16.msra.mxu0 0
    %2718 = vmatprep.subr.bf16.mxu0 0
    %2719 = vmatpush2.bf16.msra.mxu0 0
    %2720 = vmatprep.subr.bf16.mxu0 0
    %2721 = vmatpush2.bf16.msra.mxu0 0
    %2722 = vmatprep.subr.bf16.mxu0 0
    %2723 = vmatpush2.bf16.msra.mxu0 0
    %2724 = vmatprep.subr.bf16.mxu0 0
    %2725 = vmatpush2.bf16.msra.mxu0 0
    %2726 = vmatprep.subr.bf16.mxu0 0
    %2727 = vmatpush2.bf16.msra.mxu0 0
    %2728 = vmatprep.subr.bf16.mxu0 0
    %2729 = vmatpush2.bf16.msra.mxu0 0
    %2730 = vmatprep.mubr.bf16.mxu0 0
    %2731 = vmatmul.mubr.bf16.gmra.mxu0 %v2693
    %v2732 = vpop.f32.mrf.mxu0
    %v2733 = vadd.f32 0.0, %v2732
    %v2734 = vpop.f32.mrf.mxu0
    %v2735 = vpop.f32.mrf.mxu0
    %v2736 = vpop.f32.mrf.mxu0
    %2737 = vdwg.mxu0
    %2739 = vrot.lane.b32.xlu0 %v584, 96
    %v2740 = vpop.permute.xlu0 %2739
    %v2742 = vsel %vm2024, %v2321, 0
    %v2745 = vsel %vm2351, %v2740, 0
    %2747 = vmatprep.subr.bf16.mxu0 0
    %2748 = vmatpush1.bf16.msra.mxu0 0
    %2749 = vmatprep.subr.bf16.mxu0 0
    %2750 = vmatpush1.bf16.msra.mxu0 0
    %2751 = vmatprep.subr.bf16.mxu0 0
    %2752 = vmatpush1.bf16.msra.mxu0 0
    %2753 = vmatprep.subr.bf16.mxu0 0
    %2754 = vmatpush1.bf16.msra.mxu0 0
    %2755 = vmatprep.subr.bf16.mxu0 0
    %2756 = vmatpush1.bf16.msra.mxu0 0
    %2757 = vmatprep.subr.bf16.mxu0 0
    %2758 = vmatpush1.bf16.msra.mxu0 0
    %2759 = vmatprep.subr.bf16.mxu0 0
    %2760 = vmatpush1.bf16.msra.mxu0 0
    %2761 = vmatprep.subr.bf16.mxu0 0
    %2762 = vmatpush1.bf16.msra.mxu0 %v2745
    %2763 = vmatprep.subr.bf16.mxu0 0
    %2764 = vmatpush2.bf16.msra.mxu0 0
    %2765 = vmatprep.subr.bf16.mxu0 0
    %2766 = vmatpush2.bf16.msra.mxu0 0
    %2767 = vmatprep.subr.bf16.mxu0 0
    %2768 = vmatpush2.bf16.msra.mxu0 0
    %2769 = vmatprep.subr.bf16.mxu0 0
    %2770 = vmatpush2.bf16.msra.mxu0 0
    %2771 = vmatprep.subr.bf16.mxu0 0
    %2772 = vmatpush2.bf16.msra.mxu0 0
    %2773 = vmatprep.subr.bf16.mxu0 0
    %2774 = vmatpush2.bf16.msra.mxu0 0
    %2775 = vmatprep.subr.bf16.mxu0 0
    %2776 = vmatpush2.bf16.msra.mxu0 0
    %2777 = vmatprep.subr.bf16.mxu0 0
    %2778 = vmatpush2.bf16.msra.mxu0 0
    %2779 = vmatprep.mubr.bf16.mxu0 0
    %2780 = vmatmul.mubr.bf16.gmra.mxu0 %v2742
    %v2781 = vpop.f32.mrf.mxu0
    %v2782 = vadd.f32 0.0, %v2781
    %v2783 = vpop.f32.mrf.mxu0
    %v2784 = vpop.f32.mrf.mxu0
    %v2785 = vpop.f32.mrf.mxu0
    %2786 = vdwg.mxu0
    %2788 = vrot.lane.b32.xlu0 %v585, 96
    %v2789 = vpop.permute.xlu0 %2788
    %v2791 = vsel %vm2024, %v2322, 0
    %v2794 = vsel %vm2351, %v2789, 0
    %2796 = vmatprep.subr.bf16.mxu0 0
    %2797 = vmatpush1.bf16.msra.mxu0 0
    %2798 = vmatprep.subr.bf16.mxu0 0
    %2799 = vmatpush1.bf16.msra.mxu0 0
    %2800 = vmatprep.subr.bf16.mxu0 0
    %2801 = vmatpush1.bf16.msra.mxu0 0
    %2802 = vmatprep.subr.bf16.mxu0 0
    %2803 = vmatpush1.bf16.msra.mxu0 0
    %2804 = vmatprep.subr.bf16.mxu0 0
    %2805 = vmatpush1.bf16.msra.mxu0 0
    %2806 = vmatprep.subr.bf16.mxu0 0
    %2807 = vmatpush1.bf16.msra.mxu0 0
    %2808 = vmatprep.subr.bf16.mxu0 0
    %2809 = vmatpush1.bf16.msra.mxu0 0
    %2810 = vmatprep.subr.bf16.mxu0 0
    %2811 = vmatpush1.bf16.msra.mxu0 %v2794
    %2812 = vmatprep.subr.bf16.mxu0 0
    %2813 = vmatpush2.bf16.msra.mxu0 0
    %2814 = vmatprep.subr.bf16.mxu0 0
    %2815 = vmatpush2.bf16.msra.mxu0 0
    %2816 = vmatprep.subr.bf16.mxu0 0
    %2817 = vmatpush2.bf16.msra.mxu0 0
    %2818 = vmatprep.subr.bf16.mxu0 0
    %2819 = vmatpush2.bf16.msra.mxu0 0
    %2820 = vmatprep.subr.bf16.mxu0 0
    %2821 = vmatpush2.bf16.msra.mxu0 0
    %2822 = vmatprep.subr.bf16.mxu0 0
    %2823 = vmatpush2.bf16.msra.mxu0 0
    %2824 = vmatprep.subr.bf16.mxu0 0
    %2825 = vmatpush2.bf16.msra.mxu0 0
    %2826 = vmatprep.subr.bf16.mxu0 0
    %2827 = vmatpush2.bf16.msra.mxu0 0
    %2828 = vmatprep.mubr.bf16.mxu0 0
    %2829 = vmatmul.mubr.bf16.gmra.mxu0 %v2791
    %v2830 = vpop.f32.mrf.mxu0
    %v2831 = vadd.f32 0.0, %v2830
    %v2832 = vpop.f32.mrf.mxu0
    %v2833 = vpop.f32.mrf.mxu0
    %v2834 = vpop.f32.mrf.mxu0
    %2835 = vdwg.mxu0
    %2837 = vrot.lane.b32.xlu0 %v586, 96
    %v2838 = vpop.permute.xlu0 %2837
    %v2840 = vsel %vm2024, %v2323, 0
    %v2843 = vsel %vm2351, %v2838, 0
    %2845 = vmatprep.subr.bf16.mxu0 0
    %2846 = vmatpush1.bf16.msra.mxu0 0
    %2847 = vmatprep.subr.bf16.mxu0 0
    %2848 = vmatpush1.bf16.msra.mxu0 0
    %2849 = vmatprep.subr.bf16.mxu0 0
    %2850 = vmatpush1.bf16.msra.mxu0 0
    %2851 = vmatprep.subr.bf16.mxu0 0
    %2852 = vmatpush1.bf16.msra.mxu0 0
    %2853 = vmatprep.subr.bf16.mxu0 0
    %2854 = vmatpush1.bf16.msra.mxu0 0
    %2855 = vmatprep.subr.bf16.mxu0 0
    %2856 = vmatpush1.bf16.msra.mxu0 0
    %2857 = vmatprep.subr.bf16.mxu0 0
    %2858 = vmatpush1.bf16.msra.mxu0 0
    %2859 = vmatprep.subr.bf16.mxu0 0
    %2860 = vmatpush1.bf16.msra.mxu0 %v2843
    %2861 = vmatprep.subr.bf16.mxu0 0
    %2862 = vmatpush2.bf16.msra.mxu0 0
    %2863 = vmatprep.subr.bf16.mxu0 0
    %2864 = vmatpush2.bf16.msra.mxu0 0
    %2865 = vmatprep.subr.bf16.mxu0 0
    %2866 = vmatpush2.bf16.msra.mxu0 0
    %2867 = vmatprep.subr.bf16.mxu0 0
    %2868 = vmatpush2.bf16.msra.mxu0 0
    %2869 = vmatprep.subr.bf16.mxu0 0
    %2870 = vmatpush2.bf16.msra.mxu0 0
    %2871 = vmatprep.subr.bf16.mxu0 0
    %2872 = vmatpush2.bf16.msra.mxu0 0
    %2873 = vmatprep.subr.bf16.mxu0 0
    %2874 = vmatpush2.bf16.msra.mxu0 0
    %2875 = vmatprep.subr.bf16.mxu0 0
    %2876 = vmatpush2.bf16.msra.mxu0 0
    %2877 = vmatprep.mubr.bf16.mxu0 0
    %2878 = vmatmul.mubr.bf16.gmra.mxu0 %v2840
    %v2879 = vpop.f32.mrf.mxu0
    %v2880 = vadd.f32 0.0, %v2879
    %v2881 = vpop.f32.mrf.mxu0
    %v2882 = vpop.f32.mrf.mxu0
    %v2883 = vpop.f32.mrf.mxu0
    %2884 = vdwg.mxu0
    %2886 = vrot.lane.b32.xlu0 %v587, 96
    %v2887 = vpop.permute.xlu0 %2886
    %v2889 = vsel %vm2024, %v2324, 0
    %v2892 = vsel %vm2351, %v2887, 0
    %2894 = vmatprep.subr.bf16.mxu0 0
    %2895 = vmatpush1.bf16.msra.mxu0 0
    %2896 = vmatprep.subr.bf16.mxu0 0
    %2897 = vmatpush1.bf16.msra.mxu0 0
    %2898 = vmatprep.subr.bf16.mxu0 0
    %2899 = vmatpush1.bf16.msra.mxu0 0
    %2900 = vmatprep.subr.bf16.mxu0 0
    %2901 = vmatpush1.bf16.msra.mxu0 0
    %2902 = vmatprep.subr.bf16.mxu0 0
    %2903 = vmatpush1.bf16.msra.mxu0 0
    %2904 = vmatprep.subr.bf16.mxu0 0
    %2905 = vmatpush1.bf16.msra.mxu0 0
    %2906 = vmatprep.subr.bf16.mxu0 0
    %2907 = vmatpush1.bf16.msra.mxu0 0
    %2908 = vmatprep.subr.bf16.mxu0 0
    %2909 = vmatpush1.bf16.msra.mxu0 %v2892
    %2910 = vmatprep.subr.bf16.mxu0 0
    %2911 = vmatpush2.bf16.msra.mxu0 0
    %2912 = vmatprep.subr.bf16.mxu0 0
    %2913 = vmatpush2.bf16.msra.mxu0 0
    %2914 = vmatprep.subr.bf16.mxu0 0
    %2915 = vmatpush2.bf16.msra.mxu0 0
    %2916 = vmatprep.subr.bf16.mxu0 0
    %2917 = vmatpush2.bf16.msra.mxu0 0
    %2918 = vmatprep.subr.bf16.mxu0 0
    %2919 = vmatpush2.bf16.msra.mxu0 0
    %2920 = vmatprep.subr.bf16.mxu0 0
    %2921 = vmatpush2.bf16.msra.mxu0 0
    %2922 = vmatprep.subr.bf16.mxu0 0
    %2923 = vmatpush2.bf16.msra.mxu0 0
    %2924 = vmatprep.subr.bf16.mxu0 0
    %2925 = vmatpush2.bf16.msra.mxu0 0
    %2926 = vmatprep.mubr.bf16.mxu0 0
    %2927 = vmatmul.mubr.bf16.gmra.mxu0 %v2889
    %v2928 = vpop.f32.mrf.mxu0
    %v2929 = vadd.f32 0.0, %v2928
    %v2930 = vpop.f32.mrf.mxu0
    %v2931 = vpop.f32.mrf.mxu0
    %v2932 = vpop.f32.mrf.mxu0
    %2933 = vdwg.mxu0
    %2935 = vrot.lane.b32.xlu0 %v588, 96
    %v2936 = vpop.permute.xlu0 %2935
    %v2938 = vsel %vm2024, %v2325, 0
    %v2941 = vsel %vm2351, %v2936, 0
    %2943 = vmatprep.subr.bf16.mxu0 0
    %2944 = vmatpush1.bf16.msra.mxu0 0
    %2945 = vmatprep.subr.bf16.mxu0 0
    %2946 = vmatpush1.bf16.msra.mxu0 0
    %2947 = vmatprep.subr.bf16.mxu0 0
    %2948 = vmatpush1.bf16.msra.mxu0 0
    %2949 = vmatprep.subr.bf16.mxu0 0
    %2950 = vmatpush1.bf16.msra.mxu0 0
    %2951 = vmatprep.subr.bf16.mxu0 0
    %2952 = vmatpush1.bf16.msra.mxu0 0
    %2953 = vmatprep.subr.bf16.mxu0 0
    %2954 = vmatpush1.bf16.msra.mxu0 0
    %2955 = vmatprep.subr.bf16.mxu0 0
    %2956 = vmatpush1.bf16.msra.mxu0 0
    %2957 = vmatprep.subr.bf16.mxu0 0
    %2958 = vmatpush1.bf16.msra.mxu0 %v2941
    %2959 = vmatprep.subr.bf16.mxu0 0
    %2960 = vmatpush2.bf16.msra.mxu0 0
    %2961 = vmatprep.subr.bf16.mxu0 0
    %2962 = vmatpush2.bf16.msra.mxu0 0
    %2963 = vmatprep.subr.bf16.mxu0 0
    %2964 = vmatpush2.bf16.msra.mxu0 0
    %2965 = vmatprep.subr.bf16.mxu0 0
    %2966 = vmatpush2.bf16.msra.mxu0 0
    %2967 = vmatprep.subr.bf16.mxu0 0
    %2968 = vmatpush2.bf16.msra.mxu0 0
    %2969 = vmatprep.subr.bf16.mxu0 0
    %2970 = vmatpush2.bf16.msra.mxu0 0
    %2971 = vmatprep.subr.bf16.mxu0 0
    %2972 = vmatpush2.bf16.msra.mxu0 0
    %2973 = vmatprep.subr.bf16.mxu0 0
    %2974 = vmatpush2.bf16.msra.mxu0 0
    %2975 = vmatprep.mubr.bf16.mxu0 0
    %2976 = vmatmul.mubr.bf16.gmra.mxu0 %v2938
    %v2977 = vpop.f32.mrf.mxu0
    %v2978 = vadd.f32 0.0, %v2977
    %v2979 = vpop.f32.mrf.mxu0
    %v2980 = vpop.f32.mrf.mxu0
    %v2981 = vpop.f32.mrf.mxu0
    %2982 = vdwg.mxu0
    %2984 = vrot.lane.b32.xlu0 %v589, 96
    %v2985 = vpop.permute.xlu0 %2984
    %v2987 = vsel %vm2024, %v2326, 0
    %v2990 = vsel %vm2351, %v2985, 0
    %2992 = vmatprep.subr.bf16.mxu0 0
    %2993 = vmatpush1.bf16.msra.mxu0 0
    %2994 = vmatprep.subr.bf16.mxu0 0
    %2995 = vmatpush1.bf16.msra.mxu0 0
    %2996 = vmatprep.subr.bf16.mxu0 0
    %2997 = vmatpush1.bf16.msra.mxu0 0
    %2998 = vmatprep.subr.bf16.mxu0 0
    %2999 = vmatpush1.bf16.msra.mxu0 0
    %3000 = vmatprep.subr.bf16.mxu0 0
    %3001 = vmatpush1.bf16.msra.mxu0 0
    %3002 = vmatprep.subr.bf16.mxu0 0
    %3003 = vmatpush1.bf16.msra.mxu0 0
    %3004 = vmatprep.subr.bf16.mxu0 0
    %3005 = vmatpush1.bf16.msra.mxu0 0
    %3006 = vmatprep.subr.bf16.mxu0 0
    %3007 = vmatpush1.bf16.msra.mxu0 %v2990
    %3008 = vmatprep.subr.bf16.mxu0 0
    %3009 = vmatpush2.bf16.msra.mxu0 0
    %3010 = vmatprep.subr.bf16.mxu0 0
    %3011 = vmatpush2.bf16.msra.mxu0 0
    %3012 = vmatprep.subr.bf16.mxu0 0
    %3013 = vmatpush2.bf16.msra.mxu0 0
    %3014 = vmatprep.subr.bf16.mxu0 0
    %3015 = vmatpush2.bf16.msra.mxu0 0
    %3016 = vmatprep.subr.bf16.mxu0 0
    %3017 = vmatpush2.bf16.msra.mxu0 0
    %3018 = vmatprep.subr.bf16.mxu0 0
    %3019 = vmatpush2.bf16.msra.mxu0 0
    %3020 = vmatprep.subr.bf16.mxu0 0
    %3021 = vmatpush2.bf16.msra.mxu0 0
    %3022 = vmatprep.subr.bf16.mxu0 0
    %3023 = vmatpush2.bf16.msra.mxu0 0
    %3024 = vmatprep.mubr.bf16.mxu0 0
    %3025 = vmatmul.mubr.bf16.gmra.mxu0 %v2987
    %v3026 = vpop.f32.mrf.mxu0
    %v3027 = vadd.f32 0.0, %v3026
    %v3028 = vpop.f32.mrf.mxu0
    %v3029 = vpop.f32.mrf.mxu0
    %v3030 = vpop.f32.mrf.mxu0
    %3031 = vdwg.mxu0
    %3033 = vrot.lane.b32.xlu0 %v590, 96
    %v3034 = vpop.permute.xlu0 %3033
    %v3036 = vsel %vm2024, %v2327, 0
    %v3039 = vsel %vm2351, %v3034, 0
    %3041 = vmatprep.subr.bf16.mxu0 0
    %3042 = vmatpush1.bf16.msra.mxu0 0
    %3043 = vmatprep.subr.bf16.mxu0 0
    %3044 = vmatpush1.bf16.msra.mxu0 0
    %3045 = vmatprep.subr.bf16.mxu0 0
    %3046 = vmatpush1.bf16.msra.mxu0 0
    %3047 = vmatprep.subr.bf16.mxu0 0
    %3048 = vmatpush1.bf16.msra.mxu0 0
    %3049 = vmatprep.subr.bf16.mxu0 0
    %3050 = vmatpush1.bf16.msra.mxu0 0
    %3051 = vmatprep.subr.bf16.mxu0 0
    %3052 = vmatpush1.bf16.msra.mxu0 0
    %3053 = vmatprep.subr.bf16.mxu0 0
    %3054 = vmatpush1.bf16.msra.mxu0 0
    %3055 = vmatprep.subr.bf16.mxu0 0
    %3056 = vmatpush1.bf16.msra.mxu0 %v3039
    %3057 = vmatprep.subr.bf16.mxu0 0
    %3058 = vmatpush2.bf16.msra.mxu0 0
    %3059 = vmatprep.subr.bf16.mxu0 0
    %3060 = vmatpush2.bf16.msra.mxu0 0
    %3061 = vmatprep.subr.bf16.mxu0 0
    %3062 = vmatpush2.bf16.msra.mxu0 0
    %3063 = vmatprep.subr.bf16.mxu0 0
    %3064 = vmatpush2.bf16.msra.mxu0 0
    %3065 = vmatprep.subr.bf16.mxu0 0
    %3066 = vmatpush2.bf16.msra.mxu0 0
    %3067 = vmatprep.subr.bf16.mxu0 0
    %3068 = vmatpush2.bf16.msra.mxu0 0
    %3069 = vmatprep.subr.bf16.mxu0 0
    %3070 = vmatpush2.bf16.msra.mxu0 0
    %3071 = vmatprep.subr.bf16.mxu0 0
    %3072 = vmatpush2.bf16.msra.mxu0 0
    %3073 = vmatprep.mubr.bf16.mxu0 0
    %3074 = vmatmul.mubr.bf16.gmra.mxu0 %v3036
    %v3075 = vpop.f32.mrf.mxu0
    %v3076 = vadd.f32 0.0, %v3075
    %v3077 = vpop.f32.mrf.mxu0
    %v3078 = vpop.f32.mrf.mxu0
    %v3079 = vpop.f32.mrf.mxu0
    %3080 = vdwg.mxu0
    %3082 = vrot.lane.b32.xlu0 %v591, 96
    %v3083 = vpop.permute.xlu0 %3082
    %v3085 = vsel %vm2024, %v2328, 0
    %v3088 = vsel %vm2351, %v3083, 0
    %3090 = vmatprep.subr.bf16.mxu0 0
    %3091 = vmatpush1.bf16.msra.mxu0 0
    %3092 = vmatprep.subr.bf16.mxu0 0
    %3093 = vmatpush1.bf16.msra.mxu0 0
    %3094 = vmatprep.subr.bf16.mxu0 0
    %3095 = vmatpush1.bf16.msra.mxu0 0
    %3096 = vmatprep.subr.bf16.mxu0 0
    %3097 = vmatpush1.bf16.msra.mxu0 0
    %3098 = vmatprep.subr.bf16.mxu0 0
    %3099 = vmatpush1.bf16.msra.mxu0 0
    %3100 = vmatprep.subr.bf16.mxu0 0
    %3101 = vmatpush1.bf16.msra.mxu0 0
    %3102 = vmatprep.subr.bf16.mxu0 0
    %3103 = vmatpush1.bf16.msra.mxu0 0
    %3104 = vmatprep.subr.bf16.mxu0 0
    %3105 = vmatpush1.bf16.msra.mxu0 %v3088
    %3106 = vmatprep.subr.bf16.mxu0 0
    %3107 = vmatpush2.bf16.msra.mxu0 0
    %3108 = vmatprep.subr.bf16.mxu0 0
    %3109 = vmatpush2.bf16.msra.mxu0 0
    %3110 = vmatprep.subr.bf16.mxu0 0
    %3111 = vmatpush2.bf16.msra.mxu0 0
    %3112 = vmatprep.subr.bf16.mxu0 0
    %3113 = vmatpush2.bf16.msra.mxu0 0
    %3114 = vmatprep.subr.bf16.mxu0 0
    %3115 = vmatpush2.bf16.msra.mxu0 0
    %3116 = vmatprep.subr.bf16.mxu0 0
    %3117 = vmatpush2.bf16.msra.mxu0 0
    %3118 = vmatprep.subr.bf16.mxu0 0
    %3119 = vmatpush2.bf16.msra.mxu0 0
    %3120 = vmatprep.subr.bf16.mxu0 0
    %3121 = vmatpush2.bf16.msra.mxu0 0
    %3122 = vmatprep.mubr.bf16.mxu0 0
    %3123 = vmatmul.mubr.bf16.gmra.mxu0 %v3085
    %v3124 = vpop.f32.mrf.mxu0
    %v3125 = vadd.f32 0.0, %v3124
    %v3126 = vpop.f32.mrf.mxu0
    %v3127 = vpop.f32.mrf.mxu0
    %v3128 = vpop.f32.mrf.mxu0
    %3129 = vdwg.mxu0
    %3131 = vrot.lane.b32.xlu0 %v592, 96
    %v3132 = vpop.permute.xlu0 %3131
    %v3134 = vsel %vm2024, %v2329, 0
    %v3137 = vsel %vm2351, %v3132, 0
    %3139 = vmatprep.subr.bf16.mxu0 0
    %3140 = vmatpush1.bf16.msra.mxu0 0
    %3141 = vmatprep.subr.bf16.mxu0 0
    %3142 = vmatpush1.bf16.msra.mxu0 0
    %3143 = vmatprep.subr.bf16.mxu0 0
    %3144 = vmatpush1.bf16.msra.mxu0 0
    %3145 = vmatprep.subr.bf16.mxu0 0
    %3146 = vmatpush1.bf16.msra.mxu0 0
    %3147 = vmatprep.subr.bf16.mxu0 0
    %3148 = vmatpush1.bf16.msra.mxu0 0
    %3149 = vmatprep.subr.bf16.mxu0 0
    %3150 = vmatpush1.bf16.msra.mxu0 0
    %3151 = vmatprep.subr.bf16.mxu0 0
    %3152 = vmatpush1.bf16.msra.mxu0 0
    %3153 = vmatprep.subr.bf16.mxu0 0
    %3154 = vmatpush1.bf16.msra.mxu0 %v3137
    %3155 = vmatprep.subr.bf16.mxu0 0
    %3156 = vmatpush2.bf16.msra.mxu0 0
    %3157 = vmatprep.subr.bf16.mxu0 0
    %3158 = vmatpush2.bf16.msra.mxu0 0
    %3159 = vmatprep.subr.bf16.mxu0 0
    %3160 = vmatpush2.bf16.msra.mxu0 0
    %3161 = vmatprep.subr.bf16.mxu0 0
    %3162 = vmatpush2.bf16.msra.mxu0 0
    %3163 = vmatprep.subr.bf16.mxu0 0
    %3164 = vmatpush2.bf16.msra.mxu0 0
    %3165 = vmatprep.subr.bf16.mxu0 0
    %3166 = vmatpush2.bf16.msra.mxu0 0
    %3167 = vmatprep.subr.bf16.mxu0 0
    %3168 = vmatpush2.bf16.msra.mxu0 0
    %3169 = vmatprep.subr.bf16.mxu0 0
    %3170 = vmatpush2.bf16.msra.mxu0 0
    %3171 = vmatprep.mubr.bf16.mxu0 0
    %3172 = vmatmul.mubr.bf16.gmra.mxu0 %v3134
    %v3173 = vpop.f32.mrf.mxu0
    %v3174 = vadd.f32 0.0, %v3173
    %v3175 = vpop.f32.mrf.mxu0
    %v3176 = vpop.f32.mrf.mxu0
    %v3177 = vpop.f32.mrf.mxu0
    %3178 = vdwg.mxu0
    %3180 = vrot.lane.b32.xlu0 %v593, 96
    %v3181 = vpop.permute.xlu0 %3180
    %v3183 = vsel %vm2024, %v2330, 0
    %v3186 = vsel %vm2351, %v3181, 0
    %3188 = vmatprep.subr.bf16.mxu0 0
    %3189 = vmatpush1.bf16.msra.mxu0 0
    %3190 = vmatprep.subr.bf16.mxu0 0
    %3191 = vmatpush1.bf16.msra.mxu0 0
    %3192 = vmatprep.subr.bf16.mxu0 0
    %3193 = vmatpush1.bf16.msra.mxu0 0
    %3194 = vmatprep.subr.bf16.mxu0 0
    %3195 = vmatpush1.bf16.msra.mxu0 0
    %3196 = vmatprep.subr.bf16.mxu0 0
    %3197 = vmatpush1.bf16.msra.mxu0 0
    %3198 = vmatprep.subr.bf16.mxu0 0
    %3199 = vmatpush1.bf16.msra.mxu0 0
    %3200 = vmatprep.subr.bf16.mxu0 0
    %3201 = vmatpush1.bf16.msra.mxu0 0
    %3202 = vmatprep.subr.bf16.mxu0 0
    %3203 = vmatpush1.bf16.msra.mxu0 %v3186
    %3204 = vmatprep.subr.bf16.mxu0 0
    %3205 = vmatpush2.bf16.msra.mxu0 0
    %3206 = vmatprep.subr.bf16.mxu0 0
    %3207 = vmatpush2.bf16.msra.mxu0 0
    %3208 = vmatprep.subr.bf16.mxu0 0
    %3209 = vmatpush2.bf16.msra.mxu0 0
    %3210 = vmatprep.subr.bf16.mxu0 0
    %3211 = vmatpush2.bf16.msra.mxu0 0
    %3212 = vmatprep.subr.bf16.mxu0 0
    %3213 = vmatpush2.bf16.msra.mxu0 0
    %3214 = vmatprep.subr.bf16.mxu0 0
    %3215 = vmatpush2.bf16.msra.mxu0 0
    %3216 = vmatprep.subr.bf16.mxu0 0
    %3217 = vmatpush2.bf16.msra.mxu0 0
    %3218 = vmatprep.subr.bf16.mxu0 0
    %3219 = vmatpush2.bf16.msra.mxu0 0
    %3220 = vmatprep.mubr.bf16.mxu0 0
    %3221 = vmatmul.mubr.bf16.gmra.mxu0 %v3183
    %v3222 = vpop.f32.mrf.mxu0
    %v3223 = vadd.f32 0.0, %v3222
    %v3224 = vpop.f32.mrf.mxu0
    %v3225 = vpop.f32.mrf.mxu0
    %v3226 = vpop.f32.mrf.mxu0
    %3227 = vdwg.mxu0
    %3229 = vrot.lane.b32.xlu0 %v594, 96
    %v3230 = vpop.permute.xlu0 %3229
    %v3232 = vsel %vm2024, %v2331, 0
    %v3235 = vsel %vm2351, %v3230, 0
    %3237 = vmatprep.subr.bf16.mxu0 0
    %3238 = vmatpush1.bf16.msra.mxu0 0
    %3239 = vmatprep.subr.bf16.mxu0 0
    %3240 = vmatpush1.bf16.msra.mxu0 0
    %3241 = vmatprep.subr.bf16.mxu0 0
    %3242 = vmatpush1.bf16.msra.mxu0 0
    %3243 = vmatprep.subr.bf16.mxu0 0
    %3244 = vmatpush1.bf16.msra.mxu0 0
    %3245 = vmatprep.subr.bf16.mxu0 0
    %3246 = vmatpush1.bf16.msra.mxu0 0
    %3247 = vmatprep.subr.bf16.mxu0 0
    %3248 = vmatpush1.bf16.msra.mxu0 0
    %3249 = vmatprep.subr.bf16.mxu0 0
    %3250 = vmatpush1.bf16.msra.mxu0 0
    %3251 = vmatprep.subr.bf16.mxu0 0
    %3252 = vmatpush1.bf16.msra.mxu0 %v3235
    %3253 = vmatprep.subr.bf16.mxu0 0
    %3254 = vmatpush2.bf16.msra.mxu0 0
    %3255 = vmatprep.subr.bf16.mxu0 0
    %3256 = vmatpush2.bf16.msra.mxu0 0
    %3257 = vmatprep.subr.bf16.mxu0 0
    %3258 = vmatpush2.bf16.msra.mxu0 0
    %3259 = vmatprep.subr.bf16.mxu0 0
    %3260 = vmatpush2.bf16.msra.mxu0 0
    %3261 = vmatprep.subr.bf16.mxu0 0
    %3262 = vmatpush2.bf16.msra.mxu0 0
    %3263 = vmatprep.subr.bf16.mxu0 0
    %3264 = vmatpush2.bf16.msra.mxu0 0
    %3265 = vmatprep.subr.bf16.mxu0 0
    %3266 = vmatpush2.bf16.msra.mxu0 0
    %3267 = vmatprep.subr.bf16.mxu0 0
    %3268 = vmatpush2.bf16.msra.mxu0 0
    %3269 = vmatprep.mubr.bf16.mxu0 0
    %3270 = vmatmul.mubr.bf16.gmra.mxu0 %v3232
    %v3271 = vpop.f32.mrf.mxu0
    %v3272 = vadd.f32 0.0, %v3271
    %v3273 = vpop.f32.mrf.mxu0
    %v3274 = vpop.f32.mrf.mxu0
    %v3275 = vpop.f32.mrf.mxu0
    %3276 = vdwg.mxu0
    %3278 = vrot.lane.b32.xlu0 %v595, 96
    %v3279 = vpop.permute.xlu0 %3278
    %v3281 = vsel %vm2024, %v2332, 0
    %v3284 = vsel %vm2351, %v3279, 0
    %3286 = vmatprep.subr.bf16.mxu0 0
    %3287 = vmatpush1.bf16.msra.mxu0 0
    %3288 = vmatprep.subr.bf16.mxu0 0
    %3289 = vmatpush1.bf16.msra.mxu0 0
    %3290 = vmatprep.subr.bf16.mxu0 0
    %3291 = vmatpush1.bf16.msra.mxu0 0
    %3292 = vmatprep.subr.bf16.mxu0 0
    %3293 = vmatpush1.bf16.msra.mxu0 0
    %3294 = vmatprep.subr.bf16.mxu0 0
    %3295 = vmatpush1.bf16.msra.mxu0 0
    %3296 = vmatprep.subr.bf16.mxu0 0
    %3297 = vmatpush1.bf16.msra.mxu0 0
    %3298 = vmatprep.subr.bf16.mxu0 0
    %3299 = vmatpush1.bf16.msra.mxu0 0
    %3300 = vmatprep.subr.bf16.mxu0 0
    %3301 = vmatpush1.bf16.msra.mxu0 %v3284
    %3302 = vmatprep.subr.bf16.mxu0 0
    %3303 = vmatpush2.bf16.msra.mxu0 0
    %3304 = vmatprep.subr.bf16.mxu0 0
    %3305 = vmatpush2.bf16.msra.mxu0 0
    %3306 = vmatprep.subr.bf16.mxu0 0
    %3307 = vmatpush2.bf16.msra.mxu0 0
    %3308 = vmatprep.subr.bf16.mxu0 0
    %3309 = vmatpush2.bf16.msra.mxu0 0
    %3310 = vmatprep.subr.bf16.mxu0 0
    %3311 = vmatpush2.bf16.msra.mxu0 0
    %3312 = vmatprep.subr.bf16.mxu0 0
    %3313 = vmatpush2.bf16.msra.mxu0 0
    %3314 = vmatprep.subr.bf16.mxu0 0
    %3315 = vmatpush2.bf16.msra.mxu0 0
    %3316 = vmatprep.subr.bf16.mxu0 0
    %3317 = vmatpush2.bf16.msra.mxu0 0
    %3318 = vmatprep.mubr.bf16.mxu0 0
    %3319 = vmatmul.mubr.bf16.gmra.mxu0 %v3281
    %v3320 = vpop.f32.mrf.mxu0
    %v3321 = vadd.f32 0.0, %v3320
    %v3322 = vpop.f32.mrf.mxu0
    %v3323 = vpop.f32.mrf.mxu0
    %v3324 = vpop.f32.mrf.mxu0
    %3325 = vdwg.mxu0
    %3327 = vrot.lane.b32.xlu0 %v596, 96
    %v3328 = vpop.permute.xlu0 %3327
    %v3330 = vsel %vm2024, %v2333, 0
    %v3333 = vsel %vm2351, %v3328, 0
    %3335 = vmatprep.subr.bf16.mxu0 0
    %3336 = vmatpush1.bf16.msra.mxu0 0
    %3337 = vmatprep.subr.bf16.mxu0 0
    %3338 = vmatpush1.bf16.msra.mxu0 0
    %3339 = vmatprep.subr.bf16.mxu0 0
    %3340 = vmatpush1.bf16.msra.mxu0 0
    %3341 = vmatprep.subr.bf16.mxu0 0
    %3342 = vmatpush1.bf16.msra.mxu0 0
    %3343 = vmatprep.subr.bf16.mxu0 0
    %3344 = vmatpush1.bf16.msra.mxu0 0
    %3345 = vmatprep.subr.bf16.mxu0 0
    %3346 = vmatpush1.bf16.msra.mxu0 0
    %3347 = vmatprep.subr.bf16.mxu0 0
    %3348 = vmatpush1.bf16.msra.mxu0 0
    %3349 = vmatprep.subr.bf16.mxu0 0
    %3350 = vmatpush1.bf16.msra.mxu0 %v3333
    %3351 = vmatprep.subr.bf16.mxu0 0
    %3352 = vmatpush2.bf16.msra.mxu0 0
    %3353 = vmatprep.subr.bf16.mxu0 0
    %3354 = vmatpush2.bf16.msra.mxu0 0
    %3355 = vmatprep.subr.bf16.mxu0 0
    %3356 = vmatpush2.bf16.msra.mxu0 0
    %3357 = vmatprep.subr.bf16.mxu0 0
    %3358 = vmatpush2.bf16.msra.mxu0 0
    %3359 = vmatprep.subr.bf16.mxu0 0
    %3360 = vmatpush2.bf16.msra.mxu0 0
    %3361 = vmatprep.subr.bf16.mxu0 0
    %3362 = vmatpush2.bf16.msra.mxu0 0
    %3363 = vmatprep.subr.bf16.mxu0 0
    %3364 = vmatpush2.bf16.msra.mxu0 0
    %3365 = vmatprep.subr.bf16.mxu0 0
    %3366 = vmatpush2.bf16.msra.mxu0 0
    %3367 = vmatprep.mubr.bf16.mxu0 0
    %3368 = vmatmul.mubr.bf16.gmra.mxu0 %v3330
    %v3369 = vpop.f32.mrf.mxu0
    %v3370 = vadd.f32 0.0, %v3369
    %v3371 = vpop.f32.mrf.mxu0
    %v3372 = vpop.f32.mrf.mxu0
    %v3373 = vpop.f32.mrf.mxu0
    %3374 = vdwg.mxu0
    %3376 = vrot.lane.b32.xlu0 %v597, 96
    %v3377 = vpop.permute.xlu0 %3376
    %v3379 = vsel %vm2024, %v2334, 0
    %v3382 = vsel %vm2351, %v3377, 0
    %3384 = vmatprep.subr.bf16.mxu0 0
    %3385 = vmatpush1.bf16.msra.mxu0 0
    %3386 = vmatprep.subr.bf16.mxu0 0
    %3387 = vmatpush1.bf16.msra.mxu0 0
    %3388 = vmatprep.subr.bf16.mxu0 0
    %3389 = vmatpush1.bf16.msra.mxu0 0
    %3390 = vmatprep.subr.bf16.mxu0 0
    %3391 = vmatpush1.bf16.msra.mxu0 0
    %3392 = vmatprep.subr.bf16.mxu0 0
    %3393 = vmatpush1.bf16.msra.mxu0 0
    %3394 = vmatprep.subr.bf16.mxu0 0
    %3395 = vmatpush1.bf16.msra.mxu0 0
    %3396 = vmatprep.subr.bf16.mxu0 0
    %3397 = vmatpush1.bf16.msra.mxu0 0
    %3398 = vmatprep.subr.bf16.mxu0 0
    %3399 = vmatpush1.bf16.msra.mxu0 %v3382
    %3400 = vmatprep.subr.bf16.mxu0 0
    %3401 = vmatpush2.bf16.msra.mxu0 0
    %3402 = vmatprep.subr.bf16.mxu0 0
    %3403 = vmatpush2.bf16.msra.mxu0 0
    %3404 = vmatprep.subr.bf16.mxu0 0
    %3405 = vmatpush2.bf16.msra.mxu0 0
    %3406 = vmatprep.subr.bf16.mxu0 0
    %3407 = vmatpush2.bf16.msra.mxu0 0
    %3408 = vmatprep.subr.bf16.mxu0 0
    %3409 = vmatpush2.bf16.msra.mxu0 0
    %3410 = vmatprep.subr.bf16.mxu0 0
    %3411 = vmatpush2.bf16.msra.mxu0 0
    %3412 = vmatprep.subr.bf16.mxu0 0
    %3413 = vmatpush2.bf16.msra.mxu0 0
    %3414 = vmatprep.subr.bf16.mxu0 0
    %3415 = vmatpush2.bf16.msra.mxu0 0
    %3416 = vmatprep.mubr.bf16.mxu0 0
    %3417 = vmatmul.mubr.bf16.gmra.mxu0 %v3379
    %v3418 = vpop.f32.mrf.mxu0
    %v3419 = vadd.f32 0.0, %v3418
    %v3420 = vpop.f32.mrf.mxu0
    %v3421 = vpop.f32.mrf.mxu0
    %v3422 = vpop.f32.mrf.mxu0
    %3423 = vdwg.mxu0
    %3425 = vrot.lane.b32.xlu0 %v598, 96
    %v3426 = vpop.permute.xlu0 %3425
    %v3428 = vsel %vm2024, %v2335, 0
    %v3431 = vsel %vm2351, %v3426, 0
    %3433 = vmatprep.subr.bf16.mxu0 0
    %3434 = vmatpush1.bf16.msra.mxu0 0
    %3435 = vmatprep.subr.bf16.mxu0 0
    %3436 = vmatpush1.bf16.msra.mxu0 0
    %3437 = vmatprep.subr.bf16.mxu0 0
    %3438 = vmatpush1.bf16.msra.mxu0 0
    %3439 = vmatprep.subr.bf16.mxu0 0
    %3440 = vmatpush1.bf16.msra.mxu0 0
    %3441 = vmatprep.subr.bf16.mxu0 0
    %3442 = vmatpush1.bf16.msra.mxu0 0
    %3443 = vmatprep.subr.bf16.mxu0 0
    %3444 = vmatpush1.bf16.msra.mxu0 0
    %3445 = vmatprep.subr.bf16.mxu0 0
    %3446 = vmatpush1.bf16.msra.mxu0 0
    %3447 = vmatprep.subr.bf16.mxu0 0
    %3448 = vmatpush1.bf16.msra.mxu0 %v3431
    %3449 = vmatprep.subr.bf16.mxu0 0
    %3450 = vmatpush2.bf16.msra.mxu0 0
    %3451 = vmatprep.subr.bf16.mxu0 0
    %3452 = vmatpush2.bf16.msra.mxu0 0
    %3453 = vmatprep.subr.bf16.mxu0 0
    %3454 = vmatpush2.bf16.msra.mxu0 0
    %3455 = vmatprep.subr.bf16.mxu0 0
    %3456 = vmatpush2.bf16.msra.mxu0 0
    %3457 = vmatprep.subr.bf16.mxu0 0
    %3458 = vmatpush2.bf16.msra.mxu0 0
    %3459 = vmatprep.subr.bf16.mxu0 0
    %3460 = vmatpush2.bf16.msra.mxu0 0
    %3461 = vmatprep.subr.bf16.mxu0 0
    %3462 = vmatpush2.bf16.msra.mxu0 0
    %3463 = vmatprep.subr.bf16.mxu0 0
    %3464 = vmatpush2.bf16.msra.mxu0 0
    %3465 = vmatprep.mubr.bf16.mxu0 0
    %3466 = vmatmul.mubr.bf16.gmra.mxu0 %v3428
    %v3467 = vpop.f32.mrf.mxu0
    %v3468 = vadd.f32 0.0, %v3467
    %v3469 = vpop.f32.mrf.mxu0
    %v3470 = vpop.f32.mrf.mxu0
    %v3471 = vpop.f32.mrf.mxu0
    %3472 = vdwg.mxu0
    %3474 = vrot.lane.b32.xlu0 %v599, 96
    %v3475 = vpop.permute.xlu0 %3474
    %v3477 = vsel %vm2024, %v2336, 0
    %v3480 = vsel %vm2351, %v3475, 0
    %3482 = vmatprep.subr.bf16.mxu0 0
    %3483 = vmatpush1.bf16.msra.mxu0 0
    %3484 = vmatprep.subr.bf16.mxu0 0
    %3485 = vmatpush1.bf16.msra.mxu0 0
    %3486 = vmatprep.subr.bf16.mxu0 0
    %3487 = vmatpush1.bf16.msra.mxu0 0
    %3488 = vmatprep.subr.bf16.mxu0 0
    %3489 = vmatpush1.bf16.msra.mxu0 0
    %3490 = vmatprep.subr.bf16.mxu0 0
    %3491 = vmatpush1.bf16.msra.mxu0 0
    %3492 = vmatprep.subr.bf16.mxu0 0
    %3493 = vmatpush1.bf16.msra.mxu0 0
    %3494 = vmatprep.subr.bf16.mxu0 0
    %3495 = vmatpush1.bf16.msra.mxu0 0
    %3496 = vmatprep.subr.bf16.mxu0 0
    %3497 = vmatpush1.bf16.msra.mxu0 %v3480
    %3498 = vmatprep.subr.bf16.mxu0 0
    %3499 = vmatpush2.bf16.msra.mxu0 0
    %3500 = vmatprep.subr.bf16.mxu0 0
    %3501 = vmatpush2.bf16.msra.mxu0 0
    %3502 = vmatprep.subr.bf16.mxu0 0
    %3503 = vmatpush2.bf16.msra.mxu0 0
    %3504 = vmatprep.subr.bf16.mxu0 0
    %3505 = vmatpush2.bf16.msra.mxu0 0
    %3506 = vmatprep.subr.bf16.mxu0 0
    %3507 = vmatpush2.bf16.msra.mxu0 0
    %3508 = vmatprep.subr.bf16.mxu0 0
    %3509 = vmatpush2.bf16.msra.mxu0 0
    %3510 = vmatprep.subr.bf16.mxu0 0
    %3511 = vmatpush2.bf16.msra.mxu0 0
    %3512 = vmatprep.subr.bf16.mxu0 0
    %3513 = vmatpush2.bf16.msra.mxu0 0
    %3514 = vmatprep.mubr.bf16.mxu0 0
    %3515 = vmatmul.mubr.bf16.gmra.mxu0 %v3477
    %v3516 = vpop.f32.mrf.mxu0
    %v3517 = vadd.f32 0.0, %v3516
    %v3518 = vpop.f32.mrf.mxu0
    %v3519 = vpop.f32.mrf.mxu0
    %v3520 = vpop.f32.mrf.mxu0
    %3521 = vdwg.mxu0
    %3523 = vrot.lane.b32.xlu0 %v600, 96
    %v3524 = vpop.permute.xlu0 %3523
    %v3526 = vsel %vm2024, %v2337, 0
    %v3529 = vsel %vm2351, %v3524, 0
    %3531 = vmatprep.subr.bf16.mxu0 0
    %3532 = vmatpush1.bf16.msra.mxu0 0
    %3533 = vmatprep.subr.bf16.mxu0 0
    %3534 = vmatpush1.bf16.msra.mxu0 0
    %3535 = vmatprep.subr.bf16.mxu0 0
    %3536 = vmatpush1.bf16.msra.mxu0 0
    %3537 = vmatprep.subr.bf16.mxu0 0
    %3538 = vmatpush1.bf16.msra.mxu0 0
    %3539 = vmatprep.subr.bf16.mxu0 0
    %3540 = vmatpush1.bf16.msra.mxu0 0
    %3541 = vmatprep.subr.bf16.mxu0 0
    %3542 = vmatpush1.bf16.msra.mxu0 0
    %3543 = vmatprep.subr.bf16.mxu0 0
    %3544 = vmatpush1.bf16.msra.mxu0 0
    %3545 = vmatprep.subr.bf16.mxu0 0
    %3546 = vmatpush1.bf16.msra.mxu0 %v3529
    %3547 = vmatprep.subr.bf16.mxu0 0
    %3548 = vmatpush2.bf16.msra.mxu0 0
    %3549 = vmatprep.subr.bf16.mxu0 0
    %3550 = vmatpush2.bf16.msra.mxu0 0
    %3551 = vmatprep.subr.bf16.mxu0 0
    %3552 = vmatpush2.bf16.msra.mxu0 0
    %3553 = vmatprep.subr.bf16.mxu0 0
    %3554 = vmatpush2.bf16.msra.mxu0 0
    %3555 = vmatprep.subr.bf16.mxu0 0
    %3556 = vmatpush2.bf16.msra.mxu0 0
    %3557 = vmatprep.subr.bf16.mxu0 0
    %3558 = vmatpush2.bf16.msra.mxu0 0
    %3559 = vmatprep.subr.bf16.mxu0 0
    %3560 = vmatpush2.bf16.msra.mxu0 0
    %3561 = vmatprep.subr.bf16.mxu0 0
    %3562 = vmatpush2.bf16.msra.mxu0 0
    %3563 = vmatprep.mubr.bf16.mxu0 0
    %3564 = vmatmul.mubr.bf16.gmra.mxu0 %v3526
    %v3565 = vpop.f32.mrf.mxu0
    %v3566 = vadd.f32 0.0, %v3565
    %v3567 = vpop.f32.mrf.mxu0
    %v3568 = vpop.f32.mrf.mxu0
    %v3569 = vpop.f32.mrf.mxu0
    %3570 = vdwg.mxu0
    %3572 = vrot.lane.b32.xlu0 %v601, 96
    %v3573 = vpop.permute.xlu0 %3572
    %v3575 = vsel %vm2024, %v2338, 0
    %v3578 = vsel %vm2351, %v3573, 0
    %3580 = vmatprep.subr.bf16.mxu0 0
    %3581 = vmatpush1.bf16.msra.mxu0 0
    %3582 = vmatprep.subr.bf16.mxu0 0
    %3583 = vmatpush1.bf16.msra.mxu0 0
    %3584 = vmatprep.subr.bf16.mxu0 0
    %3585 = vmatpush1.bf16.msra.mxu0 0
    %3586 = vmatprep.subr.bf16.mxu0 0
    %3587 = vmatpush1.bf16.msra.mxu0 0
    %3588 = vmatprep.subr.bf16.mxu0 0
    %3589 = vmatpush1.bf16.msra.mxu0 0
    %3590 = vmatprep.subr.bf16.mxu0 0
    %3591 = vmatpush1.bf16.msra.mxu0 0
    %3592 = vmatprep.subr.bf16.mxu0 0
    %3593 = vmatpush1.bf16.msra.mxu0 0
    %3594 = vmatprep.subr.bf16.mxu0 0
    %3595 = vmatpush1.bf16.msra.mxu0 %v3578
    %3596 = vmatprep.subr.bf16.mxu0 0
    %3597 = vmatpush2.bf16.msra.mxu0 0
    %3598 = vmatprep.subr.bf16.mxu0 0
    %3599 = vmatpush2.bf16.msra.mxu0 0
    %3600 = vmatprep.subr.bf16.mxu0 0
    %3601 = vmatpush2.bf16.msra.mxu0 0
    %3602 = vmatprep.subr.bf16.mxu0 0
    %3603 = vmatpush2.bf16.msra.mxu0 0
    %3604 = vmatprep.subr.bf16.mxu0 0
    %3605 = vmatpush2.bf16.msra.mxu0 0
    %3606 = vmatprep.subr.bf16.mxu0 0
    %3607 = vmatpush2.bf16.msra.mxu0 0
    %3608 = vmatprep.subr.bf16.mxu0 0
    %3609 = vmatpush2.bf16.msra.mxu0 0
    %3610 = vmatprep.subr.bf16.mxu0 0
    %3611 = vmatpush2.bf16.msra.mxu0 0
    %3612 = vmatprep.mubr.bf16.mxu0 0
    %3613 = vmatmul.mubr.bf16.gmra.mxu0 %v3575
    %v3614 = vpop.f32.mrf.mxu0
    %v3615 = vadd.f32 0.0, %v3614
    %v3616 = vpop.f32.mrf.mxu0
    %v3617 = vpop.f32.mrf.mxu0
    %v3618 = vpop.f32.mrf.mxu0
    %3619 = vdwg.mxu0
    %3621 = vrot.lane.b32.xlu0 %v602, 96
    %v3622 = vpop.permute.xlu0 %3621
    %v3624 = vsel %vm2024, %v2339, 0
    %v3627 = vsel %vm2351, %v3622, 0
    %3629 = vmatprep.subr.bf16.mxu0 0
    %3630 = vmatpush1.bf16.msra.mxu0 0
    %3631 = vmatprep.subr.bf16.mxu0 0
    %3632 = vmatpush1.bf16.msra.mxu0 0
    %3633 = vmatprep.subr.bf16.mxu0 0
    %3634 = vmatpush1.bf16.msra.mxu0 0
    %3635 = vmatprep.subr.bf16.mxu0 0
    %3636 = vmatpush1.bf16.msra.mxu0 0
    %3637 = vmatprep.subr.bf16.mxu0 0
    %3638 = vmatpush1.bf16.msra.mxu0 0
    %3639 = vmatprep.subr.bf16.mxu0 0
    %3640 = vmatpush1.bf16.msra.mxu0 0
    %3641 = vmatprep.subr.bf16.mxu0 0
    %3642 = vmatpush1.bf16.msra.mxu0 0
    %3643 = vmatprep.subr.bf16.mxu0 0
    %3644 = vmatpush1.bf16.msra.mxu0 %v3627
    %3645 = vmatprep.subr.bf16.mxu0 0
    %3646 = vmatpush2.bf16.msra.mxu0 0
    %3647 = vmatprep.subr.bf16.mxu0 0
    %3648 = vmatpush2.bf16.msra.mxu0 0
    %3649 = vmatprep.subr.bf16.mxu0 0
    %3650 = vmatpush2.bf16.msra.mxu0 0
    %3651 = vmatprep.subr.bf16.mxu0 0
    %3652 = vmatpush2.bf16.msra.mxu0 0
    %3653 = vmatprep.subr.bf16.mxu0 0
    %3654 = vmatpush2.bf16.msra.mxu0 0
    %3655 = vmatprep.subr.bf16.mxu0 0
    %3656 = vmatpush2.bf16.msra.mxu0 0
    %3657 = vmatprep.subr.bf16.mxu0 0
    %3658 = vmatpush2.bf16.msra.mxu0 0
    %3659 = vmatprep.subr.bf16.mxu0 0
    %3660 = vmatpush2.bf16.msra.mxu0 0
    %3661 = vmatprep.mubr.bf16.mxu0 0
    %3662 = vmatmul.mubr.bf16.gmra.mxu0 %v3624
    %v3663 = vpop.f32.mrf.mxu0
    %v3664 = vadd.f32 0.0, %v3663
    %v3665 = vpop.f32.mrf.mxu0
    %v3666 = vpop.f32.mrf.mxu0
    %v3667 = vpop.f32.mrf.mxu0
    %3668 = vdwg.mxu0
    %3670 = vrot.lane.b32.xlu0 %v603, 96
    %v3671 = vpop.permute.xlu0 %3670
    %v3673 = vsel %vm2024, %v2340, 0
    %v3676 = vsel %vm2351, %v3671, 0
    %3678 = vmatprep.subr.bf16.mxu0 0
    %3679 = vmatpush1.bf16.msra.mxu0 0
    %3680 = vmatprep.subr.bf16.mxu0 0
    %3681 = vmatpush1.bf16.msra.mxu0 0
    %3682 = vmatprep.subr.bf16.mxu0 0
    %3683 = vmatpush1.bf16.msra.mxu0 0
    %3684 = vmatprep.subr.bf16.mxu0 0
    %3685 = vmatpush1.bf16.msra.mxu0 0
    %3686 = vmatprep.subr.bf16.mxu0 0
    %3687 = vmatpush1.bf16.msra.mxu0 0
    %3688 = vmatprep.subr.bf16.mxu0 0
    %3689 = vmatpush1.bf16.msra.mxu0 0
    %3690 = vmatprep.subr.bf16.mxu0 0
    %3691 = vmatpush1.bf16.msra.mxu0 0
    %3692 = vmatprep.subr.bf16.mxu0 0
    %3693 = vmatpush1.bf16.msra.mxu0 %v3676
    %3694 = vmatprep.subr.bf16.mxu0 0
    %3695 = vmatpush2.bf16.msra.mxu0 0
    %3696 = vmatprep.subr.bf16.mxu0 0
    %3697 = vmatpush2.bf16.msra.mxu0 0
    %3698 = vmatprep.subr.bf16.mxu0 0
    %3699 = vmatpush2.bf16.msra.mxu0 0
    %3700 = vmatprep.subr.bf16.mxu0 0
    %3701 = vmatpush2.bf16.msra.mxu0 0
    %3702 = vmatprep.subr.bf16.mxu0 0
    %3703 = vmatpush2.bf16.msra.mxu0 0
    %3704 = vmatprep.subr.bf16.mxu0 0
    %3705 = vmatpush2.bf16.msra.mxu0 0
    %3706 = vmatprep.subr.bf16.mxu0 0
    %3707 = vmatpush2.bf16.msra.mxu0 0
    %3708 = vmatprep.subr.bf16.mxu0 0
    %3709 = vmatpush2.bf16.msra.mxu0 0
    %3710 = vmatprep.mubr.bf16.mxu0 0
    %3711 = vmatmul.mubr.bf16.gmra.mxu0 %v3673
    %v3712 = vpop.f32.mrf.mxu0
    %v3713 = vadd.f32 0.0, %v3712
    %v3714 = vpop.f32.mrf.mxu0
    %v3715 = vpop.f32.mrf.mxu0
    %v3716 = vpop.f32.mrf.mxu0
    %3717 = vdwg.mxu0
    %3719 = vrot.lane.b32.xlu0 %v604, 96
    %v3720 = vpop.permute.xlu0 %3719
    %v3722 = vsel %vm2024, %v2341, 0
    %v3725 = vsel %vm2351, %v3720, 0
    %3727 = vmatprep.subr.bf16.mxu0 0
    %3728 = vmatpush1.bf16.msra.mxu0 0
    %3729 = vmatprep.subr.bf16.mxu0 0
    %3730 = vmatpush1.bf16.msra.mxu0 0
    %3731 = vmatprep.subr.bf16.mxu0 0
    %3732 = vmatpush1.bf16.msra.mxu0 0
    %3733 = vmatprep.subr.bf16.mxu0 0
    %3734 = vmatpush1.bf16.msra.mxu0 0
    %3735 = vmatprep.subr.bf16.mxu0 0
    %3736 = vmatpush1.bf16.msra.mxu0 0
    %3737 = vmatprep.subr.bf16.mxu0 0
    %3738 = vmatpush1.bf16.msra.mxu0 0
    %3739 = vmatprep.subr.bf16.mxu0 0
    %3740 = vmatpush1.bf16.msra.mxu0 0
    %3741 = vmatprep.subr.bf16.mxu0 0
    %3742 = vmatpush1.bf16.msra.mxu0 %v3725
    %3743 = vmatprep.subr.bf16.mxu0 0
    %3744 = vmatpush2.bf16.msra.mxu0 0
    %3745 = vmatprep.subr.bf16.mxu0 0
    %3746 = vmatpush2.bf16.msra.mxu0 0
    %3747 = vmatprep.subr.bf16.mxu0 0
    %3748 = vmatpush2.bf16.msra.mxu0 0
    %3749 = vmatprep.subr.bf16.mxu0 0
    %3750 = vmatpush2.bf16.msra.mxu0 0
    %3751 = vmatprep.subr.bf16.mxu0 0
    %3752 = vmatpush2.bf16.msra.mxu0 0
    %3753 = vmatprep.subr.bf16.mxu0 0
    %3754 = vmatpush2.bf16.msra.mxu0 0
    %3755 = vmatprep.subr.bf16.mxu0 0
    %3756 = vmatpush2.bf16.msra.mxu0 0
    %3757 = vmatprep.subr.bf16.mxu0 0
    %3758 = vmatpush2.bf16.msra.mxu0 0
    %3759 = vmatprep.mubr.bf16.mxu0 0
    %3760 = vmatmul.mubr.bf16.gmra.mxu0 %v3722
    %v3761 = vpop.f32.mrf.mxu0
    %v3762 = vadd.f32 0.0, %v3761
    %v3763 = vpop.f32.mrf.mxu0
    %v3764 = vpop.f32.mrf.mxu0
    %v3765 = vpop.f32.mrf.mxu0
    %3766 = vdwg.mxu0
    %3768 = vrot.lane.b32.xlu0 %v605, 96
    %v3769 = vpop.permute.xlu0 %3768
    %v3771 = vsel %vm2024, %v2342, 0
    %v3774 = vsel %vm2351, %v3769, 0
    %3776 = vmatprep.subr.bf16.mxu0 0
    %3777 = vmatpush1.bf16.msra.mxu0 0
    %3778 = vmatprep.subr.bf16.mxu0 0
    %3779 = vmatpush1.bf16.msra.mxu0 0
    %3780 = vmatprep.subr.bf16.mxu0 0
    %3781 = vmatpush1.bf16.msra.mxu0 0
    %3782 = vmatprep.subr.bf16.mxu0 0
    %3783 = vmatpush1.bf16.msra.mxu0 0
    %3784 = vmatprep.subr.bf16.mxu0 0
    %3785 = vmatpush1.bf16.msra.mxu0 0
    %3786 = vmatprep.subr.bf16.mxu0 0
    %3787 = vmatpush1.bf16.msra.mxu0 0
    %3788 = vmatprep.subr.bf16.mxu0 0
    %3789 = vmatpush1.bf16.msra.mxu0 0
    %3790 = vmatprep.subr.bf16.mxu0 0
    %3791 = vmatpush1.bf16.msra.mxu0 %v3774
    %3792 = vmatprep.subr.bf16.mxu0 0
    %3793 = vmatpush2.bf16.msra.mxu0 0
    %3794 = vmatprep.subr.bf16.mxu0 0
    %3795 = vmatpush2.bf16.msra.mxu0 0
    %3796 = vmatprep.subr.bf16.mxu0 0
    %3797 = vmatpush2.bf16.msra.mxu0 0
    %3798 = vmatprep.subr.bf16.mxu0 0
    %3799 = vmatpush2.bf16.msra.mxu0 0
    %3800 = vmatprep.subr.bf16.mxu0 0
    %3801 = vmatpush2.bf16.msra.mxu0 0
    %3802 = vmatprep.subr.bf16.mxu0 0
    %3803 = vmatpush2.bf16.msra.mxu0 0
    %3804 = vmatprep.subr.bf16.mxu0 0
    %3805 = vmatpush2.bf16.msra.mxu0 0
    %3806 = vmatprep.subr.bf16.mxu0 0
    %3807 = vmatpush2.bf16.msra.mxu0 0
    %3808 = vmatprep.mubr.bf16.mxu0 0
    %3809 = vmatmul.mubr.bf16.gmra.mxu0 %v3771
    %v3810 = vpop.f32.mrf.mxu0
    %v3811 = vadd.f32 0.0, %v3810
    %v3812 = vpop.f32.mrf.mxu0
    %v3813 = vpop.f32.mrf.mxu0
    %v3814 = vpop.f32.mrf.mxu0
    %3815 = vdwg.mxu0
    %3817 = vrot.lane.b32.xlu0 %v606, 96
    %v3818 = vpop.permute.xlu0 %3817
    %v3820 = vsel %vm2024, %v2343, 0
    %v3823 = vsel %vm2351, %v3818, 0
    %3825 = vmatprep.subr.bf16.mxu0 0
    %3826 = vmatpush1.bf16.msra.mxu0 0
    %3827 = vmatprep.subr.bf16.mxu0 0
    %3828 = vmatpush1.bf16.msra.mxu0 0
    %3829 = vmatprep.subr.bf16.mxu0 0
    %3830 = vmatpush1.bf16.msra.mxu0 0
    %3831 = vmatprep.subr.bf16.mxu0 0
    %3832 = vmatpush1.bf16.msra.mxu0 0
    %3833 = vmatprep.subr.bf16.mxu0 0
    %3834 = vmatpush1.bf16.msra.mxu0 0
    %3835 = vmatprep.subr.bf16.mxu0 0
    %3836 = vmatpush1.bf16.msra.mxu0 0
    %3837 = vmatprep.subr.bf16.mxu0 0
    %3838 = vmatpush1.bf16.msra.mxu0 0
    %3839 = vmatprep.subr.bf16.mxu0 0
    %3840 = vmatpush1.bf16.msra.mxu0 %v3823
    %3841 = vmatprep.subr.bf16.mxu0 0
    %3842 = vmatpush2.bf16.msra.mxu0 0
    %3843 = vmatprep.subr.bf16.mxu0 0
    %3844 = vmatpush2.bf16.msra.mxu0 0
    %3845 = vmatprep.subr.bf16.mxu0 0
    %3846 = vmatpush2.bf16.msra.mxu0 0
    %3847 = vmatprep.subr.bf16.mxu0 0
    %3848 = vmatpush2.bf16.msra.mxu0 0
    %3849 = vmatprep.subr.bf16.mxu0 0
    %3850 = vmatpush2.bf16.msra.mxu0 0
    %3851 = vmatprep.subr.bf16.mxu0 0
    %3852 = vmatpush2.bf16.msra.mxu0 0
    %3853 = vmatprep.subr.bf16.mxu0 0
    %3854 = vmatpush2.bf16.msra.mxu0 0
    %3855 = vmatprep.subr.bf16.mxu0 0
    %3856 = vmatpush2.bf16.msra.mxu0 0
    %3857 = vmatprep.mubr.bf16.mxu0 0
    %3858 = vmatmul.mubr.bf16.gmra.mxu0 %v3820
    %v3859 = vpop.f32.mrf.mxu0
    %v3860 = vadd.f32 0.0, %v3859
    %v3861 = vpop.f32.mrf.mxu0
    %v3862 = vpop.f32.mrf.mxu0
    %v3863 = vpop.f32.mrf.mxu0
    %3864 = vdwg.mxu0
    %3866 = vrot.lane.b32.xlu0 %v607, 96
    %v3867 = vpop.permute.xlu0 %3866
    %v3869 = vsel %vm2024, %v2344, 0
    %v3872 = vsel %vm2351, %v3867, 0
    %3874 = vmatprep.subr.bf16.mxu0 0
    %3875 = vmatpush1.bf16.msra.mxu0 0
    %3876 = vmatprep.subr.bf16.mxu0 0
    %3877 = vmatpush1.bf16.msra.mxu0 0
    %3878 = vmatprep.subr.bf16.mxu0 0
    %3879 = vmatpush1.bf16.msra.mxu0 0
    %3880 = vmatprep.subr.bf16.mxu0 0
    %3881 = vmatpush1.bf16.msra.mxu0 0
    %3882 = vmatprep.subr.bf16.mxu0 0
    %3883 = vmatpush1.bf16.msra.mxu0 0
    %3884 = vmatprep.subr.bf16.mxu0 0
    %3885 = vmatpush1.bf16.msra.mxu0 0
    %3886 = vmatprep.subr.bf16.mxu0 0
    %3887 = vmatpush1.bf16.msra.mxu0 0
    %3888 = vmatprep.subr.bf16.mxu0 0
    %3889 = vmatpush1.bf16.msra.mxu0 %v3872
    %3890 = vmatprep.subr.bf16.mxu0 0
    %3891 = vmatpush2.bf16.msra.mxu0 0
    %3892 = vmatprep.subr.bf16.mxu0 0
    %3893 = vmatpush2.bf16.msra.mxu0 0
    %3894 = vmatprep.subr.bf16.mxu0 0
    %3895 = vmatpush2.bf16.msra.mxu0 0
    %3896 = vmatprep.subr.bf16.mxu0 0
    %3897 = vmatpush2.bf16.msra.mxu0 0
    %3898 = vmatprep.subr.bf16.mxu0 0
    %3899 = vmatpush2.bf16.msra.mxu0 0
    %3900 = vmatprep.subr.bf16.mxu0 0
    %3901 = vmatpush2.bf16.msra.mxu0 0
    %3902 = vmatprep.subr.bf16.mxu0 0
    %3903 = vmatpush2.bf16.msra.mxu0 0
    %3904 = vmatprep.subr.bf16.mxu0 0
    %3905 = vmatpush2.bf16.msra.mxu0 0
    %3906 = vmatprep.mubr.bf16.mxu0 0
    %3907 = vmatmul.mubr.bf16.gmra.mxu0 %v3869
    %v3908 = vpop.f32.mrf.mxu0
    %v3909 = vadd.f32 0.0, %v3908
    %v3910 = vpop.f32.mrf.mxu0
    %v3911 = vpop.f32.mrf.mxu0
    %v3912 = vpop.f32.mrf.mxu0
    %3913 = vdwg.mxu0
    %v3914 = vrcp.pop %v2219
    %v3915 = vrcp.pop %v2222
    %v3916 = vrcp.pop %v2225
    %v3917 = vrcp.pop %v2228
    %v3918 = vrcp.pop %v2231
    %v3919 = vrcp.pop %v2234
    %v3920 = vrcp.pop %v2237
    %v3921 = vrcp.pop %v2240
    %v3922 = vrcp.pop %v2243
    %v3923 = vrcp.pop %v2246
    %v3924 = vrcp.pop %v2249
    %v3925 = vrcp.pop %v2252
    %v3926 = vrcp.pop %v2255
    %v3927 = vrcp.pop %v2258
    %v3928 = vrcp.pop %v2261
    %v3929 = vrcp.pop %v2264
    %v3930 = vrcp.pop %v2267
    %v3931 = vrcp.pop %v2270
    %v3932 = vrcp.pop %v2273
    %v3933 = vrcp.pop %v2276
    %v3934 = vrcp.pop %v2279
    %v3935 = vrcp.pop %v2282
    %v3936 = vrcp.pop %v2285
    %v3937 = vrcp.pop %v2288
    %v3938 = vrcp.pop %v2291
    %v3939 = vrcp.pop %v2294
    %v3940 = vrcp.pop %v2297
    %v3941 = vrcp.pop %v2300
    %v3942 = vrcp.pop %v2303
    %v3943 = vrcp.pop %v2306
    %v3944 = vrcp.pop %v2309
    %v3945 = vrcp.pop %v2312
    %v3946 = vmul.f32 %v2390, %v3914
    %v3947 = vmul.f32 %v2439, %v3915
    %v3948 = vmul.f32 %v2488, %v3916
    %v3949 = vmul.f32 %v2537, %v3917
    %v3950 = vmul.f32 %v2586, %v3918
    %v3951 = vmul.f32 %v2635, %v3919
    %v3952 = vmul.f32 %v2684, %v3920
    %v3953 = vmul.f32 %v2733, %v3921
    %v3954 = vmul.f32 %v2782, %v3922
    %v3955 = vmul.f32 %v2831, %v3923
    %v3956 = vmul.f32 %v2880, %v3924
    %v3957 = vmul.f32 %v2929, %v3925
    %v3958 = vmul.f32 %v2978, %v3926
    %v3959 = vmul.f32 %v3027, %v3927
    %v3960 = vmul.f32 %v3076, %v3928
    %v3961 = vmul.f32 %v3125, %v3929
    %v3962 = vmul.f32 %v3174, %v3930
    %v3963 = vmul.f32 %v3223, %v3931
    %v3964 = vmul.f32 %v3272, %v3932
    %v3965 = vmul.f32 %v3321, %v3933
    %v3966 = vmul.f32 %v3370, %v3934
    %v3967 = vmul.f32 %v3419, %v3935
    %v3968 = vmul.f32 %v3468, %v3936
    %v3969 = vmul.f32 %v3517, %v3937
    %v3970 = vmul.f32 %v3566, %v3938
    %v3971 = vmul.f32 %v3615, %v3939
    %v3972 = vmul.f32 %v3664, %v3940
    %v3973 = vmul.f32 %v3713, %v3941
    %v3974 = vmul.f32 %v3762, %v3942
    %v3975 = vmul.f32 %v3811, %v3943
    %v3976 = vmul.f32 %v3860, %v3944
    %v3977 = vmul.f32 %v3909, %v3945
    %3986 = vrot.lane.b32.xlu0 %v3954, 16
    %v3987 = vpop.permute.xlu0 %3986
    %3988 = vrot.lane.b32.xlu0 %v3955, 16
    %v3989 = vpop.permute.xlu0 %3988
    %3990 = vrot.lane.b32.xlu0 %v3956, 16
    %v3991 = vpop.permute.xlu0 %3990
    %3992 = vrot.lane.b32.xlu0 %v3957, 16
    %v3993 = vpop.permute.xlu0 %3992
    %3994 = vrot.lane.b32.xlu0 %v3958, 16
    %v3995 = vpop.permute.xlu0 %3994
    %3996 = vrot.lane.b32.xlu0 %v3959, 16
    %v3997 = vpop.permute.xlu0 %3996
    %3998 = vrot.lane.b32.xlu0 %v3960, 16
    %v3999 = vpop.permute.xlu0 %3998
    %4000 = vrot.lane.b32.xlu0 %v3961, 16
    %v4001 = vpop.permute.xlu0 %4000
    %v4010 = vsel %vm613, %v3946, %v3987
    %v4011 = vsel %vm613, %v3947, %v3989
    %v4012 = vsel %vm613, %v3948, %v3991
    %v4013 = vsel %vm613, %v3949, %v3993
    %v4014 = vsel %vm613, %v3950, %v3995
    %v4015 = vsel %vm613, %v3951, %v3997
    %v4016 = vsel %vm613, %v3952, %v3999
    %v4017 = vsel %vm613, %v3953, %v4001
    %4026 = vrot.lane.b32.xlu0 %v3970, 16
    %v4027 = vpop.permute.xlu0 %4026
    %4028 = vrot.lane.b32.xlu0 %v3971, 16
    %v4029 = vpop.permute.xlu0 %4028
    %4030 = vrot.lane.b32.xlu0 %v3972, 16
    %v4031 = vpop.permute.xlu0 %4030
    %4032 = vrot.lane.b32.xlu0 %v3973, 16
    %v4033 = vpop.permute.xlu0 %4032
    %4034 = vrot.lane.b32.xlu0 %v3974, 16
    %v4035 = vpop.permute.xlu0 %4034
    %4036 = vrot.lane.b32.xlu0 %v3975, 16
    %v4037 = vpop.permute.xlu0 %4036
    %4038 = vrot.lane.b32.xlu0 %v3976, 16
    %v4039 = vpop.permute.xlu0 %4038
    %4040 = vrot.lane.b32.xlu0 %v3977, 16
    %v4041 = vpop.permute.xlu0 %4040
    %v4050 = vsel %vm613, %v3962, %v4027
    %v4051 = vsel %vm613, %v3963, %v4029
    %v4052 = vsel %vm613, %v3964, %v4031
    %v4053 = vsel %vm613, %v3965, %v4033
    %v4054 = vsel %vm613, %v3966, %v4035
    %v4055 = vsel %vm613, %v3967, %v4037
    %v4056 = vsel %vm613, %v3968, %v4039
    %v4057 = vsel %vm613, %v3969, %v4041
    %v4058 = vpack.c.bf16 %v4011, %v4010
    %v4059 = vpack.c.bf16 %v4013, %v4012
    %v4060 = vpack.c.bf16 %v4015, %v4014
    %v4061 = vpack.c.bf16 %v4017, %v4016
    %v4062 = vlaneseq
    %v4063 = vshrl.u32 %v4062, 7
    %v4064 = vsub.s32 0, %v4063
    %v4065 = vrot.slane %v50, %v4064
    %v4070 = vunpack.c.l.b16 %v32
    %v4071 = vunpack.c.l.b16 %v33
    %v4072 = vunpack.c.l.b16 %v34
    %v4073 = vunpack.c.l.b16 %v35
    %v4074 = vpack.c.b16 %v4071, %v4070
    %v4075 = vpack.c.b16 %v4073, %v4072
    %v4079 = vsel %vm98, %v4058, 0
    %v4082 = vsel %vm98, %v4059, 0
    %v4085 = vsel %vm98, %v4060, 0
    %v4088 = vsel %vm98, %v4061, 0
    %4090 = vmatprep.subr.bf16.mxu0 0
    %4091 = vmatpush1.bf16.msra.mxu0 0
    %4092 = vmatprep.subr.bf16.mxu0 0
    %4093 = vmatpush1.bf16.msra.mxu0 0
    %4094 = vmatprep.subr.bf16.mxu0 0
    %4095 = vmatpush1.bf16.msra.mxu0 0
    %4096 = vmatprep.subr.bf16.mxu0 0
    %4097 = vmatpush1.bf16.msra.mxu0 0
    %4098 = vmatprep.subr.bf16.mxu0 0
    %4099 = vmatpush1.bf16.msra.mxu0 0
    %4100 = vmatprep.subr.bf16.mxu0 0
    %4101 = vmatpush1.bf16.msra.mxu0 0
    %4102 = vmatprep.subr.bf16.mxu0 0
    %4103 = vmatpush1.bf16.msra.mxu0 %v4075
    %4104 = vmatprep.subr.bf16.mxu0 0
    %4105 = vmatpush1.bf16.msra.mxu0 %v4074
    %4106 = vmatprep.subr.bf16.mxu0 0
    %4107 = vmatpush2.bf16.msra.mxu0 0
    %4108 = vmatprep.subr.bf16.mxu0 0
    %4109 = vmatpush2.bf16.msra.mxu0 0
    %4110 = vmatprep.subr.bf16.mxu0 0
    %4111 = vmatpush2.bf16.msra.mxu0 0
    %4112 = vmatprep.subr.bf16.mxu0 0
    %4113 = vmatpush2.bf16.msra.mxu0 0
    %4114 = vmatprep.subr.bf16.mxu0 0
    %4115 = vmatpush2.bf16.msra.mxu0 0
    %4116 = vmatprep.subr.bf16.mxu0 0
    %4117 = vmatpush2.bf16.msra.mxu0 0
    %4118 = vmatprep.subr.bf16.mxu0 0
    %4119 = vmatpush2.bf16.msra.mxu0 0
    %4120 = vmatprep.subr.bf16.mxu0 0
    %4121 = vmatpush2.bf16.msra.mxu0 0
    %4122 = vmatprep.mubr.bf16.mxu0 0
    %4123 = vmatmul.mubr.bf16.gmra.mxu0 %v4079
    %v4124 = vpop.f32.mrf.mxu0
    %v4125 = vadd.f32 %v4065, %v4124
    %v4126 = vpop.f32.mrf.mxu0
    %v4127 = vpop.f32.mrf.mxu0
    %v4128 = vadd.f32 %v4065, %v4127
    %v4129 = vpop.f32.mrf.mxu0
    %4130 = vmatprep.mubr.bf16.mxu0 0
    %4131 = vmatmul.mubr.bf16.gmra.mxu0 %v4082
    %v4132 = vpop.f32.mrf.mxu0
    %v4133 = vadd.f32 %v4065, %v4132
    %v4134 = vpop.f32.mrf.mxu0
    %v4135 = vpop.f32.mrf.mxu0
    %v4136 = vadd.f32 %v4065, %v4135
    %v4137 = vpop.f32.mrf.mxu0
    %4138 = vmatprep.mubr.bf16.mxu0 0
    %4139 = vmatmul.mubr.bf16.gmra.mxu0 %v4085
    %v4140 = vpop.f32.mrf.mxu0
    %v4141 = vadd.f32 %v4065, %v4140
    %v4142 = vpop.f32.mrf.mxu0
    %v4143 = vpop.f32.mrf.mxu0
    %v4144 = vadd.f32 %v4065, %v4143
    %v4145 = vpop.f32.mrf.mxu0
    %4146 = vmatprep.mubr.bf16.mxu0 0
    %4147 = vmatmul.mubr.bf16.gmra.mxu0 %v4088
    %v4148 = vpop.f32.mrf.mxu0
    %v4149 = vadd.f32 %v4065, %v4148
    %v4150 = vpop.f32.mrf.mxu0
    %v4151 = vpop.f32.mrf.mxu0
    %v4152 = vadd.f32 %v4065, %v4151
    %v4153 = vpop.f32.mrf.mxu0
    %4154 = vdwg.mxu0
    %v4155 = vadd.f32 %v58, %v4125
    %v4156 = vadd.f32 %v59, %v4128
    %v4157 = vadd.f32 %v60, %v4133
    %v4158 = vadd.f32 %v61, %v4136
    %v4159 = vadd.f32 %v62, %v4141
    %v4160 = vadd.f32 %v63, %v4144
    %v4161 = vadd.f32 %v64, %v4149
    %v4162 = vadd.f32 %v65, %v4152
    %v4163 = vsel %vm98, %v4155, 0.0
    %4164 = vadd.xlane.f32.xlu0 %v4163
    %v4165 = vpop.xlane.xlu0 %4164
    %v4166 = vsel %vm98, %v4156, 0.0
    %4167 = vadd.xlane.f32.xlu0 %v4166
    %v4168 = vpop.xlane.xlu0 %4167
    %v4169 = vsel %vm98, %v4157, 0.0
    %4170 = vadd.xlane.f32.xlu0 %v4169
    %v4171 = vpop.xlane.xlu0 %4170
    %v4172 = vsel %vm98, %v4158, 0.0
    %4173 = vadd.xlane.f32.xlu0 %v4172
    %v4174 = vpop.xlane.xlu0 %4173
    %v4175 = vsel %vm98, %v4159, 0.0
    %4176 = vadd.xlane.f32.xlu0 %v4175
    %v4177 = vpop.xlane.xlu0 %4176
    %v4178 = vsel %vm98, %v4160, 0.0
    %4179 = vadd.xlane.f32.xlu0 %v4178
    %v4180 = vpop.xlane.xlu0 %4179
    %v4181 = vsel %vm98, %v4161, 0.0
    %4182 = vadd.xlane.f32.xlu0 %v4181
    %v4183 = vpop.xlane.xlu0 %4182
    %v4184 = vsel %vm98, %v4162, 0.0
    %4185 = vadd.xlane.f32.xlu0 %v4184
    %v4186 = vpop.xlane.xlu0 %4185
    %v4187 = vrcp.pop 32.0
    %v4188 = vmul.f32 %v4165, %v4187
    %v4189 = vmul.f32 %v4168, %v4187
    %v4190 = vmul.f32 %v4171, %v4187
    %v4191 = vmul.f32 %v4174, %v4187
    %v4192 = vmul.f32 %v4177, %v4187
    %v4193 = vmul.f32 %v4180, %v4187
    %v4194 = vmul.f32 %v4183, %v4187
    %v4195 = vmul.f32 %v4186, %v4187
    %v4196 = vsub.f32 %v4155, %v4188
    %v4197 = vsub.f32 %v4156, %v4189
    %v4198 = vsub.f32 %v4157, %v4190
    %v4199 = vsub.f32 %v4158, %v4191
    %v4200 = vsub.f32 %v4159, %v4192
    %v4201 = vsub.f32 %v4160, %v4193
    %v4202 = vsub.f32 %v4161, %v4194
    %v4203 = vsub.f32 %v4162, %v4195
    %v4204 = vmul.f32 %v4196, %v4196
    %v4205 = vmul.f32 %v4197, %v4197
    %v4206 = vmul.f32 %v4198, %v4198
    %v4207 = vmul.f32 %v4199, %v4199
    %v4208 = vmul.f32 %v4200, %v4200
    %v4209 = vmul.f32 %v4201, %v4201
    %v4210 = vmul.f32 %v4202, %v4202
    %v4211 = vmul.f32 %v4203, %v4203
    %v4212 = vsel %vm98, %v4204, 0.0
    %4213 = vadd.xlane.f32.xlu0 %v4212
    %v4214 = vpop.xlane.xlu0 %4213
    %v4215 = vsel %vm98, %v4205, 0.0
    %4216 = vadd.xlane.f32.xlu0 %v4215
    %v4217 = vpop.xlane.xlu0 %4216
    %v4218 = vsel %vm98, %v4206, 0.0
    %4219 = vadd.xlane.f32.xlu0 %v4218
    %v4220 = vpop.xlane.xlu0 %4219
    %v4221 = vsel %vm98, %v4207, 0.0
    %4222 = vadd.xlane.f32.xlu0 %v4221
    %v4223 = vpop.xlane.xlu0 %4222
    %v4224 = vsel %vm98, %v4208, 0.0
    %4225 = vadd.xlane.f32.xlu0 %v4224
    %v4226 = vpop.xlane.xlu0 %4225
    %v4227 = vsel %vm98, %v4209, 0.0
    %4228 = vadd.xlane.f32.xlu0 %v4227
    %v4229 = vpop.xlane.xlu0 %4228
    %v4230 = vsel %vm98, %v4210, 0.0
    %4231 = vadd.xlane.f32.xlu0 %v4230
    %v4232 = vpop.xlane.xlu0 %4231
    %v4233 = vsel %vm98, %v4211, 0.0
    %4234 = vadd.xlane.f32.xlu0 %v4233
    %v4235 = vpop.xlane.xlu0 %4234
    %v4236 = vmul.f32 %v4214, %v4187
    %v4237 = vmul.f32 %v4217, %v4187
    %v4238 = vmul.f32 %v4220, %v4187
    %v4239 = vmul.f32 %v4223, %v4187
    %v4240 = vmul.f32 %v4226, %v4187
    %v4241 = vmul.f32 %v4229, %v4187
    %v4242 = vmul.f32 %v4232, %v4187
    %v4243 = vmul.f32 %v4235, %v4187
    %v4244 = vadd.f32 %v4236, 1e-05
    %v4245 = vadd.f32 %v4237, 1e-05
    %v4246 = vadd.f32 %v4238, 1e-05
    %v4247 = vadd.f32 %v4239, 1e-05
    %v4248 = vadd.f32 %v4240, 1e-05
    %v4249 = vadd.f32 %v4241, 1e-05
    %v4250 = vadd.f32 %v4242, 1e-05
    %v4251 = vadd.f32 %v4243, 1e-05
    %v4252 = vrsqrt.pop %v4244
    %v4253 = vrsqrt.pop %v4245
    %v4254 = vrsqrt.pop %v4246
    %v4255 = vrsqrt.pop %v4247
    %v4256 = vrsqrt.pop %v4248
    %v4257 = vrsqrt.pop %v4249
    %v4258 = vrsqrt.pop %v4250
    %v4259 = vrsqrt.pop %v4251
    %v4260 = vmul.f32 %v4196, %v4252
    %v4261 = vmul.f32 %v4197, %v4253
    %v4262 = vmul.f32 %v4198, %v4254
    %v4263 = vmul.f32 %v4199, %v4255
    %v4264 = vmul.f32 %v4200, %v4256
    %v4265 = vmul.f32 %v4201, %v4257
    %v4266 = vmul.f32 %v4202, %v4258
    %v4267 = vmul.f32 %v4203, %v4259
    %v4268 = vlaneseq
    %v4269 = vshrl.u32 %v4268, 7
    %v4270 = vsub.s32 0, %v4269
    %v4271 = vrot.slane %v52, %v4270
    %v4272 = vmul.f32 %v4260, %v4271
    %v4273 = vmul.f32 %v4261, %v4271
    %v4274 = vmul.f32 %v4262, %v4271
    %v4275 = vmul.f32 %v4263, %v4271
    %v4276 = vmul.f32 %v4264, %v4271
    %v4277 = vmul.f32 %v4265, %v4271
    %v4278 = vmul.f32 %v4266, %v4271
    %v4279 = vmul.f32 %v4267, %v4271
    %v4280 = vlaneseq
    %v4281 = vshrl.u32 %v4280, 7
    %v4282 = vsub.s32 0, %v4281
    %v4283 = vrot.slane %v53, %v4282
    %v4284 = vadd.f32 %v4272, %v4283
    %v4285 = vadd.f32 %v4273, %v4283
    %v4286 = vadd.f32 %v4274, %v4283
    %v4287 = vadd.f32 %v4275, %v4283
    %v4288 = vadd.f32 %v4276, %v4283
    %v4289 = vadd.f32 %v4277, %v4283
    %v4290 = vadd.f32 %v4278, %v4283
    %v4291 = vadd.f32 %v4279, %v4283
    %v4292 = vpack.c.bf16 %v4051, %v4050
    %v4293 = vpack.c.bf16 %v4053, %v4052
    %v4294 = vpack.c.bf16 %v4055, %v4054
    %v4295 = vpack.c.bf16 %v4057, %v4056
    %v4296 = vlaneseq
    %v4297 = vshrl.u32 %v4296, 7
    %v4298 = vsub.s32 0, %v4297
    %v4299 = vrot.slane %v51, %v4298
    %4300 = vrot.lane.b32.xlu0 %v4074, 96
    %v4301 = vpop.permute.xlu0 %4300
    %4302 = vrot.lane.b32.xlu0 %v4075, 96
    %v4303 = vpop.permute.xlu0 %4302
    %v4307 = vsel %vm98, %v4292, 0
    %v4310 = vsel %vm98, %v4293, 0
    %v4313 = vsel %vm98, %v4294, 0
    %v4316 = vsel %vm98, %v4295, 0
    %4318 = vmatprep.subr.bf16.mxu0 0
    %4319 = vmatpush1.bf16.msra.mxu0 0
    %4320 = vmatprep.subr.bf16.mxu0 0
    %4321 = vmatpush1.bf16.msra.mxu0 0
    %4322 = vmatprep.subr.bf16.mxu0 0
    %4323 = vmatpush1.bf16.msra.mxu0 0
    %4324 = vmatprep.subr.bf16.mxu0 0
    %4325 = vmatpush1.bf16.msra.mxu0 0
    %4326 = vmatprep.subr.bf16.mxu0 0
    %4327 = vmatpush1.bf16.msra.mxu0 0
    %4328 = vmatprep.subr.bf16.mxu0 0
    %4329 = vmatpush1.bf16.msra.mxu0 0
    %4330 = vmatprep.subr.bf16.mxu0 0
    %4331 = vmatpush1.bf16.msra.mxu0 %v4303
    %4332 = vmatprep.subr.bf16.mxu0 0
    %4333 = vmatpush1.bf16.msra.mxu0 %v4301
    %4334 = vmatprep.subr.bf16.mxu0 0
    %4335 = vmatpush2.bf16.msra.mxu0 0
    %4336 = vmatprep.subr.bf16.mxu0 0
    %4337 = vmatpush2.bf16.msra.mxu0 0
    %4338 = vmatprep.subr.bf16.mxu0 0
    %4339 = vmatpush2.bf16.msra.mxu0 0
    %4340 = vmatprep.subr.bf16.mxu0 0
    %4341 = vmatpush2.bf16.msra.mxu0 0
    %4342 = vmatprep.subr.bf16.mxu0 0
    %4343 = vmatpush2.bf16.msra.mxu0 0
    %4344 = vmatprep.subr.bf16.mxu0 0
    %4345 = vmatpush2.bf16.msra.mxu0 0
    %4346 = vmatprep.subr.bf16.mxu0 0
    %4347 = vmatpush2.bf16.msra.mxu0 0
    %4348 = vmatprep.subr.bf16.mxu0 0
    %4349 = vmatpush2.bf16.msra.mxu0 0
    %4350 = vmatprep.mubr.bf16.mxu0 0
    %4351 = vmatmul.mubr.bf16.gmra.mxu0 %v4307
    %v4352 = vpop.f32.mrf.mxu0
    %v4353 = vadd.f32 %v4299, %v4352
    %v4354 = vpop.f32.mrf.mxu0
    %v4355 = vpop.f32.mrf.mxu0
    %v4356 = vadd.f32 %v4299, %v4355
    %v4357 = vpop.f32.mrf.mxu0
    %4358 = vmatprep.mubr.bf16.mxu0 0
    %4359 = vmatmul.mubr.bf16.gmra.mxu0 %v4310
    %v4360 = vpop.f32.mrf.mxu0
    %v4361 = vadd.f32 %v4299, %v4360
    %v4362 = vpop.f32.mrf.mxu0
    %v4363 = vpop.f32.mrf.mxu0
    %v4364 = vadd.f32 %v4299, %v4363
    %v4365 = vpop.f32.mrf.mxu0
    %4366 = vmatprep.mubr.bf16.mxu0 0
    %4367 = vmatmul.mubr.bf16.gmra.mxu0 %v4313
    %v4368 = vpop.f32.mrf.mxu0
    %v4369 = vadd.f32 %v4299, %v4368
    %v4370 = vpop.f32.mrf.mxu0
    %v4371 = vpop.f32.mrf.mxu0
    %v4372 = vadd.f32 %v4299, %v4371
    %v4373 = vpop.f32.mrf.mxu0
    %4374 = vmatprep.mubr.bf16.mxu0 0
    %4375 = vmatmul.mubr.bf16.gmra.mxu0 %v4316
    %v4376 = vpop.f32.mrf.mxu0
    %v4377 = vadd.f32 %v4299, %v4376
    %v4378 = vpop.f32.mrf.mxu0
    %v4379 = vpop.f32.mrf.mxu0
    %v4380 = vadd.f32 %v4299, %v4379
    %v4381 = vpop.f32.mrf.mxu0
    %4382 = vdwg.mxu0
    %v4383 = vadd.f32 %v66, %v4353
    %v4384 = vadd.f32 %v67, %v4356
    %v4385 = vadd.f32 %v68, %v4361
    %v4386 = vadd.f32 %v69, %v4364
    %v4387 = vadd.f32 %v70, %v4369
    %v4388 = vadd.f32 %v71, %v4372
    %v4389 = vadd.f32 %v72, %v4377
    %v4390 = vadd.f32 %v73, %v4380
    %v4391 = vsel %vm98, %v4383, 0.0
    %4392 = vadd.xlane.f32.xlu0 %v4391
    %v4393 = vpop.xlane.xlu0 %4392
    %v4394 = vsel %vm98, %v4384, 0.0
    %4395 = vadd.xlane.f32.xlu0 %v4394
    %v4396 = vpop.xlane.xlu0 %4395
    %v4397 = vsel %vm98, %v4385, 0.0
    %4398 = vadd.xlane.f32.xlu0 %v4397
    %v4399 = vpop.xlane.xlu0 %4398
    %v4400 = vsel %vm98, %v4386, 0.0
    %4401 = vadd.xlane.f32.xlu0 %v4400
    %v4402 = vpop.xlane.xlu0 %4401
    %v4403 = vsel %vm98, %v4387, 0.0
    %4404 = vadd.xlane.f32.xlu0 %v4403
    %v4405 = vpop.xlane.xlu0 %4404
    %v4406 = vsel %vm98, %v4388, 0.0
    %4407 = vadd.xlane.f32.xlu0 %v4406
    %v4408 = vpop.xlane.xlu0 %4407
    %v4409 = vsel %vm98, %v4389, 0.0
    %4410 = vadd.xlane.f32.xlu0 %v4409
    %v4411 = vpop.xlane.xlu0 %4410
    %v4412 = vsel %vm98, %v4390, 0.0
    %4413 = vadd.xlane.f32.xlu0 %v4412
    %v4414 = vpop.xlane.xlu0 %4413
    %v4415 = vmul.f32 %v4393, %v4187
    %v4416 = vmul.f32 %v4396, %v4187
    %v4417 = vmul.f32 %v4399, %v4187
    %v4418 = vmul.f32 %v4402, %v4187
    %v4419 = vmul.f32 %v4405, %v4187
    %v4420 = vmul.f32 %v4408, %v4187
    %v4421 = vmul.f32 %v4411, %v4187
    %v4422 = vmul.f32 %v4414, %v4187
    %v4423 = vsub.f32 %v4383, %v4415
    %v4424 = vsub.f32 %v4384, %v4416
    %v4425 = vsub.f32 %v4385, %v4417
    %v4426 = vsub.f32 %v4386, %v4418
    %v4427 = vsub.f32 %v4387, %v4419
    %v4428 = vsub.f32 %v4388, %v4420
    %v4429 = vsub.f32 %v4389, %v4421
    %v4430 = vsub.f32 %v4390, %v4422
    %v4431 = vmul.f32 %v4423, %v4423
    %v4432 = vmul.f32 %v4424, %v4424
    %v4433 = vmul.f32 %v4425, %v4425
    %v4434 = vmul.f32 %v4426, %v4426
    %v4435 = vmul.f32 %v4427, %v4427
    %v4436 = vmul.f32 %v4428, %v4428
    %v4437 = vmul.f32 %v4429, %v4429
    %v4438 = vmul.f32 %v4430, %v4430
    %v4439 = vsel %vm98, %v4431, 0.0
    %4440 = vadd.xlane.f32.xlu0 %v4439
    %v4441 = vpop.xlane.xlu0 %4440
    %v4442 = vsel %vm98, %v4432, 0.0
    %4443 = vadd.xlane.f32.xlu0 %v4442
    %v4444 = vpop.xlane.xlu0 %4443
    %v4445 = vsel %vm98, %v4433, 0.0
    %4446 = vadd.xlane.f32.xlu0 %v4445
    %v4447 = vpop.xlane.xlu0 %4446
    %v4448 = vsel %vm98, %v4434, 0.0
    %4449 = vadd.xlane.f32.xlu0 %v4448
    %v4450 = vpop.xlane.xlu0 %4449
    %v4451 = vsel %vm98, %v4435, 0.0
    %4452 = vadd.xlane.f32.xlu0 %v4451
    %v4453 = vpop.xlane.xlu0 %4452
    %v4454 = vsel %vm98, %v4436, 0.0
    %4455 = vadd.xlane.f32.xlu0 %v4454
    %v4456 = vpop.xlane.xlu0 %4455
    %v4457 = vsel %vm98, %v4437, 0.0
    %4458 = vadd.xlane.f32.xlu0 %v4457
    %v4459 = vpop.xlane.xlu0 %4458
    %v4460 = vsel %vm98, %v4438, 0.0
    %4461 = vadd.xlane.f32.xlu0 %v4460
    %v4462 = vpop.xlane.xlu0 %4461
    %v4463 = vmul.f32 %v4441, %v4187
    %v4464 = vmul.f32 %v4444, %v4187
    %v4465 = vmul.f32 %v4447, %v4187
    %v4466 = vmul.f32 %v4450, %v4187
    %v4467 = vmul.f32 %v4453, %v4187
    %v4468 = vmul.f32 %v4456, %v4187
    %v4469 = vmul.f32 %v4459, %v4187
    %v4470 = vmul.f32 %v4462, %v4187
    %v4471 = vadd.f32 %v4463, 1e-05
    %v4472 = vadd.f32 %v4464, 1e-05
    %v4473 = vadd.f32 %v4465, 1e-05
    %v4474 = vadd.f32 %v4466, 1e-05
    %v4475 = vadd.f32 %v4467, 1e-05
    %v4476 = vadd.f32 %v4468, 1e-05
    %v4477 = vadd.f32 %v4469, 1e-05
    %v4478 = vadd.f32 %v4470, 1e-05
    %v4479 = vrsqrt.pop %v4471
    %v4480 = vrsqrt.pop %v4472
    %v4481 = vrsqrt.pop %v4473
    %v4482 = vrsqrt.pop %v4474
    %v4483 = vrsqrt.pop %v4475
    %v4484 = vrsqrt.pop %v4476
    %v4485 = vrsqrt.pop %v4477
    %v4486 = vrsqrt.pop %v4478
    %v4487 = vmul.f32 %v4423, %v4479
    %v4488 = vmul.f32 %v4424, %v4480
    %v4489 = vmul.f32 %v4425, %v4481
    %v4490 = vmul.f32 %v4426, %v4482
    %v4491 = vmul.f32 %v4427, %v4483
    %v4492 = vmul.f32 %v4428, %v4484
    %v4493 = vmul.f32 %v4429, %v4485
    %v4494 = vmul.f32 %v4430, %v4486
    %v4495 = vlaneseq
    %v4496 = vshrl.u32 %v4495, 7
    %v4497 = vsub.s32 0, %v4496
    %v4498 = vrot.slane %v54, %v4497
    %v4499 = vmul.f32 %v4487, %v4498
    %v4500 = vmul.f32 %v4488, %v4498
    %v4501 = vmul.f32 %v4489, %v4498
    %v4502 = vmul.f32 %v4490, %v4498
    %v4503 = vmul.f32 %v4491, %v4498
    %v4504 = vmul.f32 %v4492, %v4498
    %v4505 = vmul.f32 %v4493, %v4498
    %v4506 = vmul.f32 %v4494, %v4498
    %v4507 = vlaneseq
    %v4508 = vshrl.u32 %v4507, 7
    %v4509 = vsub.s32 0, %v4508
    %v4510 = vrot.slane %v55, %v4509
    %v4511 = vadd.f32 %v4499, %v4510
    %v4512 = vadd.f32 %v4500, %v4510
    %v4513 = vadd.f32 %v4501, %v4510
    %v4514 = vadd.f32 %v4502, %v4510
    %v4515 = vadd.f32 %v4503, %v4510
    %v4516 = vadd.f32 %v4504, %v4510
    %v4517 = vadd.f32 %v4505, %v4510
    %v4518 = vadd.f32 %v4506, %v4510
    %v4519 = vpack.c.bf16 %v4285, %v4284
    %v4520 = vpack.c.bf16 %v4287, %v4286
    %v4521 = vpack.c.bf16 %v4289, %v4288
    %v4522 = vpack.c.bf16 %v4291, %v4290
    %v4523 = vpack.c.bf16 %v4512, %v4511
    %v4524 = vpack.c.bf16 %v4514, %v4513
    %v4525 = vpack.c.bf16 %v4516, %v4515
    %v4526 = vpack.c.bf16 %v4518, %v4517
    %v4531 = vunpack.c.l.b16 %v37
    %v4532 = vunpack.c.l.b16 %v38
    %v4533 = vunpack.c.l.b16 %v39
    %v4534 = vunpack.c.l.b16 %v40
    %v4535 = vpack.c.b16 %v4532, %v4531
    %v4536 = vpack.c.b16 %v4534, %v4533
    %4537 = vrot.lane.b32.xlu0 %v4535, 96
    %v4538 = vpop.permute.xlu0 %4537
    %4539 = vrot.lane.b32.xlu0 %v4536, 96
    %v4540 = vpop.permute.xlu0 %4539
    %v4544 = vsel %vm98, %v4523, 0
    %v4547 = vsel %vm98, %v4524, 0
    %v4550 = vsel %vm98, %v4525, 0
    %v4553 = vsel %vm98, %v4526, 0
    %4555 = vmatprep.subr.bf16.mxu0 0
    %4556 = vmatpush1.bf16.msra.mxu0 0
    %4557 = vmatprep.subr.bf16.mxu0 0
    %4558 = vmatpush1.bf16.msra.mxu0 0
    %4559 = vmatprep.subr.bf16.mxu0 0
    %4560 = vmatpush1.bf16.msra.mxu0 0
    %4561 = vmatprep.subr.bf16.mxu0 0
    %4562 = vmatpush1.bf16.msra.mxu0 0
    %4563 = vmatprep.subr.bf16.mxu0 0
    %4564 = vmatpush1.bf16.msra.mxu0 0
    %4565 = vmatprep.subr.bf16.mxu0 0
    %4566 = vmatpush1.bf16.msra.mxu0 0
    %4567 = vmatprep.subr.bf16.mxu0 0
    %4568 = vmatpush1.bf16.msra.mxu0 %v4540
    %4569 = vmatprep.subr.bf16.mxu0 0
    %4570 = vmatpush1.bf16.msra.mxu0 %v4538
    %4571 = vmatprep.subr.bf16.mxu0 0
    %4572 = vmatpush2.bf16.msra.mxu0 0
    %4573 = vmatprep.subr.bf16.mxu0 0
    %4574 = vmatpush2.bf16.msra.mxu0 0
    %4575 = vmatprep.subr.bf16.mxu0 0
    %4576 = vmatpush2.bf16.msra.mxu0 0
    %4577 = vmatprep.subr.bf16.mxu0 0
    %4578 = vmatpush2.bf16.msra.mxu0 0
    %4579 = vmatprep.subr.bf16.mxu0 0
    %4580 = vmatpush2.bf16.msra.mxu0 0
    %4581 = vmatprep.subr.bf16.mxu0 0
    %4582 = vmatpush2.bf16.msra.mxu0 0
    %4583 = vmatprep.subr.bf16.mxu0 0
    %4584 = vmatpush2.bf16.msra.mxu0 0
    %4585 = vmatprep.subr.bf16.mxu0 0
    %4586 = vmatpush2.bf16.msra.mxu0 0
    %4587 = vmatprep.mubr.bf16.mxu0 0
    %4588 = vmatmul.mubr.bf16.gmra.mxu0 %v4544
    %v4589 = vpop.f32.mrf.mxu0
    %v4590 = vadd.f32 0.0, %v4589
    %v4591 = vpop.f32.mrf.mxu0
    %v4592 = vpop.f32.mrf.mxu0
    %v4593 = vadd.f32 0.0, %v4592
    %v4594 = vpop.f32.mrf.mxu0
    %4595 = vmatprep.mubr.bf16.mxu0 0
    %4596 = vmatmul.mubr.bf16.gmra.mxu0 %v4547
    %v4597 = vpop.f32.mrf.mxu0
    %v4598 = vadd.f32 0.0, %v4597
    %v4599 = vpop.f32.mrf.mxu0
    %v4600 = vpop.f32.mrf.mxu0
    %v4601 = vadd.f32 0.0, %v4600
    %v4602 = vpop.f32.mrf.mxu0
    %4603 = vmatprep.mubr.bf16.mxu0 0
    %4604 = vmatmul.mubr.bf16.gmra.mxu0 %v4550
    %v4605 = vpop.f32.mrf.mxu0
    %v4606 = vadd.f32 0.0, %v4605
    %v4607 = vpop.f32.mrf.mxu0
    %v4608 = vpop.f32.mrf.mxu0
    %v4609 = vadd.f32 0.0, %v4608
    %v4610 = vpop.f32.mrf.mxu0
    %4611 = vmatprep.mubr.bf16.mxu0 0
    %4612 = vmatmul.mubr.bf16.gmra.mxu0 %v4553
    %v4613 = vpop.f32.mrf.mxu0
    %v4614 = vadd.f32 0.0, %v4613
    %v4615 = vpop.f32.mrf.mxu0
    %v4616 = vpop.f32.mrf.mxu0
    %v4617 = vadd.f32 0.0, %v4616
    %v4618 = vpop.f32.mrf.mxu0
    %4619 = vdwg.mxu0
    %v4623 = vsel %vm98, %v4519, 0
    %v4626 = vsel %vm98, %v4520, 0
    %v4629 = vsel %vm98, %v4521, 0
    %v4632 = vsel %vm98, %v4522, 0
    %4634 = vmatprep.subr.bf16.mxu0 0
    %4635 = vmatpush1.bf16.msra.mxu0 0
    %4636 = vmatprep.subr.bf16.mxu0 0
    %4637 = vmatpush1.bf16.msra.mxu0 0
    %4638 = vmatprep.subr.bf16.mxu0 0
    %4639 = vmatpush1.bf16.msra.mxu0 0
    %4640 = vmatprep.subr.bf16.mxu0 0
    %4641 = vmatpush1.bf16.msra.mxu0 0
    %4642 = vmatprep.subr.bf16.mxu0 0
    %4643 = vmatpush1.bf16.msra.mxu0 0
    %4644 = vmatprep.subr.bf16.mxu0 0
    %4645 = vmatpush1.bf16.msra.mxu0 0
    %4646 = vmatprep.subr.bf16.mxu0 0
    %4647 = vmatpush1.bf16.msra.mxu0 %v4536
    %4648 = vmatprep.subr.bf16.mxu0 0
    %4649 = vmatpush1.bf16.msra.mxu0 %v4535
    %4650 = vmatprep.subr.bf16.mxu0 0
    %4651 = vmatpush2.bf16.msra.mxu0 0
    %4652 = vmatprep.subr.bf16.mxu0 0
    %4653 = vmatpush2.bf16.msra.mxu0 0
    %4654 = vmatprep.subr.bf16.mxu0 0
    %4655 = vmatpush2.bf16.msra.mxu0 0
    %4656 = vmatprep.subr.bf16.mxu0 0
    %4657 = vmatpush2.bf16.msra.mxu0 0
    %4658 = vmatprep.subr.bf16.mxu0 0
    %4659 = vmatpush2.bf16.msra.mxu0 0
    %4660 = vmatprep.subr.bf16.mxu0 0
    %4661 = vmatpush2.bf16.msra.mxu0 0
    %4662 = vmatprep.subr.bf16.mxu0 0
    %4663 = vmatpush2.bf16.msra.mxu0 0
    %4664 = vmatprep.subr.bf16.mxu0 0
    %4665 = vmatpush2.bf16.msra.mxu0 0
    %4666 = vmatprep.mubr.bf16.mxu0 0
    %4667 = vmatmul.mubr.bf16.gmra.mxu0 %v4623
    %v4668 = vpop.f32.mrf.mxu0
    %v4669 = vadd.f32 %v4590, %v4668
    %v4670 = vpop.f32.mrf.mxu0
    %v4671 = vpop.f32.mrf.mxu0
    %v4672 = vadd.f32 %v4593, %v4671
    %v4673 = vpop.f32.mrf.mxu0
    %4674 = vmatprep.mubr.bf16.mxu0 0
    %4675 = vmatmul.mubr.bf16.gmra.mxu0 %v4626
    %v4676 = vpop.f32.mrf.mxu0
    %v4677 = vadd.f32 %v4598, %v4676
    %v4678 = vpop.f32.mrf.mxu0
    %v4679 = vpop.f32.mrf.mxu0
    %v4680 = vadd.f32 %v4601, %v4679
    %v4681 = vpop.f32.mrf.mxu0
    %4682 = vmatprep.mubr.bf16.mxu0 0
    %4683 = vmatmul.mubr.bf16.gmra.mxu0 %v4629
    %v4684 = vpop.f32.mrf.mxu0
    %v4685 = vadd.f32 %v4606, %v4684
    %v4686 = vpop.f32.mrf.mxu0
    %v4687 = vpop.f32.mrf.mxu0
    %v4688 = vadd.f32 %v4609, %v4687
    %v4689 = vpop.f32.mrf.mxu0
    %4690 = vmatprep.mubr.bf16.mxu0 0
    %4691 = vmatmul.mubr.bf16.gmra.mxu0 %v4632
    %v4692 = vpop.f32.mrf.mxu0
    %v4693 = vadd.f32 %v4614, %v4692
    %v4694 = vpop.f32.mrf.mxu0
    %v4695 = vpop.f32.mrf.mxu0
    %v4696 = vadd.f32 %v4617, %v4695
    %v4697 = vpop.f32.mrf.mxu0
    %4698 = vdwg.mxu0
    %v4699 = vlaneseq
    %v4700 = vshrl.u32 %v4699, 7
    %v4701 = vsub.s32 0, %v4700
    %v4702 = vrot.slane %v56, %v4701
    %v4703 = vadd.f32 %v4669, %v4702
    %v4704 = vadd.f32 %v4672, %v4702
    %v4705 = vadd.f32 %v4677, %v4702
    %v4706 = vadd.f32 %v4680, %v4702
    %v4707 = vadd.f32 %v4685, %v4702
    %v4708 = vadd.f32 %v4688, %v4702
    %v4709 = vadd.f32 %v4693, %v4702
    %v4710 = vadd.f32 %v4696, %v4702
    %v4711 = vmax.f32 %v4703, 0.0
    %v4712 = vmax.f32 %v4704, 0.0
    %v4713 = vmax.f32 %v4705, 0.0
    %v4714 = vmax.f32 %v4706, 0.0
    %v4715 = vmax.f32 %v4707, 0.0
    %v4716 = vmax.f32 %v4708, 0.0
    %v4717 = vmax.f32 %v4709, 0.0
    %v4718 = vmax.f32 %v4710, 0.0
    %v4719 = vpack.c.bf16 %v4712, %v4711
    %v4720 = vpack.c.bf16 %v4714, %v4713
    %v4721 = vpack.c.bf16 %v4716, %v4715
    %v4722 = vpack.c.bf16 %v4718, %v4717
    %v4723 = vlaneseq
    %v4724 = vshrl.u32 %v4723, 7
    %v4725 = vsub.s32 0, %v4724
    %v4726 = vrot.slane %v57, %v4725
    %v4731 = vunpack.c.l.b16 %v42
    %v4732 = vunpack.c.l.b16 %v43
    %v4733 = vunpack.c.l.b16 %v44
    %v4734 = vunpack.c.l.b16 %v45
    %v4735 = vpack.c.b16 %v4732, %v4731
    %v4736 = vpack.c.b16 %v4734, %v4733
    %v4740 = vsel %vm98, %v4719, 0
    %v4743 = vsel %vm98, %v4720, 0
    %v4746 = vsel %vm98, %v4721, 0
    %v4749 = vsel %vm98, %v4722, 0
    %4751 = vmatprep.subr.bf16.mxu0 0
    %4752 = vmatpush1.bf16.msra.mxu0 0
    %4753 = vmatprep.subr.bf16.mxu0 0
    %4754 = vmatpush1.bf16.msra.mxu0 0
    %4755 = vmatprep.subr.bf16.mxu0 0
    %4756 = vmatpush1.bf16.msra.mxu0 0
    %4757 = vmatprep.subr.bf16.mxu0 0
    %4758 = vmatpush1.bf16.msra.mxu0 0
    %4759 = vmatprep.subr.bf16.mxu0 0
    %4760 = vmatpush1.bf16.msra.mxu0 0
    %4761 = vmatprep.subr.bf16.mxu0 0
    %4762 = vmatpush1.bf16.msra.mxu0 0
    %4763 = vmatprep.subr.bf16.mxu0 0
    %4764 = vmatpush1.bf16.msra.mxu0 %v4736
    %4765 = vmatprep.subr.bf16.mxu0 0
    %4766 = vmatpush1.bf16.msra.mxu0 %v4735
    %4767 = vmatprep.subr.bf16.mxu0 0
    %4768 = vmatpush2.bf16.msra.mxu0 0
    %4769 = vmatprep.subr.bf16.mxu0 0
    %4770 = vmatpush2.bf16.msra.mxu0 0
    %4771 = vmatprep.subr.bf16.mxu0 0
    %4772 = vmatpush2.bf16.msra.mxu0 0
    %4773 = vmatprep.subr.bf16.mxu0 0
    %4774 = vmatpush2.bf16.msra.mxu0 0
    %4775 = vmatprep.subr.bf16.mxu0 0
    %4776 = vmatpush2.bf16.msra.mxu0 0
    %4777 = vmatprep.subr.bf16.mxu0 0
    %4778 = vmatpush2.bf16.msra.mxu0 0
    %4779 = vmatprep.subr.bf16.mxu0 0
    %4780 = vmatpush2.bf16.msra.mxu0 0
    %4781 = vmatprep.subr.bf16.mxu0 0
    %4782 = vmatpush2.bf16.msra.mxu0 0
    %4783 = vmatprep.mubr.bf16.mxu0 0
    %4784 = vmatmul.mubr.bf16.gmra.mxu0 %v4740
    %v4785 = vpop.f32.mrf.mxu0
    %v4786 = vadd.f32 %v4726, %v4785
    %v4787 = vpop.f32.mrf.mxu0
    %v4788 = vpop.f32.mrf.mxu0
    %v4789 = vadd.f32 %v4726, %v4788
    %v4790 = vpop.f32.mrf.mxu0
    %4791 = vmatprep.mubr.bf16.mxu0 0
    %4792 = vmatmul.mubr.bf16.gmra.mxu0 %v4743
    %v4793 = vpop.f32.mrf.mxu0
    %v4794 = vadd.f32 %v4726, %v4793
    %v4795 = vpop.f32.mrf.mxu0
    %v4796 = vpop.f32.mrf.mxu0
    %v4797 = vadd.f32 %v4726, %v4796
    %v4798 = vpop.f32.mrf.mxu0
    %4799 = vmatprep.mubr.bf16.mxu0 0
    %4800 = vmatmul.mubr.bf16.gmra.mxu0 %v4746
    %v4801 = vpop.f32.mrf.mxu0
    %v4802 = vadd.f32 %v4726, %v4801
    %v4803 = vpop.f32.mrf.mxu0
    %v4804 = vpop.f32.mrf.mxu0
    %v4805 = vadd.f32 %v4726, %v4804
    %v4806 = vpop.f32.mrf.mxu0
    %4807 = vmatprep.mubr.bf16.mxu0 0
    %4808 = vmatmul.mubr.bf16.gmra.mxu0 %v4749
    %v4809 = vpop.f32.mrf.mxu0
    %v4810 = vadd.f32 %v4726, %v4809
    %v4811 = vpop.f32.mrf.mxu0
    %v4812 = vpop.f32.mrf.mxu0
    %v4813 = vadd.f32 %v4726, %v4812
    %v4814 = vpop.f32.mrf.mxu0
    %4815 = vdwg.mxu0
    %4816 = vst.msk [vmem:[#allocation2] sm:$0xff] %vm98, %v4786
    %4817 = vst.msk [vmem:[#allocation2 + $0x8] sm:$0xff] %vm98, %v4789
    %4818 = vst.msk [vmem:[#allocation2 + $0x10] sm:$0xff] %vm98, %v4794
    %4819 = vst.msk [vmem:[#allocation2 + $0x18] sm:$0xff] %vm98, %v4797
    %4820 = vst.msk [vmem:[#allocation2 + $0x20] sm:$0xff] %vm98, %v4802
    %4821 = vst.msk [vmem:[#allocation2 + $0x28] sm:$0xff] %vm98, %v4805
    %4822 = vst.msk [vmem:[#allocation2 + $0x30] sm:$0xff] %vm98, %v4810
    %4823 = vst.msk [vmem:[#allocation2 + $0x38] sm:$0xff] %vm98, %v4813
    // Predicated region
    $region22: #{context_encoder_v2_forward.1} parent=1 // pred_check
      _
    $region23: #{context_encoder_v2_forward.1} parent=1 // pred_check_branch
      %4825 = sbr.rel (0) target = $region25
    $region24: #{context_encoder_v2_forward.1} parent=1 // pred_region
      %s4827 = ssub.s32 1024, 1024
      %4828 = vsyncadd [#allocation3], %s4827
      %s4829 = sshll.u32 [#allocation2], 4
      %s4830 = int_to_ptr.vmem [resolvable:$true] %s4829
      %4835 = dma.vmem_to_hbm [thread:$0]  %s4830, 1024, %s5, [#allocation3], 128, 128, 8
    $region25: #{context_encoder_v2_forward.1} parent=1 // pred_fallthru
      _
    // Predicated region
    $region26: #{context_encoder_v2_forward.1} parent=1 // pred_check
      _
    $region27: #{context_encoder_v2_forward.1} parent=1 // pred_check_branch
      %4837 = sbr.rel (0) target = $region29
    $region28: #{context_encoder_v2_forward.1} parent=1 // pred_region
      %4838 = dma.done [#allocation3], 1024
    $region29: #{context_encoder_v2_forward.1} parent=1 // pred_fallthru
      _
    %4839 = vsyncpa [#allocation3], 1

</llo_original>
